<compile_context>
chip_gen: v7x
topology: tpu7x:2x2x1
jax: 0.10.0
libtpu: 0.0.40
codegen_flags: <defaults>
</compile_context>

<pallas_src>
import functools
import math

import jax
import jax.numpy as jnp
from jax import lax
from jax.experimental import pallas as pl
from jax.experimental.pallas import tpu as pltpu

# ---------------- model hyper-parameters (scaled down, consistent with module) ----
IN_DIM = 6
IN_PAD = 8           # feature dim padded to 8 for aligned matmuls / DMA rows
HIDDEN = 32          # hidden_dim (small for the demo; module default is 256)
HEADS = 4
LAYERS = 2
FF = 2 * HIDDEN
HEAD_DIM = HIDDEN // HEADS
NSEQ = 3             # x1, x2, x3 per batch element
SLAB_COLS = 128      # lane-dense parameter slab


# ---------------------------- parameter slab layout --------------------------------
def _round8(n):
    return (n + 7) // 8 * 8


def _build_layout():
    layout = {}
    row = 0

    def add(name, r, c):
        nonlocal row
        layout[name] = (row, r, c)
        row += _round8(r)

    add("we", IN_PAD, HIDDEN)
    add("be", 1, HIDDEN)
    add("lne_g", 1, HIDDEN)
    add("lne_b", 1, HIDDEN)
    for l in range(LAYERS):
        add(f"wqkv_{l}", HIDDEN, 3 * HIDDEN)    # fused [Wq*scale | Wk | Wv]
        add(f"bqkv_{l}", 1, 3 * HIDDEN)
        add(f"wo_{l}", HIDDEN, HIDDEN)
        add(f"bo_{l}", 1, HIDDEN)
        add(f"ln1_g_{l}", 1, HIDDEN)
        add(f"ln1_b_{l}", 1, HIDDEN)
        add(f"w1_{l}", HIDDEN, FF)
        add(f"b1_{l}", 1, FF)
        add(f"w2_{l}", FF, HIDDEN)
        add(f"b2_{l}", 1, HIDDEN)
        add(f"ln2_g_{l}", 1, HIDDEN)
        add(f"ln2_b_{l}", 1, HIDDEN)
    add("wfc_a", 1, HIDDEN)      # w_fc[:HIDDEN, 0]   (transposed row)
    add("wfc_b", 1, HIDDEN)      # w_fc[HIDDEN:, 0]
    add("b_fc", 1, 1)
    return layout, row


PARAM_LAYOUT, SLAB_ROWS = _build_layout()


def pack_params(params):
    """Pack every parameter into one lane-dense (SLAB_ROWS, 128) f32 slab.

    Call this ONCE (outside the jitted forward) when weights are static.
    """
    scale = 1.0 / math.sqrt(HEAD_DIM)
    we = jnp.zeros((IN_PAD, HIDDEN), jnp.float32).at[:IN_DIM].set(
        params["we"].astype(jnp.float32))
    entries = {
        "we": we,
        "be": params["be"].reshape(1, HIDDEN),
        "lne_g": params["lne_g"].reshape(1, HIDDEN),
        "lne_b": params["lne_b"].reshape(1, HIDDEN),
        "wfc_a": params["w_fc"][:HIDDEN, 0].reshape(1, HIDDEN),
        "wfc_b": params["w_fc"][HIDDEN:, 0].reshape(1, HIDDEN),
        "b_fc": params["b_fc"].reshape(1, 1),
    }
    for l in range(LAYERS):
        wq = params["wqkv"][l, 0] * scale      # fold 1/sqrt(head_dim) into W_q/b_q
        wk = params["wqkv"][l, 1]
        wv = params["wqkv"][l, 2]
        entries[f"wqkv_{l}"] = jnp.concatenate([wq, wk, wv], axis=1)
        bq = params["bqkv"][l, 0] * scale
        bk = params["bqkv"][l, 1]
        bv = params["bqkv"][l, 2]
        entries[f"bqkv_{l}"] = jnp.concatenate([bq, bk, bv], axis=0).reshape(1, 3 * HIDDEN)
        entries[f"wo_{l}"] = params["wo"][l]
        entries[f"bo_{l}"] = params["bo"][l].reshape(1, HIDDEN)
        entries[f"ln1_g_{l}"] = params["ln1_g"][l].reshape(1, HIDDEN)
        entries[f"ln1_b_{l}"] = params["ln1_b"][l].reshape(1, HIDDEN)
        entries[f"w1_{l}"] = params["w1"][l]
        entries[f"b1_{l}"] = params["b1"][l].reshape(1, FF)
        entries[f"w2_{l}"] = params["w2"][l]
        entries[f"b2_{l}"] = params["b2"][l].reshape(1, HIDDEN)
        entries[f"ln2_g_{l}"] = params["ln2_g"][l].reshape(1, HIDDEN)
        entries[f"ln2_b_{l}"] = params["ln2_b"][l].reshape(1, HIDDEN)

    slab = jnp.zeros((SLAB_ROWS, SLAB_COLS), jnp.float32)
    for name, val in entries.items():
        row, r, c = PARAM_LAYOUT[name]
        slab = slab.at[row:row + r, 0:c].set(val.astype(jnp.float32))
    return slab


# ---------------------------- plain-JAX glue (preprocessing) ----------------------
def _haversine(lon1, lat1, lon2, lat2):
    lon1, lat1, lon2, lat2 = map(jnp.deg2rad, (lon1, lat1, lon2, lat2))
    dlon = lon2 - lon1
    dlat = lat2 - lat1
    a = jnp.sin(dlat / 2) ** 2 + jnp.cos(lat1) * jnp.cos(lat2) * jnp.sin(dlon / 2) ** 2
    c = 2.0 * jnp.arcsin(jnp.sqrt(a))
    return c * 6371.0


def _bearing(lon1, lat1, lon2, lat2):
    lon1, lat1, lon2, lat2 = map(jnp.deg2rad, (lon1, lat1, lon2, lat2))
    dlon = lon2 - lon1
    y = jnp.sin(dlon) * jnp.cos(lat2)
    x = jnp.cos(lat1) * jnp.sin(lat2) - jnp.sin(lat1) * jnp.cos(lat2) * jnp.cos(dlon)
    b = jnp.degrees(jnp.arctan2(y, x))
    return jnp.mod(b + 360.0, 360.0)


def _mercator(latitude, longitude):
    lat_rad = jnp.deg2rad(latitude)
    lon_rad = jnp.deg2rad(longitude)
    R = 6378137.0
    x = R * lon_rad
    y = R * jnp.log(jnp.tan(jnp.pi / 4 + lat_rad / 2))
    return x, y


def _normalize_coordinates(x1, x2, x3):
    # Faithful (including the unpack-swap quirks) vectorized port of the PyTorch code.
    lat_x1, lon_x1 = x1[:, :, 0], x1[:, :, 1]
    lat_x2, lon_x2 = x2[:, :, 0], x2[:, :, 1]
    lat_x1, lon_x1 = _mercator(lat_x1, lon_x1)   # lat_* <- x(lon), lon_* <- y(lat) (as in torch code)
    lat_x2, lon_x2 = _mercator(lat_x2, lon_x2)

    max_lat = jnp.maximum(lat_x1.max(1, keepdims=True), lat_x2.max(1, keepdims=True))
    min_lat = jnp.minimum(lat_x1.min(1, keepdims=True), lat_x2.min(1, keepdims=True))
    max_lon = jnp.maximum(lon_x1.max(1, keepdims=True), lon_x2.max(1, keepdims=True))
    min_lon = jnp.minimum(lon_x1.min(1, keepdims=True), lon_x2.min(1, keepdims=True))

    eps = 1e-8
    dlat = max_lat - min_lat + eps
    dlon = max_lon - min_lon + eps

    x1 = x1.at[:, :, 0].set((lat_x1 - min_lat) / dlat)
    x2 = x2.at[:, :, 0].set((lat_x2 - min_lat) / dlat)
    x1 = x1.at[:, :, 1].set((lon_x1 - min_lon) / dlon)
    x2 = x2.at[:, :, 1].set((lon_x2 - min_lon) / dlon)

    lat_x3, lon_x3 = x3[:, :, 0], x3[:, :, 1]
    lon_x3, lat_x3 = _mercator(lat_x3, lon_x3)   # swapped unpack, as in the torch code
    x3 = x3.at[:, :, 0].set((lat_x3 - min_lat) / dlat)
    x3 = x3.at[:, :, 1].set((lon_x3 - min_lon) / dlon)
    return x1, x2, x3


# ---------------------------- Pallas kernel ----------------------------------------
def _p(w_ref, name):
    row, r, c = PARAM_LAYOUT[name]
    return w_ref[row:row + r, 0:c]


def _pb(w_ref, name):
    return _p(w_ref, name).astype(jnp.bfloat16)


def _layer_norm(x, g, b, eps=1e-5):
    mu = jnp.mean(x, axis=-1, keepdims=True)
    var = jnp.mean((x - mu) ** 2, axis=-1, keepdims=True)
    return (x - mu) * lax.rsqrt(var + eps) * g + b


def _gelu(x):
    # TODO(synk): nn.GELU() default is the exact erf GELU; tanh approximation kept for
    # robust Mosaic lowering (numerically near-identical for these synthetic weights).
    c = math.sqrt(2.0 / math.pi)
    return 0.5 * x * (1.0 + jnp.tanh(c * (x + 0.044715 * x * x * x)))


def _fused_kernel(x_ref, w_ref, out_ref, *, b_tile, seq_lens, s_pad):
    """B_TILE batch elements: 3*B_TILE stacked (padded) sequences -> head -> sigmoid."""
    S = s_pad
    nbs = b_tile * NSEQ          # number of (sequence, batch-in-tile) groups
    TA = nbs * S                 # total token rows in this tile
    bf16 = jnp.bfloat16

    x = x_ref[0]                                                   # (TA, IN_PAD) f32

    # ---- embed: Linear -> LayerNorm -> GELU on all token rows at once ----
    h = jnp.dot(x.astype(bf16), _pb(w_ref, "we"),
                preferred_element_type=jnp.float32) + _p(w_ref, "be")
    h = _layer_norm(h, _p(w_ref, "lne_g"), _p(w_ref, "lne_b"))
    h = _gelu(h)                                                   # (TA, HIDDEN) f32

    # ---- static masks (sequence-major layout: [x1 | x2 | x3] blocks of b_tile*S rows)
    # additive key mask (x3 is zero-padded from its true length to S), hoisted
    rows = lax.broadcasted_iota(jnp.int32, (TA, S), 0)
    cols = lax.broadcasted_iota(jnp.int32, (TA, S), 1)
    lens = jnp.full((TA, S), seq_lens[NSEQ - 1], jnp.int32)
    for n in range(NSEQ - 1, 0, -1):
        lens = jnp.where(rows < n * b_tile * S, seq_lens[n - 1], lens)
    mask_add = jnp.where(cols < lens, 0.0, -1e30).reshape(nbs, S, S)

    # masked mean-pool expressed as one small matmul: pooled = P @ h
    rp = lax.broadcasted_iota(jnp.int32, (nbs, TA), 0)   # pooled (seq-group) index
    cp = lax.broadcasted_iota(jnp.int32, (nbs, TA), 1)   # token row index
    glen = jnp.full((nbs, TA), seq_lens[NSEQ - 1], jnp.int32)
    ginv = jnp.full((nbs, TA), 1.0 / seq_lens[NSEQ - 1], jnp.float32)
    for n in range(NSEQ - 1, 0, -1):
        glen = jnp.where(rp < n * b_tile, seq_lens[n - 1], glen)
        ginv = jnp.where(rp < n * b_tile, 1.0 / seq_lens[n - 1], ginv)
    start = rp * S
    pool_mat = jnp.where((cp >= start) & (cp < start + glen), ginv, 0.0)  # (nbs, TA)

    # ---- transformer encoder layers (post-LN, ReLU FFN) ----
    for l in range(LAYERS):
        # fused QKV projection (1/sqrt(head_dim) already folded into W_q / b_q)
        qkv = jnp.dot(h.astype(bf16), _pb(w_ref, f"wqkv_{l}"),
                      preferred_element_type=jnp.float32) + _p(w_ref, f"bqkv_{l}")
        heads_out = []
        for hd in range(HEADS):
            q = qkv[:, hd * HEAD_DIM:(hd + 1) * HEAD_DIM].reshape(nbs, S, HEAD_DIM)
            k = qkv[:, HIDDEN + hd * HEAD_DIM:
                       HIDDEN + (hd + 1) * HEAD_DIM].reshape(nbs, S, HEAD_DIM)
            v = qkv[:, 2 * HIDDEN + hd * HEAD_DIM:
                       2 * HIDDEN + (hd + 1) * HEAD_DIM].reshape(nbs, S, HEAD_DIM)

            s = jnp.einsum("nik,njk->nij", q, k,
                           preferred_element_type=jnp.float32) + mask_add
            s = s - jnp.max(s, axis=-1, keepdims=True)
            p = jnp.exp(s)
            p = p * pl.reciprocal(jnp.sum(p, axis=-1, keepdims=True), approx=True)
            o = jnp.einsum("nij,njk->nik", p, v, preferred_element_type=jnp.float32)
            heads_out.append(o.reshape(TA, HEAD_DIM))

        o_cat = jnp.concatenate(heads_out, axis=-1)                # (TA, HIDDEN)
        attn = jnp.dot(o_cat.astype(bf16), _pb(w_ref, f"wo_{l}"),
                       preferred_element_type=jnp.float32) + _p(w_ref, f"bo_{l}")
        h = _layer_norm(h + attn, _p(w_ref, f"ln1_g_{l}"), _p(w_ref, f"ln1_b_{l}"))

        ff = jnp.dot(h.astype(bf16), _pb(w_ref, f"w1_{l}"),
                     preferred_element_type=jnp.float32) + _p(w_ref, f"b1_{l}")
        ff = jnp.maximum(ff, 0.0)
        ff = jnp.dot(ff.astype(bf16), _pb(w_ref, f"w2_{l}"),
                     preferred_element_type=jnp.float32) + _p(w_ref, f"b2_{l}")
        h = _layer_norm(h + ff, _p(w_ref, f"ln2_g_{l}"), _p(w_ref, f"ln2_b_{l}"))

    # ---- masked AdaptiveAvgPool1d(1) over valid positions (single small matmul) ----
    pooled = jnp.dot(pool_mat, h, preferred_element_type=jnp.float32)   # (nbs, HIDDEN)
    f1 = pooled[0:b_tile, :]
    f2 = pooled[b_tile:2 * b_tile, :]
    f3 = pooled[2 * b_tile:3 * b_tile, :]

    # ---- head: |f1-f2|, |f1-f3| -> relu -> fc -> sigmoid (folded epilogue) ----
    d1 = jnp.maximum(jnp.abs(f1 - f2), 0.0)
    d2 = jnp.maximum(jnp.abs(f1 - f3), 0.0)
    logit = (jnp.sum(d1 * _p(w_ref, "wfc_a"), axis=-1, keepdims=True)
             + jnp.sum(d2 * _p(w_ref, "wfc_b"), axis=-1, keepdims=True)
             + _p(w_ref, "b_fc"))
    out_ref[...] = jax.nn.sigmoid(logit).reshape(b_tile, 1, 1)


def _choose_b_tile(batch):
    # Largest tile that divides B while keeping >= 2 grid programs (v7x dual TC).
    for bt in (16, 8, 4, 2):
        if batch % bt == 0 and batch // bt >= 2:
            return bt
    return 1


def fused_process_and_head(xs, slab, seq_lens, b_tile):
    """xs: (NB, b_tile*NSEQ*S, IN_PAD) sequence-major stacked inputs; slab: packed params."""
    nb, ta, feat = xs.shape
    batch = nb * b_tile
    s_pad = ta // (b_tile * NSEQ)
    kernel = functools.partial(
        _fused_kernel,
        b_tile=int(b_tile),
        seq_lens=tuple(int(s) for s in seq_lens),
        s_pad=int(s_pad),
    )
    out = pl.pallas_call(
        kernel,
        out_shape=jax.ShapeDtypeStruct((batch, 1, 1), jnp.float32),
        grid=(nb,),
        in_specs=[
            pl.BlockSpec((1, ta, feat), lambda g: (g, 0, 0)),
            pl.BlockSpec(slab.shape, lambda g: (0, 0)),      # single parameter slab
        ],
        out_specs=pl.BlockSpec((b_tile, 1, 1), lambda g: (g, 0, 0)),
        compiler_params=pltpu.CompilerParams(dimension_semantics=("parallel",)),
    )(xs, slab)
    return out[:, 0, 0:1]                                          # (B, 1)


# ---------------------------- full forward ------------------------------------------
def dctfeita_forward(x1, x2, dtime, slab):
    x1 = x1.astype(jnp.float32)
    x2 = x2.astype(jnp.float32)

    x1_trimmed = x1[:, -1:, :]                                     # x1[:, i:, :] with i = -1
    lat1 = x1[:, -1, 0]
    lon1 = x1[:, -1, 1]
    lat2 = x2[:, 0, 0]
    lon2 = x2[:, 0, 1]

    distances = _haversine(lon1, lat1, lon2, lat2)
    bearings = jnp.deg2rad(_bearing(lon1, lat1, lon2, lat2))

    dt = dtime.reshape(-1).astype(jnp.float32)
    dt = jnp.where(dt == 0, 0.001, dt)
    speeds = distances / dt * 1000.0 / 0.514444
    vx = speeds * jnp.sin(bearings)
    vy = speeds * jnp.cos(bearings)

    # masked in-place writes on x2's first point (x2_first_point is a view in torch)
    x2 = x2.at[:, 0, 2].set(jnp.where(speeds != 0, speeds, x2[:, 0, 2]))
    x2 = x2.at[:, 0, 4].set(jnp.where(vx != 0, vx, x2[:, 0, 4]))
    x2 = x2.at[:, 0, 5].set(jnp.where(vy != 0, vy, x2[:, 0, 5]))

    x3 = jnp.concatenate([x1_trimmed, x2[:, 0:1, :]], axis=1)      # (B, 2, 6)
    x1, x2, x3 = _normalize_coordinates(x1, x2, x3)

    batch = x1.shape[0]
    s1, s2, s3 = x1.shape[1], x2.shape[1], x3.shape[1]
    s_pad = max(s1, s2, s3)

    def pad_seq(x):
        return jnp.pad(x, ((0, 0), (0, s_pad - x.shape[1]), (0, IN_PAD - x.shape[2])))

    b_tile = _choose_b_tile(batch)
    nb = batch // b_tile

    # sequence-major stacking per grid block: [x1 rows | x2 rows | x3 rows]
    xs = jnp.stack([pad_seq(x1), pad_seq(x2), pad_seq(x3)], axis=0)   # (NSEQ, B, S, IN_PAD)
    xs = xs.reshape(NSEQ, nb, b_tile, s_pad, IN_PAD)
    xs = jnp.transpose(xs, (1, 0, 2, 3, 4))                           # (nb, NSEQ, b_tile, S, IN_PAD)
    xs = xs.reshape(nb, NSEQ * b_tile * s_pad, IN_PAD)

    return fused_process_and_head(xs, slab, (s1, s2, s3), b_tile)


# ---------------------------- deterministic parameter init -------------------------
def make_params(key):
    ks = jax.random.split(key, 8)
    s = 0.15
    p = {
        "we":    s * jax.random.normal(ks[0], (IN_DIM, HIDDEN), jnp.float32),
        "be":    jnp.zeros((1, HIDDEN), jnp.float32),
        "lne_g": jnp.ones((1, HIDDEN), jnp.float32),
        "lne_b": jnp.zeros((1, HIDDEN), jnp.float32),
        "wqkv":  s * jax.random.normal(ks[1], (LAYERS, 3, HIDDEN, HIDDEN), jnp.float32),
        "bqkv":  jnp.zeros((LAYERS, 3, HIDDEN), jnp.float32),
        "wo":    s * jax.random.normal(ks[2], (LAYERS, HIDDEN, HIDDEN), jnp.float32),
        "bo":    jnp.zeros((LAYERS, HIDDEN), jnp.float32),
        "ln1_g": jnp.ones((LAYERS, HIDDEN), jnp.float32),
        "ln1_b": jnp.zeros((LAYERS, HIDDEN), jnp.float32),
        "w1":    s * jax.random.normal(ks[3], (LAYERS, HIDDEN, FF), jnp.float32),
        "b1":    jnp.zeros((LAYERS, FF), jnp.float32),
        "w2":    s * jax.random.normal(ks[4], (LAYERS, FF, HIDDEN), jnp.float32),
        "b2":    jnp.zeros((LAYERS, HIDDEN), jnp.float32),
        "ln2_g": jnp.ones((LAYERS, HIDDEN), jnp.float32),
        "ln2_b": jnp.zeros((LAYERS, HIDDEN), jnp.float32),
        "w_fc":  s * jax.random.normal(ks[5], (2 * HIDDEN, 1), jnp.float32),
        "b_fc":  jnp.zeros((1, 1), jnp.float32),
    }
    return p


# ---------------------------- demo --------------------------------------------------
if __name__ == "__main__":
    key = jax.random.PRNGKey(0)
    kk = jax.random.split(key, 10)
    B, S1, S2 = 2, 8, 8

    lat1 = jax.random.uniform(kk[0], (B, S1), minval=20.0, maxval=40.0)
    lon1 = jax.random.uniform(kk[1], (B, S1), minval=110.0, maxval=130.0)
    f1 = jax.random.normal(kk[2], (B, S1, 4))
    x1 = jnp.concatenate([lat1[..., None], lon1[..., None], f1], axis=-1).astype(jnp.float32)

    lat2 = jax.random.uniform(kk[3], (B, S2), minval=20.0, maxval=40.0)
    lon2 = jax.random.uniform(kk[4], (B, S2), minval=110.0, maxval=130.0)
    f2 = jax.random.normal(kk[5], (B, S2, 4))
    x2 = jnp.concatenate([lat2[..., None], lon2[..., None], f2], axis=-1).astype(jnp.float32)

    dtime = jax.random.uniform(kk[6], (B, 1), minval=0.5, maxval=5.0).astype(jnp.float32)

    params = make_params(kk[7])
    slab = jax.block_until_ready(pack_params(params))   # packed once, outside the jitted forward

    fwd = jax.jit(dctfeita_forward)
    out = fwd(x1, x2, dtime, slab)
    out = jax.block_until_ready(out)
    assert out.shape == (B, 1)
    print("KERNEL_OK")
</pallas_src>

<mosaic_0001>
module attributes {stable_mosaic.version = 11 : i64} {
  func.func @_fused_kernel(%arg0: i32, %arg1: memref<1x24x8xf32, #tpu.memory_space<vmem>>, %arg2: memref<504x128xf32, #tpu.memory_space<vmem>>, %arg3: memref<1x1x1xf32, #tpu.memory_space<vmem>>) attributes {dimension_semantics = [#tpu.dimension_semantics<parallel>], iteration_bounds = array<i64: 2>, scalar_prefetch = 0 : i64, scratch_operands = 0 : i64, tpu.core_type = #tpu.core_type<tc>, window_params = [{transform_indices = @transform_0, window_bounds = array<i64: 1, 24, 8>}, {pipeline_mode = #tpu.pipeline_mode<synchronous>, transform_indices = @transform_1, window_bounds = array<i64: 504, 128>}, {transform_indices = @transform_2, window_bounds = array<i64: 1, 1, 1>}]} {
    %c0 = arith.constant 0 : index
    %c0_0 = arith.constant 0 : index
    %c0_1 = arith.constant 0 : index
    %0 = vector.load %arg1[%c0, %c0_0, %c0_1] : memref<1x24x8xf32, #tpu.memory_space<vmem>>, vector<1x24x8xf32>
    %1 = vector.shape_cast %0 : vector<1x24x8xf32> to vector<24x8xf32>
    %2 = arith.truncf %1 : vector<24x8xf32> to vector<24x8xbf16>
    %c0_2 = arith.constant 0 : index
    %c0_3 = arith.constant 0 : index
    %3 = vector.load %arg2[%c0_2, %c0_3] : memref<504x128xf32, #tpu.memory_space<vmem>>, vector<8x32xf32>
    %4 = arith.truncf %3 : vector<8x32xf32> to vector<8x32xbf16>
    %cst = arith.constant dense<0.000000e+00> : vector<24x32xf32>
    %5 = tpu.matmul %2, %4, %cst {dimension_numbers = #tpu.dot_dimension_numbers<[1], [0], [0], [1], [0, 0, 1, 1], [], []>} : vector<24x8xbf16>, vector<8x32xbf16>, vector<24x32xf32> -> vector<24x32xf32>
    %c8 = arith.constant 8 : index
    %c0_4 = arith.constant 0 : index
    %6 = vector.load %arg2[%c8, %c0_4] : memref<504x128xf32, #tpu.memory_space<vmem>>, vector<1x32xf32>
    %7 = vector.broadcast %6 : vector<1x32xf32> to vector<24x32xf32>
    %8 = arith.addf %5, %7 : vector<24x32xf32>
    %c16 = arith.constant 16 : index
    %c0_5 = arith.constant 0 : index
    %9 = vector.load %arg2[%c16, %c0_5] : memref<504x128xf32, #tpu.memory_space<vmem>>, vector<1x32xf32>
    %c24 = arith.constant 24 : index
    %c0_6 = arith.constant 0 : index
    %10 = vector.load %arg2[%c24, %c0_6] : memref<504x128xf32, #tpu.memory_space<vmem>>, vector<1x32xf32>
    %cst_7 = arith.constant dense<0.000000e+00> : vector<24xf32>
    %11 = vector.multi_reduction <add>, %8, %cst_7 [1] : vector<24x32xf32> to vector<24xf32>
    %12 = vector.shape_cast %11 : vector<24xf32> to vector<24x1xf32>
    %cst_8 = arith.constant 3.200000e+01 : f32
    %13 = vector.broadcast %cst_8 : f32 to vector<24x1xf32>
    %14 = arith.divf %12, %13 : vector<24x1xf32>
    %15 = vector.broadcast %14 : vector<24x1xf32> to vector<24x32xf32>
    %16 = arith.subf %8, %15 : vector<24x32xf32>
    %17 = arith.mulf %16, %16 : vector<24x32xf32>
    %cst_9 = arith.constant dense<0.000000e+00> : vector<24xf32>
    %18 = vector.multi_reduction <add>, %17, %cst_9 [1] : vector<24x32xf32> to vector<24xf32>
    %19 = vector.shape_cast %18 : vector<24xf32> to vector<24x1xf32>
    %cst_10 = arith.constant 3.200000e+01 : f32
    %20 = vector.broadcast %cst_10 : f32 to vector<24x1xf32>
    %21 = arith.divf %19, %20 : vector<24x1xf32>
    %22 = vector.broadcast %14 : vector<24x1xf32> to vector<24x32xf32>
    %23 = arith.subf %8, %22 : vector<24x32xf32>
    %cst_11 = arith.constant 9.99999974E-6 : f32
    %24 = vector.broadcast %cst_11 : f32 to vector<24x1xf32>
    %25 = arith.addf %21, %24 : vector<24x1xf32>
    %26 = math.rsqrt %25 : vector<24x1xf32>
    %27 = vector.broadcast %26 : vector<24x1xf32> to vector<24x32xf32>
    %28 = arith.mulf %23, %27 : vector<24x32xf32>
    %29 = vector.broadcast %9 : vector<1x32xf32> to vector<24x32xf32>
    %30 = arith.mulf %28, %29 : vector<24x32xf32>
    %31 = vector.broadcast %10 : vector<1x32xf32> to vector<24x32xf32>
    %32 = arith.addf %30, %31 : vector<24x32xf32>
    %cst_12 = arith.constant 5.000000e-01 : f32
    %33 = vector.broadcast %cst_12 : f32 to vector<24x32xf32>
    %34 = arith.mulf %33, %32 : vector<24x32xf32>
    %cst_13 = arith.constant 4.471500e-02 : f32
    %35 = vector.broadcast %cst_13 : f32 to vector<24x32xf32>
    %36 = arith.mulf %35, %32 : vector<24x32xf32>
    %37 = arith.mulf %36, %32 : vector<24x32xf32>
    %38 = arith.mulf %37, %32 : vector<24x32xf32>
    %39 = arith.addf %32, %38 : vector<24x32xf32>
    %cst_14 = arith.constant 0.797884583 : f32
    %40 = vector.broadcast %cst_14 : f32 to vector<24x32xf32>
    %41 = arith.mulf %40, %39 : vector<24x32xf32>
    %42 = math.tanh %41 : vector<24x32xf32>
    %cst_15 = arith.constant 1.000000e+00 : f32
    %43 = vector.broadcast %cst_15 : f32 to vector<24x32xf32>
    %44 = arith.addf %43, %42 : vector<24x32xf32>
    %45 = arith.mulf %34, %44 : vector<24x32xf32>
    %46 = tpu.iota {dimensions = array<i32: 0>} : vector<24x8xi32>
    %47 = tpu.iota {dimensions = array<i32: 1>} : vector<24x8xi32>
    %c2_i32 = arith.constant 2 : i32
    %48 = vector.broadcast %c2_i32 : i32 to vector<24x8xi32>
    %c16_i32 = arith.constant 16 : i32
    %49 = vector.broadcast %c16_i32 : i32 to vector<24x8xi32>
    %50 = arith.cmpi slt, %46, %49 : vector<24x8xi32>
    %c8_i32 = arith.constant 8 : i32
    %51 = vector.broadcast %c8_i32 : i32 to vector<24x8xi32>
    %52 = arith.select %50, %51, %48 : vector<24x8xi1>, vector<24x8xi32>
    %c8_i32_16 = arith.constant 8 : i32
    %53 = vector.broadcast %c8_i32_16 : i32 to vector<24x8xi32>
    %54 = arith.cmpi slt, %46, %53 : vector<24x8xi32>
    %c8_i32_17 = arith.constant 8 : i32
    %55 = vector.broadcast %c8_i32_17 : i32 to vector<24x8xi32>
    %56 = arith.select %54, %55, %52 : vector<24x8xi1>, vector<24x8xi32>
    %57 = arith.cmpi slt, %47, %56 : vector<24x8xi32>
    %cst_18 = arith.constant 0.000000e+00 : f32
    %cst_19 = arith.constant -1.000000e+30 : f32
    %58 = vector.broadcast %cst_18 : f32 to vector<24x8xf32>
    %59 = vector.broadcast %cst_19 : f32 to vector<24x8xf32>
    %60 = arith.select %57, %58, %59 : vector<24x8xi1>, vector<24x8xf32>
    %61 = vector.shape_cast %60 : vector<24x8xf32> to vector<3x8x8xf32>
    %62 = tpu.iota {dimensions = array<i32: 0>} : vector<3x24xi32>
    %63 = tpu.iota {dimensions = array<i32: 1>} : vector<3x24xi32>
    %c2_i32_20 = arith.constant 2 : i32
    %64 = vector.broadcast %c2_i32_20 : i32 to vector<3x24xi32>
    %cst_21 = arith.constant 5.000000e-01 : f32
    %65 = vector.broadcast %cst_21 : f32 to vector<3x24xf32>
    %c2_i32_22 = arith.constant 2 : i32
    %66 = vector.broadcast %c2_i32_22 : i32 to vector<3x24xi32>
    %67 = arith.cmpi slt, %62, %66 : vector<3x24xi32>
    %c8_i32_23 = arith.constant 8 : i32
    %68 = vector.broadcast %c8_i32_23 : i32 to vector<3x24xi32>
    %69 = arith.select %67, %68, %64 : vector<3x24xi1>, vector<3x24xi32>
    %c2_i32_24 = arith.constant 2 : i32
    %70 = vector.broadcast %c2_i32_24 : i32 to vector<3x24xi32>
    %71 = arith.cmpi slt, %62, %70 : vector<3x24xi32>
    %cst_25 = arith.constant 1.250000e-01 : f32
    %72 = vector.broadcast %cst_25 : f32 to vector<3x24xf32>
    %73 = arith.select %71, %72, %65 : vector<3x24xi1>, vector<3x24xf32>
    %c1_i32 = arith.constant 1 : i32
    %74 = vector.broadcast %c1_i32 : i32 to vector<3x24xi32>
    %75 = arith.cmpi slt, %62, %74 : vector<3x24xi32>
    %c8_i32_26 = arith.constant 8 : i32
    %76 = vector.broadcast %c8_i32_26 : i32 to vector<3x24xi32>
    %77 = arith.select %75, %76, %69 : vector<3x24xi1>, vector<3x24xi32>
    %c1_i32_27 = arith.constant 1 : i32
    %78 = vector.broadcast %c1_i32_27 : i32 to vector<3x24xi32>
    %79 = arith.cmpi slt, %62, %78 : vector<3x24xi32>
    %cst_28 = arith.constant 1.250000e-01 : f32
    %80 = vector.broadcast %cst_28 : f32 to vector<3x24xf32>
    %81 = arith.select %79, %80, %73 : vector<3x24xi1>, vector<3x24xf32>
    %c8_i32_29 = arith.constant 8 : i32
    %82 = vector.broadcast %c8_i32_29 : i32 to vector<3x24xi32>
    %83 = arith.muli %62, %82 : vector<3x24xi32>
    %84 = arith.cmpi sge, %63, %83 : vector<3x24xi32>
    %85 = arith.addi %83, %77 : vector<3x24xi32>
    %86 = arith.cmpi slt, %63, %85 : vector<3x24xi32>
    %87 = arith.andi %84, %86 : vector<3x24xi1>
    %cst_30 = arith.constant 0.000000e+00 : f32
    %88 = vector.broadcast %cst_30 : f32 to vector<3x24xf32>
    %89 = arith.select %87, %81, %88 : vector<3x24xi1>, vector<3x24xf32>
    %90 = arith.truncf %45 : vector<24x32xf32> to vector<24x32xbf16>
    %c32 = arith.constant 32 : index
    %c0_31 = arith.constant 0 : index
    %91 = vector.load %arg2[%c32, %c0_31] : memref<504x128xf32, #tpu.memory_space<vmem>>, vector<32x96xf32>
    %92 = arith.truncf %91 : vector<32x96xf32> to vector<32x96xbf16>
    %cst_32 = arith.constant dense<0.000000e+00> : vector<24x96xf32>
    %93 = tpu.matmul %90, %92, %cst_32 {dimension_numbers = #tpu.dot_dimension_numbers<[1], [0], [0], [1], [0, 0, 1, 1], [], []>} : vector<24x32xbf16>, vector<32x96xbf16>, vector<24x96xf32> -> vector<24x96xf32>
    %c64 = arith.constant 64 : index
    %c0_33 = arith.constant 0 : index
    %94 = vector.load %arg2[%c64, %c0_33] : memref<504x128xf32, #tpu.memory_space<vmem>>, vector<1x96xf32>
    %95 = vector.broadcast %94 : vector<1x96xf32> to vector<24x96xf32>
    %96 = arith.addf %93, %95 : vector<24x96xf32>
    %97 = vector.extract_strided_slice %96 {offsets = [0, 0], sizes = [24, 8], strides = [1, 1]} : vector<24x96xf32> to vector<24x8xf32>
    %98 = vector.shape_cast %97 : vector<24x8xf32> to vector<3x8x8xf32>
    %99 = vector.extract_strided_slice %96 {offsets = [0, 32], sizes = [24, 8], strides = [1, 1]} : vector<24x96xf32> to vector<24x8xf32>
    %100 = vector.shape_cast %99 : vector<24x8xf32> to vector<3x8x8xf32>
    %101 = vector.extract_strided_slice %96 {offsets = [0, 64], sizes = [24, 8], strides = [1, 1]} : vector<24x96xf32> to vector<24x8xf32>
    %102 = vector.shape_cast %101 : vector<24x8xf32> to vector<3x8x8xf32>
    "tpu.trace_start"() <{level = 10 : i32, message = "nik,njk->nij"}> : () -> ()
    %cst_34 = arith.constant dense<0.000000e+00> : vector<3x8x8xf32>
    %103 = tpu.matmul %98, %100, %cst_34 {dimension_numbers = #tpu.dot_dimension_numbers<[2], [2], [1], [1], [0, 0, 0, 1, 1, 1], [0], [0]>} : vector<3x8x8xf32>, vector<3x8x8xf32>, vector<3x8x8xf32> -> vector<3x8x8xf32>
    "tpu.trace_stop"() : () -> ()
    %104 = arith.addf %103, %61 : vector<3x8x8xf32>
    %cst_35 = arith.constant dense<0xFF800000> : vector<3x8xf32>
    %105 = vector.multi_reduction <maximumf>, %104, %cst_35 [2] : vector<3x8x8xf32> to vector<3x8xf32>
    %106 = vector.shape_cast %105 : vector<3x8xf32> to vector<3x8x1xf32>
    %107 = vector.broadcast %106 : vector<3x8x1xf32> to vector<3x8x8xf32>
    %108 = arith.subf %104, %107 : vector<3x8x8xf32>
    %109 = math.exp %108 : vector<3x8x8xf32>
    %cst_36 = arith.constant dense<0.000000e+00> : vector<3x8xf32>
    %110 = vector.multi_reduction <add>, %109, %cst_36 [2] : vector<3x8x8xf32> to vector<3x8xf32>
    %111 = vector.shape_cast %110 : vector<3x8xf32> to vector<3x8x1xf32>
    %112 = tpu.reciprocal %111 {approx = true} : vector<3x8x1xf32> -> vector<3x8x1xf32>
    %113 = vector.broadcast %112 : vector<3x8x1xf32> to vector<3x8x8xf32>
    %114 = arith.mulf %109, %113 : vector<3x8x8xf32>
    "tpu.trace_start"() <{level = 10 : i32, message = "nij,njk->nik"}> : () -> ()
    %cst_37 = arith.constant dense<0.000000e+00> : vector<3x8x8xf32>
    %115 = tpu.matmul %114, %102, %cst_37 {dimension_numbers = #tpu.dot_dimension_numbers<[2], [1], [1], [2], [0, 0, 0, 1, 1, 2], [0], [0]>} : vector<3x8x8xf32>, vector<3x8x8xf32>, vector<3x8x8xf32> -> vector<3x8x8xf32>
    "tpu.trace_stop"() : () -> ()
    %116 = vector.shape_cast %115 : vector<3x8x8xf32> to vector<24x8xf32>
    %117 = vector.extract_strided_slice %96 {offsets = [0, 8], sizes = [24, 8], strides = [1, 1]} : vector<24x96xf32> to vector<24x8xf32>
    %118 = vector.shape_cast %117 : vector<24x8xf32> to vector<3x8x8xf32>
    %119 = vector.extract_strided_slice %96 {offsets = [0, 40], sizes = [24, 8], strides = [1, 1]} : vector<24x96xf32> to vector<24x8xf32>
    %120 = vector.shape_cast %119 : vector<24x8xf32> to vector<3x8x8xf32>
    %121 = vector.extract_strided_slice %96 {offsets = [0, 72], sizes = [24, 8], strides = [1, 1]} : vector<24x96xf32> to vector<24x8xf32>
    %122 = vector.shape_cast %121 : vector<24x8xf32> to vector<3x8x8xf32>
    "tpu.trace_start"() <{level = 10 : i32, message = "nik,njk->nij"}> : () -> ()
    %cst_38 = arith.constant dense<0.000000e+00> : vector<3x8x8xf32>
    %123 = tpu.matmul %118, %120, %cst_38 {dimension_numbers = #tpu.dot_dimension_numbers<[2], [2], [1], [1], [0, 0, 0, 1, 1, 1], [0], [0]>} : vector<3x8x8xf32>, vector<3x8x8xf32>, vector<3x8x8xf32> -> vector<3x8x8xf32>
    "tpu.trace_stop"() : () -> ()
    %124 = arith.addf %123, %61 : vector<3x8x8xf32>
    %cst_39 = arith.constant dense<0xFF800000> : vector<3x8xf32>
    %125 = vector.multi_reduction <maximumf>, %124, %cst_39 [2] : vector<3x8x8xf32> to vector<3x8xf32>
    %126 = vector.shape_cast %125 : vector<3x8xf32> to vector<3x8x1xf32>
    %127 = vector.broadcast %126 : vector<3x8x1xf32> to vector<3x8x8xf32>
    %128 = arith.subf %124, %127 : vector<3x8x8xf32>
    %129 = math.exp %128 : vector<3x8x8xf32>
    %cst_40 = arith.constant dense<0.000000e+00> : vector<3x8xf32>
    %130 = vector.multi_reduction <add>, %129, %cst_40 [2] : vector<3x8x8xf32> to vector<3x8xf32>
    %131 = vector.shape_cast %130 : vector<3x8xf32> to vector<3x8x1xf32>
    %132 = tpu.reciprocal %131 {approx = true} : vector<3x8x1xf32> -> vector<3x8x1xf32>
    %133 = vector.broadcast %132 : vector<3x8x1xf32> to vector<3x8x8xf32>
    %134 = arith.mulf %129, %133 : vector<3x8x8xf32>
    "tpu.trace_start"() <{level = 10 : i32, message = "nij,njk->nik"}> : () -> ()
    %cst_41 = arith.constant dense<0.000000e+00> : vector<3x8x8xf32>
    %135 = tpu.matmul %134, %122, %cst_41 {dimension_numbers = #tpu.dot_dimension_numbers<[2], [1], [1], [2], [0, 0, 0, 1, 1, 2], [0], [0]>} : vector<3x8x8xf32>, vector<3x8x8xf32>, vector<3x8x8xf32> -> vector<3x8x8xf32>
    "tpu.trace_stop"() : () -> ()
    %136 = vector.shape_cast %135 : vector<3x8x8xf32> to vector<24x8xf32>
    %137 = vector.extract_strided_slice %96 {offsets = [0, 16], sizes = [24, 8], strides = [1, 1]} : vector<24x96xf32> to vector<24x8xf32>
    %138 = vector.shape_cast %137 : vector<24x8xf32> to vector<3x8x8xf32>
    %139 = vector.extract_strided_slice %96 {offsets = [0, 48], sizes = [24, 8], strides = [1, 1]} : vector<24x96xf32> to vector<24x8xf32>
    %140 = vector.shape_cast %139 : vector<24x8xf32> to vector<3x8x8xf32>
    %141 = vector.extract_strided_slice %96 {offsets = [0, 80], sizes = [24, 8], strides = [1, 1]} : vector<24x96xf32> to vector<24x8xf32>
    %142 = vector.shape_cast %141 : vector<24x8xf32> to vector<3x8x8xf32>
    "tpu.trace_start"() <{level = 10 : i32, message = "nik,njk->nij"}> : () -> ()
    %cst_42 = arith.constant dense<0.000000e+00> : vector<3x8x8xf32>
    %143 = tpu.matmul %138, %140, %cst_42 {dimension_numbers = #tpu.dot_dimension_numbers<[2], [2], [1], [1], [0, 0, 0, 1, 1, 1], [0], [0]>} : vector<3x8x8xf32>, vector<3x8x8xf32>, vector<3x8x8xf32> -> vector<3x8x8xf32>
    "tpu.trace_stop"() : () -> ()
    %144 = arith.addf %143, %61 : vector<3x8x8xf32>
    %cst_43 = arith.constant dense<0xFF800000> : vector<3x8xf32>
    %145 = vector.multi_reduction <maximumf>, %144, %cst_43 [2] : vector<3x8x8xf32> to vector<3x8xf32>
    %146 = vector.shape_cast %145 : vector<3x8xf32> to vector<3x8x1xf32>
    %147 = vector.broadcast %146 : vector<3x8x1xf32> to vector<3x8x8xf32>
    %148 = arith.subf %144, %147 : vector<3x8x8xf32>
    %149 = math.exp %148 : vector<3x8x8xf32>
    %cst_44 = arith.constant dense<0.000000e+00> : vector<3x8xf32>
    %150 = vector.multi_reduction <add>, %149, %cst_44 [2] : vector<3x8x8xf32> to vector<3x8xf32>
    %151 = vector.shape_cast %150 : vector<3x8xf32> to vector<3x8x1xf32>
    %152 = tpu.reciprocal %151 {approx = true} : vector<3x8x1xf32> -> vector<3x8x1xf32>
    %153 = vector.broadcast %152 : vector<3x8x1xf32> to vector<3x8x8xf32>
    %154 = arith.mulf %149, %153 : vector<3x8x8xf32>
    "tpu.trace_start"() <{level = 10 : i32, message = "nij,njk->nik"}> : () -> ()
    %cst_45 = arith.constant dense<0.000000e+00> : vector<3x8x8xf32>
    %155 = tpu.matmul %154, %142, %cst_45 {dimension_numbers = #tpu.dot_dimension_numbers<[2], [1], [1], [2], [0, 0, 0, 1, 1, 2], [0], [0]>} : vector<3x8x8xf32>, vector<3x8x8xf32>, vector<3x8x8xf32> -> vector<3x8x8xf32>
    "tpu.trace_stop"() : () -> ()
    %156 = vector.shape_cast %155 : vector<3x8x8xf32> to vector<24x8xf32>
    %157 = vector.extract_strided_slice %96 {offsets = [0, 24], sizes = [24, 8], strides = [1, 1]} : vector<24x96xf32> to vector<24x8xf32>
    %158 = vector.shape_cast %157 : vector<24x8xf32> to vector<3x8x8xf32>
    %159 = vector.extract_strided_slice %96 {offsets = [0, 56], sizes = [24, 8], strides = [1, 1]} : vector<24x96xf32> to vector<24x8xf32>
    %160 = vector.shape_cast %159 : vector<24x8xf32> to vector<3x8x8xf32>
    %161 = vector.extract_strided_slice %96 {offsets = [0, 88], sizes = [24, 8], strides = [1, 1]} : vector<24x96xf32> to vector<24x8xf32>
    %162 = vector.shape_cast %161 : vector<24x8xf32> to vector<3x8x8xf32>
    "tpu.trace_start"() <{level = 10 : i32, message = "nik,njk->nij"}> : () -> ()
    %cst_46 = arith.constant dense<0.000000e+00> : vector<3x8x8xf32>
    %163 = tpu.matmul %158, %160, %cst_46 {dimension_numbers = #tpu.dot_dimension_numbers<[2], [2], [1], [1], [0, 0, 0, 1, 1, 1], [0], [0]>} : vector<3x8x8xf32>, vector<3x8x8xf32>, vector<3x8x8xf32> -> vector<3x8x8xf32>
    "tpu.trace_stop"() : () -> ()
    %164 = arith.addf %163, %61 : vector<3x8x8xf32>
    %cst_47 = arith.constant dense<0xFF800000> : vector<3x8xf32>
    %165 = vector.multi_reduction <maximumf>, %164, %cst_47 [2] : vector<3x8x8xf32> to vector<3x8xf32>
    %166 = vector.shape_cast %165 : vector<3x8xf32> to vector<3x8x1xf32>
    %167 = vector.broadcast %166 : vector<3x8x1xf32> to vector<3x8x8xf32>
    %168 = arith.subf %164, %167 : vector<3x8x8xf32>
    %169 = math.exp %168 : vector<3x8x8xf32>
    %cst_48 = arith.constant dense<0.000000e+00> : vector<3x8xf32>
    %170 = vector.multi_reduction <add>, %169, %cst_48 [2] : vector<3x8x8xf32> to vector<3x8xf32>
    %171 = vector.shape_cast %170 : vector<3x8xf32> to vector<3x8x1xf32>
    %172 = tpu.reciprocal %171 {approx = true} : vector<3x8x1xf32> -> vector<3x8x1xf32>
    %173 = vector.broadcast %172 : vector<3x8x1xf32> to vector<3x8x8xf32>
    %174 = arith.mulf %169, %173 : vector<3x8x8xf32>
    "tpu.trace_start"() <{level = 10 : i32, message = "nij,njk->nik"}> : () -> ()
    %cst_49 = arith.constant dense<0.000000e+00> : vector<3x8x8xf32>
    %175 = tpu.matmul %174, %162, %cst_49 {dimension_numbers = #tpu.dot_dimension_numbers<[2], [1], [1], [2], [0, 0, 0, 1, 1, 2], [0], [0]>} : vector<3x8x8xf32>, vector<3x8x8xf32>, vector<3x8x8xf32> -> vector<3x8x8xf32>
    "tpu.trace_stop"() : () -> ()
    %176 = vector.shape_cast %175 : vector<3x8x8xf32> to vector<24x8xf32>
    %177 = tpu.concatenate %116, %136, %156, %176 in 1 : vector<24x8xf32>, vector<24x8xf32>, vector<24x8xf32>, vector<24x8xf32> -> vector<24x32xf32>
    %178 = arith.truncf %177 : vector<24x32xf32> to vector<24x32xbf16>
    %c72 = arith.constant 72 : index
    %c0_50 = arith.constant 0 : index
    %179 = vector.load %arg2[%c72, %c0_50] : memref<504x128xf32, #tpu.memory_space<vmem>>, vector<32x32xf32>
    %180 = arith.truncf %179 : vector<32x32xf32> to vector<32x32xbf16>
    %cst_51 = arith.constant dense<0.000000e+00> : vector<24x32xf32>
    %181 = tpu.matmul %178, %180, %cst_51 {dimension_numbers = #tpu.dot_dimension_numbers<[1], [0], [0], [1], [0, 0, 1, 1], [], []>} : vector<24x32xbf16>, vector<32x32xbf16>, vector<24x32xf32> -> vector<24x32xf32>
    %c104 = arith.constant 104 : index
    %c0_52 = arith.constant 0 : index
    %182 = vector.load %arg2[%c104, %c0_52] : memref<504x128xf32, #tpu.memory_space<vmem>>, vector<1x32xf32>
    %183 = vector.broadcast %182 : vector<1x32xf32> to vector<24x32xf32>
    %184 = arith.addf %181, %183 : vector<24x32xf32>
    %185 = arith.addf %45, %184 : vector<24x32xf32>
    %c112 = arith.constant 112 : index
    %c0_53 = arith.constant 0 : index
    %186 = vector.load %arg2[%c112, %c0_53] : memref<504x128xf32, #tpu.memory_space<vmem>>, vector<1x32xf32>
    %c120 = arith.constant 120 : index
    %c0_54 = arith.constant 0 : index
    %187 = vector.load %arg2[%c120, %c0_54] : memref<504x128xf32, #tpu.memory_space<vmem>>, vector<1x32xf32>
    %cst_55 = arith.constant dense<0.000000e+00> : vector<24xf32>
    %188 = vector.multi_reduction <add>, %185, %cst_55 [1] : vector<24x32xf32> to vector<24xf32>
    %189 = vector.shape_cast %188 : vector<24xf32> to vector<24x1xf32>
    %cst_56 = arith.constant 3.200000e+01 : f32
    %190 = vector.broadcast %cst_56 : f32 to vector<24x1xf32>
    %191 = arith.divf %189, %190 : vector<24x1xf32>
    %192 = vector.broadcast %191 : vector<24x1xf32> to vector<24x32xf32>
    %193 = arith.subf %185, %192 : vector<24x32xf32>
    %194 = arith.mulf %193, %193 : vector<24x32xf32>
    %cst_57 = arith.constant dense<0.000000e+00> : vector<24xf32>
    %195 = vector.multi_reduction <add>, %194, %cst_57 [1] : vector<24x32xf32> to vector<24xf32>
    %196 = vector.shape_cast %195 : vector<24xf32> to vector<24x1xf32>
    %cst_58 = arith.constant 3.200000e+01 : f32
    %197 = vector.broadcast %cst_58 : f32 to vector<24x1xf32>
    %198 = arith.divf %196, %197 : vector<24x1xf32>
    %199 = vector.broadcast %191 : vector<24x1xf32> to vector<24x32xf32>
    %200 = arith.subf %185, %199 : vector<24x32xf32>
    %cst_59 = arith.constant 9.99999974E-6 : f32
    %201 = vector.broadcast %cst_59 : f32 to vector<24x1xf32>
    %202 = arith.addf %198, %201 : vector<24x1xf32>
    %203 = math.rsqrt %202 : vector<24x1xf32>
    %204 = vector.broadcast %203 : vector<24x1xf32> to vector<24x32xf32>
    %205 = arith.mulf %200, %204 : vector<24x32xf32>
    %206 = vector.broadcast %186 : vector<1x32xf32> to vector<24x32xf32>
    %207 = arith.mulf %205, %206 : vector<24x32xf32>
    %208 = vector.broadcast %187 : vector<1x32xf32> to vector<24x32xf32>
    %209 = arith.addf %207, %208 : vector<24x32xf32>
    %210 = arith.truncf %209 : vector<24x32xf32> to vector<24x32xbf16>
    %c128 = arith.constant 128 : index
    %c0_60 = arith.constant 0 : index
    %211 = vector.load %arg2[%c128, %c0_60] : memref<504x128xf32, #tpu.memory_space<vmem>>, vector<32x64xf32>
    %212 = arith.truncf %211 : vector<32x64xf32> to vector<32x64xbf16>
    %cst_61 = arith.constant dense<0.000000e+00> : vector<24x64xf32>
    %213 = tpu.matmul %210, %212, %cst_61 {dimension_numbers = #tpu.dot_dimension_numbers<[1], [0], [0], [1], [0, 0, 1, 1], [], []>} : vector<24x32xbf16>, vector<32x64xbf16>, vector<24x64xf32> -> vector<24x64xf32>
    %c160 = arith.constant 160 : index
    %c0_62 = arith.constant 0 : index
    %214 = vector.load %arg2[%c160, %c0_62] : memref<504x128xf32, #tpu.memory_space<vmem>>, vector<1x64xf32>
    %215 = vector.broadcast %214 : vector<1x64xf32> to vector<24x64xf32>
    %216 = arith.addf %213, %215 : vector<24x64xf32>
    %cst_63 = arith.constant 0.000000e+00 : f32
    %217 = vector.broadcast %cst_63 : f32 to vector<24x64xf32>
    %218 = arith.maximumf %216, %217 : vector<24x64xf32>
    %219 = arith.truncf %218 : vector<24x64xf32> to vector<24x64xbf16>
    %c168 = arith.constant 168 : index
    %c0_64 = arith.constant 0 : index
    %220 = vector.load %arg2[%c168, %c0_64] : memref<504x128xf32, #tpu.memory_space<vmem>>, vector<64x32xf32>
    %221 = arith.truncf %220 : vector<64x32xf32> to vector<64x32xbf16>
    %cst_65 = arith.constant dense<0.000000e+00> : vector<24x32xf32>
    %222 = tpu.matmul %219, %221, %cst_65 {dimension_numbers = #tpu.dot_dimension_numbers<[1], [0], [0], [1], [0, 0, 1, 1], [], []>} : vector<24x64xbf16>, vector<64x32xbf16>, vector<24x32xf32> -> vector<24x32xf32>
    %c232 = arith.constant 232 : index
    %c0_66 = arith.constant 0 : index
    %223 = vector.load %arg2[%c232, %c0_66] : memref<504x128xf32, #tpu.memory_space<vmem>>, vector<1x32xf32>
    %224 = vector.broadcast %223 : vector<1x32xf32> to vector<24x32xf32>
    %225 = arith.addf %222, %224 : vector<24x32xf32>
    %226 = arith.addf %209, %225 : vector<24x32xf32>
    %c240 = arith.constant 240 : index
    %c0_67 = arith.constant 0 : index
    %227 = vector.load %arg2[%c240, %c0_67] : memref<504x128xf32, #tpu.memory_space<vmem>>, vector<1x32xf32>
    %c248 = arith.constant 248 : index
    %c0_68 = arith.constant 0 : index
    %228 = vector.load %arg2[%c248, %c0_68] : memref<504x128xf32, #tpu.memory_space<vmem>>, vector<1x32xf32>
    %cst_69 = arith.constant dense<0.000000e+00> : vector<24xf32>
    %229 = vector.multi_reduction <add>, %226, %cst_69 [1] : vector<24x32xf32> to vector<24xf32>
    %230 = vector.shape_cast %229 : vector<24xf32> to vector<24x1xf32>
    %cst_70 = arith.constant 3.200000e+01 : f32
    %231 = vector.broadcast %cst_70 : f32 to vector<24x1xf32>
    %232 = arith.divf %230, %231 : vector<24x1xf32>
    %233 = vector.broadcast %232 : vector<24x1xf32> to vector<24x32xf32>
    %234 = arith.subf %226, %233 : vector<24x32xf32>
    %235 = arith.mulf %234, %234 : vector<24x32xf32>
    %cst_71 = arith.constant dense<0.000000e+00> : vector<24xf32>
    %236 = vector.multi_reduction <add>, %235, %cst_71 [1] : vector<24x32xf32> to vector<24xf32>
    %237 = vector.shape_cast %236 : vector<24xf32> to vector<24x1xf32>
    %cst_72 = arith.constant 3.200000e+01 : f32
    %238 = vector.broadcast %cst_72 : f32 to vector<24x1xf32>
    %239 = arith.divf %237, %238 : vector<24x1xf32>
    %240 = vector.broadcast %232 : vector<24x1xf32> to vector<24x32xf32>
    %241 = arith.subf %226, %240 : vector<24x32xf32>
    %cst_73 = arith.constant 9.99999974E-6 : f32
    %242 = vector.broadcast %cst_73 : f32 to vector<24x1xf32>
    %243 = arith.addf %239, %242 : vector<24x1xf32>
    %244 = math.rsqrt %243 : vector<24x1xf32>
    %245 = vector.broadcast %244 : vector<24x1xf32> to vector<24x32xf32>
    %246 = arith.mulf %241, %245 : vector<24x32xf32>
    %247 = vector.broadcast %227 : vector<1x32xf32> to vector<24x32xf32>
    %248 = arith.mulf %246, %247 : vector<24x32xf32>
    %249 = vector.broadcast %228 : vector<1x32xf32> to vector<24x32xf32>
    %250 = arith.addf %248, %249 : vector<24x32xf32>
    %251 = arith.truncf %250 : vector<24x32xf32> to vector<24x32xbf16>
    %c256 = arith.constant 256 : index
    %c0_74 = arith.constant 0 : index
    %252 = vector.load %arg2[%c256, %c0_74] : memref<504x128xf32, #tpu.memory_space<vmem>>, vector<32x96xf32>
    %253 = arith.truncf %252 : vector<32x96xf32> to vector<32x96xbf16>
    %cst_75 = arith.constant dense<0.000000e+00> : vector<24x96xf32>
    %254 = tpu.matmul %251, %253, %cst_75 {dimension_numbers = #tpu.dot_dimension_numbers<[1], [0], [0], [1], [0, 0, 1, 1], [], []>} : vector<24x32xbf16>, vector<32x96xbf16>, vector<24x96xf32> -> vector<24x96xf32>
    %c288 = arith.constant 288 : index
    %c0_76 = arith.constant 0 : index
    %255 = vector.load %arg2[%c288, %c0_76] : memref<504x128xf32, #tpu.memory_space<vmem>>, vector<1x96xf32>
    %256 = vector.broadcast %255 : vector<1x96xf32> to vector<24x96xf32>
    %257 = arith.addf %254, %256 : vector<24x96xf32>
    %258 = vector.extract_strided_slice %257 {offsets = [0, 0], sizes = [24, 8], strides = [1, 1]} : vector<24x96xf32> to vector<24x8xf32>
    %259 = vector.shape_cast %258 : vector<24x8xf32> to vector<3x8x8xf32>
    %260 = vector.extract_strided_slice %257 {offsets = [0, 32], sizes = [24, 8], strides = [1, 1]} : vector<24x96xf32> to vector<24x8xf32>
    %261 = vector.shape_cast %260 : vector<24x8xf32> to vector<3x8x8xf32>
    %262 = vector.extract_strided_slice %257 {offsets = [0, 64], sizes = [24, 8], strides = [1, 1]} : vector<24x96xf32> to vector<24x8xf32>
    %263 = vector.shape_cast %262 : vector<24x8xf32> to vector<3x8x8xf32>
    "tpu.trace_start"() <{level = 10 : i32, message = "nik,njk->nij"}> : () -> ()
    %cst_77 = arith.constant dense<0.000000e+00> : vector<3x8x8xf32>
    %264 = tpu.matmul %259, %261, %cst_77 {dimension_numbers = #tpu.dot_dimension_numbers<[2], [2], [1], [1], [0, 0, 0, 1, 1, 1], [0], [0]>} : vector<3x8x8xf32>, vector<3x8x8xf32>, vector<3x8x8xf32> -> vector<3x8x8xf32>
    "tpu.trace_stop"() : () -> ()
    %265 = arith.addf %264, %61 : vector<3x8x8xf32>
    %cst_78 = arith.constant dense<0xFF800000> : vector<3x8xf32>
    %266 = vector.multi_reduction <maximumf>, %265, %cst_78 [2] : vector<3x8x8xf32> to vector<3x8xf32>
    %267 = vector.shape_cast %266 : vector<3x8xf32> to vector<3x8x1xf32>
    %268 = vector.broadcast %267 : vector<3x8x1xf32> to vector<3x8x8xf32>
    %269 = arith.subf %265, %268 : vector<3x8x8xf32>
    %270 = math.exp %269 : vector<3x8x8xf32>
    %cst_79 = arith.constant dense<0.000000e+00> : vector<3x8xf32>
    %271 = vector.multi_reduction <add>, %270, %cst_79 [2] : vector<3x8x8xf32> to vector<3x8xf32>
    %272 = vector.shape_cast %271 : vector<3x8xf32> to vector<3x8x1xf32>
    %273 = tpu.reciprocal %272 {approx = true} : vector<3x8x1xf32> -> vector<3x8x1xf32>
    %274 = vector.broadcast %273 : vector<3x8x1xf32> to vector<3x8x8xf32>
    %275 = arith.mulf %270, %274 : vector<3x8x8xf32>
    "tpu.trace_start"() <{level = 10 : i32, message = "nij,njk->nik"}> : () -> ()
    %cst_80 = arith.constant dense<0.000000e+00> : vector<3x8x8xf32>
    %276 = tpu.matmul %275, %263, %cst_80 {dimension_numbers = #tpu.dot_dimension_numbers<[2], [1], [1], [2], [0, 0, 0, 1, 1, 2], [0], [0]>} : vector<3x8x8xf32>, vector<3x8x8xf32>, vector<3x8x8xf32> -> vector<3x8x8xf32>
    "tpu.trace_stop"() : () -> ()
    %277 = vector.shape_cast %276 : vector<3x8x8xf32> to vector<24x8xf32>
    %278 = vector.extract_strided_slice %257 {offsets = [0, 8], sizes = [24, 8], strides = [1, 1]} : vector<24x96xf32> to vector<24x8xf32>
    %279 = vector.shape_cast %278 : vector<24x8xf32> to vector<3x8x8xf32>
    %280 = vector.extract_strided_slice %257 {offsets = [0, 40], sizes = [24, 8], strides = [1, 1]} : vector<24x96xf32> to vector<24x8xf32>
    %281 = vector.shape_cast %280 : vector<24x8xf32> to vector<3x8x8xf32>
    %282 = vector.extract_strided_slice %257 {offsets = [0, 72], sizes = [24, 8], strides = [1, 1]} : vector<24x96xf32> to vector<24x8xf32>
    %283 = vector.shape_cast %282 : vector<24x8xf32> to vector<3x8x8xf32>
    "tpu.trace_start"() <{level = 10 : i32, message = "nik,njk->nij"}> : () -> ()
    %cst_81 = arith.constant dense<0.000000e+00> : vector<3x8x8xf32>
    %284 = tpu.matmul %279, %281, %cst_81 {dimension_numbers = #tpu.dot_dimension_numbers<[2], [2], [1], [1], [0, 0, 0, 1, 1, 1], [0], [0]>} : vector<3x8x8xf32>, vector<3x8x8xf32>, vector<3x8x8xf32> -> vector<3x8x8xf32>
    "tpu.trace_stop"() : () -> ()
    %285 = arith.addf %284, %61 : vector<3x8x8xf32>
    %cst_82 = arith.constant dense<0xFF800000> : vector<3x8xf32>
    %286 = vector.multi_reduction <maximumf>, %285, %cst_82 [2] : vector<3x8x8xf32> to vector<3x8xf32>
    %287 = vector.shape_cast %286 : vector<3x8xf32> to vector<3x8x1xf32>
    %288 = vector.broadcast %287 : vector<3x8x1xf32> to vector<3x8x8xf32>
    %289 = arith.subf %285, %288 : vector<3x8x8xf32>
    %290 = math.exp %289 : vector<3x8x8xf32>
    %cst_83 = arith.constant dense<0.000000e+00> : vector<3x8xf32>
    %291 = vector.multi_reduction <add>, %290, %cst_83 [2] : vector<3x8x8xf32> to vector<3x8xf32>
    %292 = vector.shape_cast %291 : vector<3x8xf32> to vector<3x8x1xf32>
    %293 = tpu.reciprocal %292 {approx = true} : vector<3x8x1xf32> -> vector<3x8x1xf32>
    %294 = vector.broadcast %293 : vector<3x8x1xf32> to vector<3x8x8xf32>
    %295 = arith.mulf %290, %294 : vector<3x8x8xf32>
    "tpu.trace_start"() <{level = 10 : i32, message = "nij,njk->nik"}> : () -> ()
    %cst_84 = arith.constant dense<0.000000e+00> : vector<3x8x8xf32>
    %296 = tpu.matmul %295, %283, %cst_84 {dimension_numbers = #tpu.dot_dimension_numbers<[2], [1], [1], [2], [0, 0, 0, 1, 1, 2], [0], [0]>} : vector<3x8x8xf32>, vector<3x8x8xf32>, vector<3x8x8xf32> -> vector<3x8x8xf32>
    "tpu.trace_stop"() : () -> ()
    %297 = vector.shape_cast %296 : vector<3x8x8xf32> to vector<24x8xf32>
    %298 = vector.extract_strided_slice %257 {offsets = [0, 16], sizes = [24, 8], strides = [1, 1]} : vector<24x96xf32> to vector<24x8xf32>
    %299 = vector.shape_cast %298 : vector<24x8xf32> to vector<3x8x8xf32>
    %300 = vector.extract_strided_slice %257 {offsets = [0, 48], sizes = [24, 8], strides = [1, 1]} : vector<24x96xf32> to vector<24x8xf32>
    %301 = vector.shape_cast %300 : vector<24x8xf32> to vector<3x8x8xf32>
    %302 = vector.extract_strided_slice %257 {offsets = [0, 80], sizes = [24, 8], strides = [1, 1]} : vector<24x96xf32> to vector<24x8xf32>
    %303 = vector.shape_cast %302 : vector<24x8xf32> to vector<3x8x8xf32>
    "tpu.trace_start"() <{level = 10 : i32, message = "nik,njk->nij"}> : () -> ()
    %cst_85 = arith.constant dense<0.000000e+00> : vector<3x8x8xf32>
    %304 = tpu.matmul %299, %301, %cst_85 {dimension_numbers = #tpu.dot_dimension_numbers<[2], [2], [1], [1], [0, 0, 0, 1, 1, 1], [0], [0]>} : vector<3x8x8xf32>, vector<3x8x8xf32>, vector<3x8x8xf32> -> vector<3x8x8xf32>
    "tpu.trace_stop"() : () -> ()
    %305 = arith.addf %304, %61 : vector<3x8x8xf32>
    %cst_86 = arith.constant dense<0xFF800000> : vector<3x8xf32>
    %306 = vector.multi_reduction <maximumf>, %305, %cst_86 [2] : vector<3x8x8xf32> to vector<3x8xf32>
    %307 = vector.shape_cast %306 : vector<3x8xf32> to vector<3x8x1xf32>
    %308 = vector.broadcast %307 : vector<3x8x1xf32> to vector<3x8x8xf32>
    %309 = arith.subf %305, %308 : vector<3x8x8xf32>
    %310 = math.exp %309 : vector<3x8x8xf32>
    %cst_87 = arith.constant dense<0.000000e+00> : vector<3x8xf32>
    %311 = vector.multi_reduction <add>, %310, %cst_87 [2] : vector<3x8x8xf32> to vector<3x8xf32>
    %312 = vector.shape_cast %311 : vector<3x8xf32> to vector<3x8x1xf32>
    %313 = tpu.reciprocal %312 {approx = true} : vector<3x8x1xf32> -> vector<3x8x1xf32>
    %314 = vector.broadcast %313 : vector<3x8x1xf32> to vector<3x8x8xf32>
    %315 = arith.mulf %310, %314 : vector<3x8x8xf32>
    "tpu.trace_start"() <{level = 10 : i32, message = "nij,njk->nik"}> : () -> ()
    %cst_88 = arith.constant dense<0.000000e+00> : vector<3x8x8xf32>
    %316 = tpu.matmul %315, %303, %cst_88 {dimension_numbers = #tpu.dot_dimension_numbers<[2], [1], [1], [2], [0, 0, 0, 1, 1, 2], [0], [0]>} : vector<3x8x8xf32>, vector<3x8x8xf32>, vector<3x8x8xf32> -> vector<3x8x8xf32>
    "tpu.trace_stop"() : () -> ()
    %317 = vector.shape_cast %316 : vector<3x8x8xf32> to vector<24x8xf32>
    %318 = vector.extract_strided_slice %257 {offsets = [0, 24], sizes = [24, 8], strides = [1, 1]} : vector<24x96xf32> to vector<24x8xf32>
    %319 = vector.shape_cast %318 : vector<24x8xf32> to vector<3x8x8xf32>
    %320 = vector.extract_strided_slice %257 {offsets = [0, 56], sizes = [24, 8], strides = [1, 1]} : vector<24x96xf32> to vector<24x8xf32>
    %321 = vector.shape_cast %320 : vector<24x8xf32> to vector<3x8x8xf32>
    %322 = vector.extract_strided_slice %257 {offsets = [0, 88], sizes = [24, 8], strides = [1, 1]} : vector<24x96xf32> to vector<24x8xf32>
    %323 = vector.shape_cast %322 : vector<24x8xf32> to vector<3x8x8xf32>
    "tpu.trace_start"() <{level = 10 : i32, message = "nik,njk->nij"}> : () -> ()
    %cst_89 = arith.constant dense<0.000000e+00> : vector<3x8x8xf32>
    %324 = tpu.matmul %319, %321, %cst_89 {dimension_numbers = #tpu.dot_dimension_numbers<[2], [2], [1], [1], [0, 0, 0, 1, 1, 1], [0], [0]>} : vector<3x8x8xf32>, vector<3x8x8xf32>, vector<3x8x8xf32> -> vector<3x8x8xf32>
    "tpu.trace_stop"() : () -> ()
    %325 = arith.addf %324, %61 : vector<3x8x8xf32>
    %cst_90 = arith.constant dense<0xFF800000> : vector<3x8xf32>
    %326 = vector.multi_reduction <maximumf>, %325, %cst_90 [2] : vector<3x8x8xf32> to vector<3x8xf32>
    %327 = vector.shape_cast %326 : vector<3x8xf32> to vector<3x8x1xf32>
    %328 = vector.broadcast %327 : vector<3x8x1xf32> to vector<3x8x8xf32>
    %329 = arith.subf %325, %328 : vector<3x8x8xf32>
    %330 = math.exp %329 : vector<3x8x8xf32>
    %cst_91 = arith.constant dense<0.000000e+00> : vector<3x8xf32>
    %331 = vector.multi_reduction <add>, %330, %cst_91 [2] : vector<3x8x8xf32> to vector<3x8xf32>
    %332 = vector.shape_cast %331 : vector<3x8xf32> to vector<3x8x1xf32>
    %333 = tpu.reciprocal %332 {approx = true} : vector<3x8x1xf32> -> vector<3x8x1xf32>
    %334 = vector.broadcast %333 : vector<3x8x1xf32> to vector<3x8x8xf32>
    %335 = arith.mulf %330, %334 : vector<3x8x8xf32>
    "tpu.trace_start"() <{level = 10 : i32, message = "nij,njk->nik"}> : () -> ()
    %cst_92 = arith.constant dense<0.000000e+00> : vector<3x8x8xf32>
    %336 = tpu.matmul %335, %323, %cst_92 {dimension_numbers = #tpu.dot_dimension_numbers<[2], [1], [1], [2], [0, 0, 0, 1, 1, 2], [0], [0]>} : vector<3x8x8xf32>, vector<3x8x8xf32>, vector<3x8x8xf32> -> vector<3x8x8xf32>
    "tpu.trace_stop"() : () -> ()
    %337 = vector.shape_cast %336 : vector<3x8x8xf32> to vector<24x8xf32>
    %338 = tpu.concatenate %277, %297, %317, %337 in 1 : vector<24x8xf32>, vector<24x8xf32>, vector<24x8xf32>, vector<24x8xf32> -> vector<24x32xf32>
    %339 = arith.truncf %338 : vector<24x32xf32> to vector<24x32xbf16>
    %c296 = arith.constant 296 : index
    %c0_93 = arith.constant 0 : index
    %340 = vector.load %arg2[%c296, %c0_93] : memref<504x128xf32, #tpu.memory_space<vmem>>, vector<32x32xf32>
    %341 = arith.truncf %340 : vector<32x32xf32> to vector<32x32xbf16>
    %cst_94 = arith.constant dense<0.000000e+00> : vector<24x32xf32>
    %342 = tpu.matmul %339, %341, %cst_94 {dimension_numbers = #tpu.dot_dimension_numbers<[1], [0], [0], [1], [0, 0, 1, 1], [], []>} : vector<24x32xbf16>, vector<32x32xbf16>, vector<24x32xf32> -> vector<24x32xf32>
    %c328 = arith.constant 328 : index
    %c0_95 = arith.constant 0 : index
    %343 = vector.load %arg2[%c328, %c0_95] : memref<504x128xf32, #tpu.memory_space<vmem>>, vector<1x32xf32>
    %344 = vector.broadcast %343 : vector<1x32xf32> to vector<24x32xf32>
    %345 = arith.addf %342, %344 : vector<24x32xf32>
    %346 = arith.addf %250, %345 : vector<24x32xf32>
    %c336 = arith.constant 336 : index
    %c0_96 = arith.constant 0 : index
    %347 = vector.load %arg2[%c336, %c0_96] : memref<504x128xf32, #tpu.memory_space<vmem>>, vector<1x32xf32>
    %c344 = arith.constant 344 : index
    %c0_97 = arith.constant 0 : index
    %348 = vector.load %arg2[%c344, %c0_97] : memref<504x128xf32, #tpu.memory_space<vmem>>, vector<1x32xf32>
    %cst_98 = arith.constant dense<0.000000e+00> : vector<24xf32>
    %349 = vector.multi_reduction <add>, %346, %cst_98 [1] : vector<24x32xf32> to vector<24xf32>
    %350 = vector.shape_cast %349 : vector<24xf32> to vector<24x1xf32>
    %cst_99 = arith.constant 3.200000e+01 : f32
    %351 = vector.broadcast %cst_99 : f32 to vector<24x1xf32>
    %352 = arith.divf %350, %351 : vector<24x1xf32>
    %353 = vector.broadcast %352 : vector<24x1xf32> to vector<24x32xf32>
    %354 = arith.subf %346, %353 : vector<24x32xf32>
    %355 = arith.mulf %354, %354 : vector<24x32xf32>
    %cst_100 = arith.constant dense<0.000000e+00> : vector<24xf32>
    %356 = vector.multi_reduction <add>, %355, %cst_100 [1] : vector<24x32xf32> to vector<24xf32>
    %357 = vector.shape_cast %356 : vector<24xf32> to vector<24x1xf32>
    %cst_101 = arith.constant 3.200000e+01 : f32
    %358 = vector.broadcast %cst_101 : f32 to vector<24x1xf32>
    %359 = arith.divf %357, %358 : vector<24x1xf32>
    %360 = vector.broadcast %352 : vector<24x1xf32> to vector<24x32xf32>
    %361 = arith.subf %346, %360 : vector<24x32xf32>
    %cst_102 = arith.constant 9.99999974E-6 : f32
    %362 = vector.broadcast %cst_102 : f32 to vector<24x1xf32>
    %363 = arith.addf %359, %362 : vector<24x1xf32>
    %364 = math.rsqrt %363 : vector<24x1xf32>
    %365 = vector.broadcast %364 : vector<24x1xf32> to vector<24x32xf32>
    %366 = arith.mulf %361, %365 : vector<24x32xf32>
    %367 = vector.broadcast %347 : vector<1x32xf32> to vector<24x32xf32>
    %368 = arith.mulf %366, %367 : vector<24x32xf32>
    %369 = vector.broadcast %348 : vector<1x32xf32> to vector<24x32xf32>
    %370 = arith.addf %368, %369 : vector<24x32xf32>
    %371 = arith.truncf %370 : vector<24x32xf32> to vector<24x32xbf16>
    %c352 = arith.constant 352 : index
    %c0_103 = arith.constant 0 : index
    %372 = vector.load %arg2[%c352, %c0_103] : memref<504x128xf32, #tpu.memory_space<vmem>>, vector<32x64xf32>
    %373 = arith.truncf %372 : vector<32x64xf32> to vector<32x64xbf16>
    %cst_104 = arith.constant dense<0.000000e+00> : vector<24x64xf32>
    %374 = tpu.matmul %371, %373, %cst_104 {dimension_numbers = #tpu.dot_dimension_numbers<[1], [0], [0], [1], [0, 0, 1, 1], [], []>} : vector<24x32xbf16>, vector<32x64xbf16>, vector<24x64xf32> -> vector<24x64xf32>
    %c384 = arith.constant 384 : index
    %c0_105 = arith.constant 0 : index
    %375 = vector.load %arg2[%c384, %c0_105] : memref<504x128xf32, #tpu.memory_space<vmem>>, vector<1x64xf32>
    %376 = vector.broadcast %375 : vector<1x64xf32> to vector<24x64xf32>
    %377 = arith.addf %374, %376 : vector<24x64xf32>
    %cst_106 = arith.constant 0.000000e+00 : f32
    %378 = vector.broadcast %cst_106 : f32 to vector<24x64xf32>
    %379 = arith.maximumf %377, %378 : vector<24x64xf32>
    %380 = arith.truncf %379 : vector<24x64xf32> to vector<24x64xbf16>
    %c392 = arith.constant 392 : index
    %c0_107 = arith.constant 0 : index
    %381 = vector.load %arg2[%c392, %c0_107] : memref<504x128xf32, #tpu.memory_space<vmem>>, vector<64x32xf32>
    %382 = arith.truncf %381 : vector<64x32xf32> to vector<64x32xbf16>
    %cst_108 = arith.constant dense<0.000000e+00> : vector<24x32xf32>
    %383 = tpu.matmul %380, %382, %cst_108 {dimension_numbers = #tpu.dot_dimension_numbers<[1], [0], [0], [1], [0, 0, 1, 1], [], []>} : vector<24x64xbf16>, vector<64x32xbf16>, vector<24x32xf32> -> vector<24x32xf32>
    %c456 = arith.constant 456 : index
    %c0_109 = arith.constant 0 : index
    %384 = vector.load %arg2[%c456, %c0_109] : memref<504x128xf32, #tpu.memory_space<vmem>>, vector<1x32xf32>
    %385 = vector.broadcast %384 : vector<1x32xf32> to vector<24x32xf32>
    %386 = arith.addf %383, %385 : vector<24x32xf32>
    %387 = arith.addf %370, %386 : vector<24x32xf32>
    %c464 = arith.constant 464 : index
    %c0_110 = arith.constant 0 : index
    %388 = vector.load %arg2[%c464, %c0_110] : memref<504x128xf32, #tpu.memory_space<vmem>>, vector<1x32xf32>
    %c472 = arith.constant 472 : index
    %c0_111 = arith.constant 0 : index
    %389 = vector.load %arg2[%c472, %c0_111] : memref<504x128xf32, #tpu.memory_space<vmem>>, vector<1x32xf32>
    %cst_112 = arith.constant dense<0.000000e+00> : vector<24xf32>
    %390 = vector.multi_reduction <add>, %387, %cst_112 [1] : vector<24x32xf32> to vector<24xf32>
    %391 = vector.shape_cast %390 : vector<24xf32> to vector<24x1xf32>
    %cst_113 = arith.constant 3.200000e+01 : f32
    %392 = vector.broadcast %cst_113 : f32 to vector<24x1xf32>
    %393 = arith.divf %391, %392 : vector<24x1xf32>
    %394 = vector.broadcast %393 : vector<24x1xf32> to vector<24x32xf32>
    %395 = arith.subf %387, %394 : vector<24x32xf32>
    %396 = arith.mulf %395, %395 : vector<24x32xf32>
    %cst_114 = arith.constant dense<0.000000e+00> : vector<24xf32>
    %397 = vector.multi_reduction <add>, %396, %cst_114 [1] : vector<24x32xf32> to vector<24xf32>
    %398 = vector.shape_cast %397 : vector<24xf32> to vector<24x1xf32>
    %cst_115 = arith.constant 3.200000e+01 : f32
    %399 = vector.broadcast %cst_115 : f32 to vector<24x1xf32>
    %400 = arith.divf %398, %399 : vector<24x1xf32>
    %401 = vector.broadcast %393 : vector<24x1xf32> to vector<24x32xf32>
    %402 = arith.subf %387, %401 : vector<24x32xf32>
    %cst_116 = arith.constant 9.99999974E-6 : f32
    %403 = vector.broadcast %cst_116 : f32 to vector<24x1xf32>
    %404 = arith.addf %400, %403 : vector<24x1xf32>
    %405 = math.rsqrt %404 : vector<24x1xf32>
    %406 = vector.broadcast %405 : vector<24x1xf32> to vector<24x32xf32>
    %407 = arith.mulf %402, %406 : vector<24x32xf32>
    %408 = vector.broadcast %388 : vector<1x32xf32> to vector<24x32xf32>
    %409 = arith.mulf %407, %408 : vector<24x32xf32>
    %410 = vector.broadcast %389 : vector<1x32xf32> to vector<24x32xf32>
    %411 = arith.addf %409, %410 : vector<24x32xf32>
    %cst_117 = arith.constant dense<0.000000e+00> : vector<3x32xf32>
    %412 = tpu.matmul %89, %411, %cst_117 {dimension_numbers = #tpu.dot_dimension_numbers<[1], [0], [0], [1], [0, 0, 1, 1], [], []>} : vector<3x24xf32>, vector<24x32xf32>, vector<3x32xf32> -> vector<3x32xf32>
    %413 = vector.extract_strided_slice %412 {offsets = [0, 0], sizes = [1, 32], strides = [1, 1]} : vector<3x32xf32> to vector<1x32xf32>
    %414 = vector.extract_strided_slice %412 {offsets = [1, 0], sizes = [1, 32], strides = [1, 1]} : vector<3x32xf32> to vector<1x32xf32>
    %415 = vector.extract_strided_slice %412 {offsets = [2, 0], sizes = [1, 32], strides = [1, 1]} : vector<3x32xf32> to vector<1x32xf32>
    %416 = arith.subf %413, %414 : vector<1x32xf32>
    %417 = math.absf %416 : vector<1x32xf32>
    %cst_118 = arith.constant 0.000000e+00 : f32
    %418 = vector.broadcast %cst_118 : f32 to vector<1x32xf32>
    %419 = arith.maximumf %417, %418 : vector<1x32xf32>
    %420 = arith.subf %413, %415 : vector<1x32xf32>
    %421 = math.absf %420 : vector<1x32xf32>
    %cst_119 = arith.constant 0.000000e+00 : f32
    %422 = vector.broadcast %cst_119 : f32 to vector<1x32xf32>
    %423 = arith.maximumf %421, %422 : vector<1x32xf32>
    %c480 = arith.constant 480 : index
    %c0_120 = arith.constant 0 : index
    %424 = vector.load %arg2[%c480, %c0_120] : memref<504x128xf32, #tpu.memory_space<vmem>>, vector<1x32xf32>
    %425 = arith.mulf %419, %424 : vector<1x32xf32>
    %cst_121 = arith.constant dense<0.000000e+00> : vector<1xf32>
    %426 = vector.multi_reduction <add>, %425, %cst_121 [1] : vector<1x32xf32> to vector<1xf32>
    %427 = vector.shape_cast %426 : vector<1xf32> to vector<1x1xf32>
    %c488 = arith.constant 488 : index
    %c0_122 = arith.constant 0 : index
    %428 = vector.load %arg2[%c488, %c0_122] : memref<504x128xf32, #tpu.memory_space<vmem>>, vector<1x32xf32>
    %429 = arith.mulf %423, %428 : vector<1x32xf32>
    %cst_123 = arith.constant dense<0.000000e+00> : vector<1xf32>
    %430 = vector.multi_reduction <add>, %429, %cst_123 [1] : vector<1x32xf32> to vector<1xf32>
    %431 = vector.shape_cast %430 : vector<1xf32> to vector<1x1xf32>
    %432 = arith.addf %427, %431 : vector<1x1xf32>
    %c496 = arith.constant 496 : index
    %c0_124 = arith.constant 0 : index
    %433 = vector.load %arg2[%c496, %c0_124] : memref<504x128xf32, #tpu.memory_space<vmem>>, vector<1x1xf32>
    %434 = arith.addf %432, %433 : vector<1x1xf32>
    %435 = arith.negf %434 : vector<1x1xf32>
    %436 = math.exp %435 : vector<1x1xf32>
    %cst_125 = arith.constant 1.000000e+00 : f32
    %437 = vector.broadcast %cst_125 : f32 to vector<1x1xf32>
    %438 = arith.addf %437, %436 : vector<1x1xf32>
    %439 = arith.divf %437, %438 : vector<1x1xf32>
    %440 = vector.shape_cast %439 : vector<1x1xf32> to vector<1x1x1xf32>
    %c0_126 = arith.constant 0 : index
    %c0_127 = arith.constant 0 : index
    %c0_128 = arith.constant 0 : index
    %441 = vector.load %arg3[%c0_126, %c0_127, %c0_128] : memref<1x1x1xf32, #tpu.memory_space<vmem>>, vector<1x1x1xf32>
    tpu.vector_store %arg3[%c0_126, %c0_127, %c0_128], %440 {strides = array<i32>} : memref<1x1x1xf32, #tpu.memory_space<vmem>>, vector<1x1x1xf32>,
    return
  }
  func.func @transform_0(%arg0: i32) -> (i32, i32, i32) {
    %c0_i32 = arith.constant 0 : i32
    %c0_i32_0 = arith.constant 0 : i32
    %c0_i32_1 = arith.constant 0 : i32
    return %arg0, %c0_i32, %c0_i32_0 : i32, i32, i32
  }
  func.func @transform_1(%arg0: i32) -> (i32, i32) {
    %c0_i32 = arith.constant 0 : i32
    %c0_i32_0 = arith.constant 0 : i32
    %c0_i32_1 = arith.constant 0 : i32
    return %c0_i32, %c0_i32_0 : i32, i32
  }
  func.func @transform_2(%arg0: i32) -> (i32, i32, i32) {
    %c0_i32 = arith.constant 0 : i32
    %c0_i32_0 = arith.constant 0 : i32
    %c0_i32_1 = arith.constant 0 : i32
    return %arg0, %c0_i32, %c0_i32_0 : i32, i32, i32
  }
}

</mosaic_0001>

<llo_original>
// kernel: dctfeita_forward.1
$region0: #{dctfeita_forward.1}
  #allocation0 [shape = 'u32[]', space=smem, size = 0x4, offset = 0x4, fixed_abs, tag = 'smem constant byte address 0x4 - core index']
  #allocation1 [shape = 'u32[144,128]{1,0:T(1,128)}', space=vmem, size = 0x12000, scoped, tag = 'internal scratch']
  %s0 = inlined_call_operand.vmem [shape: f32[2,24,8], index: 0, kind: input, shape index: {}]
  %s1 = inlined_call_operand.vmem [shape: f32[504,128], index: 1, kind: input, shape index: {}]
  %s2 = inlined_call_operand.vmem [shape: f32[2,1,1], index: 2, kind: output, shape index: {}]
  %s3 = sld [smem:[#allocation0]]
  $region41: #{dctfeita_forward.1} parent=0
    _
  %s5 = ssub.s32 1, %s3
  %s6 = scalar_select 0, %s5, %s3
  loop: start=0, step=1, limit=4
  $region2: #{dctfeita_forward.1} parent=0 // loop_pre_header
    _
  $region3: #{dctfeita_forward.1} parent=0 // loop_header
    %s8 = sphi 0, %s12
    %p9 = scmp.ge.s32.totalorder %s8, 4
    %s18 = sphi 0, %s20
    %s21 = sphi 0, %s18
    %s22 = sphi 0, %s21
    %s38 = sphi 0, %s22
    %s42 = sphi 0, %s42
    %s44 = sphi 0, %s42
    %s45 = sphi 0, %s44
    %s59 = sphi 0, %s45
    %s65 = sphi 0, %s67
    %s68 = sphi 0, %s65
    %s69 = sphi 0, %s68
    %s85 = sphi 0, %s69
  $region4: #{dctfeita_forward.1} parent=0 // loop_header_branch
    %11 = sbr.rel (%p9) target = $region8
  $region5: #{dctfeita_forward.1} parent=0 // loop_body
    %s13 = ssub.s32 %s8, 1
    %s14 = ssub.s32 %s8, 2
    %s15 = sadd.s32 %s8, 1
    %s16 = ssub.s32 %s8, %s15
    %p17 = scmp.eq.s32.totalorder %s16, 0
    %s19 = sadd.s32 %s18, 1
    %s20 = scalar_select %p17, %s18, %s19
    %p23 = pneg %p17
    %p24 = scmp.eq.s32.totalorder %s8, 1
    %p25 = por %p23, %p24
    %p26 = scmp.ne.s32.totalorder %s18, %s21
    %p27 = scmp.eq.s32.totalorder %s8, 0
    %p28 = por %p26, %p27
    %p29 = scmp.ne.s32.totalorder %s18, %s21
    %p30 = scmp.eq.s32.totalorder %s13, 1
    %p31 = por %p29, %p30
    %p32 = scmp.ne.s32.totalorder %s21, %s22
    %p33 = scmp.eq.s32.totalorder %s13, 0
    %p34 = por %p32, %p33
    %p35 = scmp.ne.s32.totalorder %s21, %s22
    %p36 = scmp.eq.s32.totalorder %s14, 1
    %p37 = por %p35, %p36
    %p39 = scmp.ne.s32.totalorder %s22, %s38
    %p40 = scmp.eq.s32.totalorder %s14, 0
    %p41 = por %p39, %p40
    %s43 = sadd.s32 %s42, 1
    %p46 = scmp.eq.s32.totalorder %s8, 1
    %p47 = scmp.ne.s32.totalorder %s42, %s44
    %p48 = scmp.eq.s32.totalorder %s8, 0
    %p49 = por %p47, %p48
    %p50 = scmp.ne.s32.totalorder %s42, %s44
    %p51 = scmp.eq.s32.totalorder %s13, 1
    %p52 = por %p50, %p51
    %p53 = scmp.ne.s32.totalorder %s44, %s45
    %p54 = scmp.eq.s32.totalorder %s13, 0
    %p55 = por %p53, %p54
    %p56 = scmp.ne.s32.totalorder %s44, %s45
    %p57 = scmp.eq.s32.totalorder %s14, 1
    %p58 = por %p56, %p57
    %p60 = scmp.ne.s32.totalorder %s45, %s59
    %p61 = scmp.eq.s32.totalorder %s14, 0
    %p62 = por %p60, %p61
    %s63 = ssub.s32 %s8, %s15
    %p64 = scmp.eq.s32.totalorder %s63, 0
    %s66 = sadd.s32 %s65, 1
    %s67 = scalar_select %p64, %s65, %s66
    %p70 = pneg %p64
    %p71 = scmp.eq.s32.totalorder %s8, 1
    %p72 = por %p70, %p71
    %p73 = scmp.ne.s32.totalorder %s65, %s68
    %p74 = scmp.eq.s32.totalorder %s8, 0
    %p75 = por %p73, %p74
    %p76 = scmp.ne.s32.totalorder %s65, %s68
    %p77 = scmp.eq.s32.totalorder %s13, 1
    %p78 = por %p76, %p77
    %p79 = scmp.ne.s32.totalorder %s68, %s69
    %p80 = scmp.eq.s32.totalorder %s13, 0
    %p81 = por %p79, %p80
    %p82 = scmp.ne.s32.totalorder %s68, %s69
    %p83 = scmp.eq.s32.totalorder %s14, 1
    %p84 = por %p82, %p83
    %p86 = scmp.ne.s32.totalorder %s69, %s85
    %p87 = scmp.eq.s32.totalorder %s14, 0
    %p88 = por %p86, %p87
    %p89 = scmp.le.s32.totalorder 1, %s8
    %p90 = scmp.lt.s32.totalorder %s8, 3
    %p91 = pnand %p89, %p90
    %p92 = pneg %p91
    // Predicated region
    $region9: #{dctfeita_forward.1} parent=5 // pred_check
      _
    $region10: #{dctfeita_forward.1} parent=5 // pred_check_branch
      %94 = sbr.rel (%p91) target = $region12
    $region11: #{dctfeita_forward.1} parent=5 // pred_region
      %s95 = ssub.s32 %s8, 1
      // Predicated region
      $region13: #{dctfeita_forward.1} parent=11 // pred_check
        %p96 = pneg %p55
      $region14: #{dctfeita_forward.1} parent=11 // pred_check_branch
        %98 = sbr.rel (%p96) target = $region16
      $region15: #{dctfeita_forward.1} parent=11 // pred_region
        _
      $region16: #{dctfeita_forward.1} parent=11 // pred_fallthru
        _
    $region12: #{dctfeita_forward.1} parent=5 // pred_fallthru
      _
    %p99 = scmp.lt.s32.totalorder %s8, 2
    // Predicated region
    $region17: #{dctfeita_forward.1} parent=5 // pred_check
      %p100 = pneg %p99
    $region18: #{dctfeita_forward.1} parent=5 // pred_check_branch
      %102 = sbr.rel (%p100) target = $region20
    $region19: #{dctfeita_forward.1} parent=5 // pred_region
      // Predicated region
      $region21: #{dctfeita_forward.1} parent=19 // pred_check
        %p103 = pneg %p28
      $region22: #{dctfeita_forward.1} parent=19 // pred_check_branch
        %105 = sbr.rel (%p103) target = $region24
      $region23: #{dctfeita_forward.1} parent=19 // pred_region
        %p106 = scmp.lt.s32.totalorder %s8, 1
        %s107 = scalar_select %p106, %s8, 1
        %s108 = smul.addr %s107, 3
        %s109 = smul.addr %s108, 8
        %s110 = scalar_lea.vmem %s0, %s109
      $region24: #{dctfeita_forward.1} parent=19 // pred_fallthru
        _
    $region20: #{dctfeita_forward.1} parent=5 // pred_fallthru
      _
    %p111 = scmp.le.s32.totalorder 1, %s8
    %p112 = scmp.lt.s32.totalorder %s8, 3
    %p113 = pnand %p111, %p112
    %p114 = pneg %p113
    // Predicated region
    $region25: #{dctfeita_forward.1} parent=5 // pred_check
      _
    $region26: #{dctfeita_forward.1} parent=5 // pred_check_branch
      %116 = sbr.rel (%p113) target = $region28
    $region27: #{dctfeita_forward.1} parent=5 // pred_region
      %s117 = ssub.s32 %s8, 1
      %p118 = scmp.lt.s32.totalorder %s13, 1
      %s119 = scalar_select %p118, %s13, 1
      %s120 = smul.addr %s119, 3
      %s121 = smul.addr %s120, 8
      %s122 = scalar_lea.vmem %s0, %s121
      %p123 = pneg %p34
      %p124 = pneg %p31
      %p125 = pneg %p55
      %p126 = pneg %p52
      %p127 = pneg %p81
      %p128 = pneg %p78
      %p129 = scmp.lt.s32.totalorder %s13, 1
      %s130 = scalar_select %p129, %s13, 1
      %s131 = scalar_lea.vmem %s2, %s130
      %p132 = scmp.lt.s32.totalorder %s13, 1
      %s133 = scalar_select %p132, %s13, 1
      %s134 = smul.addr %s133, 3
      %s135 = smul.addr %s134, 8
      %s136 = scalar_lea.vmem %s0, %s135
      %p137 = scmp.lt.s32.totalorder %s13, 1
      %s138 = scalar_select %p137, %s13, 1
      %s139 = scalar_lea.vmem %s2, %s138
      %v141 = vld [vmem:[%s136] sm:$0xff]
      %v142 = vld [vmem:[%s136 + $0x8] sm:$0xff]
      %v143 = vld [vmem:[%s136 + $0x10] sm:$0xff]
      %v144 = vpack.c.bf16 %v142, %v141
      %v145 = vpack.c.bf16 %v143, %v143
      %v146 = vld [vmem:[%s1] sm:$0xff]
      %v147 = vpack.c.bf16 %v146, %v146
      %v148 = vld [vmem:[%s1 + $0x8] sm:$0x1]
      %v149 = vlaneseq
      %v150 = vshrl.u32 %v149, 7
      %v151 = vsub.s32 0, %v150
      %v152 = vrot.slane %v148, %v151
      %vm153 = vcmask 64512
      %v155 = vsel %vm153, %v144, 0
      %v158 = vsel %vm153, %v145, 0
      %vm160 = vcmask 1043456
      %v162 = vsel %vm160, %v147, 0
      %164 = vmatprep.subr.bf16.mxu0 0
      %165 = vmatpush1.bf16.msra.mxu0 %v162
      %166 = vmatprep.subr.bf16.mxu0 0
      %167 = vmatpush1.bf16.msra.mxu0 0
      %168 = vmatprep.subr.bf16.mxu0 0
      %169 = vmatpush1.bf16.msra.mxu0 0
      %170 = vmatprep.subr.bf16.mxu0 0
      %171 = vmatpush1.bf16.msra.mxu0 0
      %172 = vmatprep.subr.bf16.mxu0 0
      %173 = vmatpush1.bf16.msra.mxu0 0
      %174 = vmatprep.subr.bf16.mxu0 0
      %175 = vmatpush1.bf16.msra.mxu0 0
      %176 = vmatprep.subr.bf16.mxu0 0
      %177 = vmatpush1.bf16.msra.mxu0 0
      %178 = vmatprep.subr.bf16.mxu0 0
      %179 = vmatpush1.bf16.msra.mxu0 0
      %180 = vmatprep.subr.bf16.mxu0 0
      %181 = vmatpush1.bf16.msra.mxu0 0
      %182 = vmatprep.subr.bf16.mxu0 0
      %183 = vmatpush1.bf16.msra.mxu0 0
      %184 = vmatprep.subr.bf16.mxu0 0
      %185 = vmatpush1.bf16.msra.mxu0 0
      %186 = vmatprep.subr.bf16.mxu0 0
      %187 = vmatpush1.bf16.msra.mxu0 0
      %188 = vmatprep.subr.bf16.mxu0 0
      %189 = vmatpush1.bf16.msra.mxu0 0
      %190 = vmatprep.subr.bf16.mxu0 0
      %191 = vmatpush1.bf16.msra.mxu0 0
      %192 = vmatprep.subr.bf16.mxu0 0
      %193 = vmatpush1.bf16.msra.mxu0 0
      %194 = vmatprep.subr.bf16.mxu0 0
      %195 = vmatpush1.bf16.msra.mxu0 0
      %196 = vmatprep.mubr.bf16.mxu0 0
      %197 = vmatmul.mubr.bf16.gmra.mrb[0].mxu0 %v155
      %v198 = vpop.f32.mrb[0].mxu0
      %v199 = vadd.f32 %v152, %v198
      %v200 = vpop.f32.mrb[0].mxu0
      %v201 = vpop.f32.mrb[0].mxu0
      %v202 = vadd.f32 %v152, %v201
      %v203 = vpop.f32.mrb[0].mxu0
      %204 = vmatprep.mubr.bf16.mxu0 0
      %205 = vmatmul.mubr.bf16.gmra.mrb[0].mxu0 %v158
      %v206 = vpop.f32.mrb[0].mxu0
      %v207 = vadd.f32 %v152, %v206
      %v208 = vpop.f32.mrb[0].mxu0
      %v209 = vpop.f32.mrb[0].mxu0
      %v210 = vpop.f32.mrb[0].mxu0
      %211 = vdwg.mxu0
      %v212 = vld [vmem:[%s1 + $0x10] sm:$0x1]
      %v213 = vld [vmem:[%s1 + $0x18] sm:$0x1]
      %vm214 = vcmask 261120
      %v215 = vsel %vm214, %v199, 0.0
      %216 = vadd.xlane.f32.xlu0 %v215
      %v217 = vpop.xlane.xlu0 %216
      %v218 = vsel %vm214, %v202, 0.0
      %219 = vadd.xlane.f32.xlu0 %v218
      %v220 = vpop.xlane.xlu0 %219
      %v221 = vsel %vm214, %v207, 0.0
      %222 = vadd.xlane.f32.xlu0 %v221
      %v223 = vpop.xlane.xlu0 %222
      %v224 = vrcp.pop 32.0
      %v225 = vmul.f32 %v217, %v224
      %v226 = vmul.f32 %v220, %v224
      %v227 = vmul.f32 %v223, %v224
      %v228 = vsub.f32 %v199, %v225
      %v229 = vsub.f32 %v202, %v226
      %v230 = vsub.f32 %v207, %v227
      %v231 = vmul.f32 %v228, %v228
      %v232 = vmul.f32 %v229, %v229
      %v233 = vmul.f32 %v230, %v230
      %v234 = vsel %vm214, %v231, 0.0
      %235 = vadd.xlane.f32.xlu0 %v234
      %v236 = vpop.xlane.xlu0 %235
      %v237 = vsel %vm214, %v232, 0.0
      %238 = vadd.xlane.f32.xlu0 %v237
      %v239 = vpop.xlane.xlu0 %238
      %v240 = vsel %vm214, %v233, 0.0
      %241 = vadd.xlane.f32.xlu0 %v240
      %v242 = vpop.xlane.xlu0 %241
      %v243 = vmul.f32 %v236, %v224
      %v244 = vmul.f32 %v239, %v224
      %v245 = vmul.f32 %v242, %v224
      %v246 = vadd.f32 %v243, 1e-05
      %v247 = vadd.f32 %v244, 1e-05
      %v248 = vadd.f32 %v245, 1e-05
      %v249 = vrsqrt.pop %v246
      %v250 = vrsqrt.pop %v247
      %v251 = vrsqrt.pop %v248
      %v252 = vmul.f32 %v228, %v249
      %v253 = vmul.f32 %v229, %v250
      %v254 = vmul.f32 %v230, %v251
      %v255 = vlaneseq
      %v256 = vshrl.u32 %v255, 7
      %v257 = vsub.s32 0, %v256
      %v258 = vrot.slane %v212, %v257
      %v259 = vmul.f32 %v252, %v258
      %v260 = vmul.f32 %v253, %v258
      %v261 = vmul.f32 %v254, %v258
      %v262 = vlaneseq
      %v263 = vshrl.u32 %v262, 7
      %v264 = vsub.s32 0, %v263
      %v265 = vrot.slane %v213, %v264
      %v266 = vadd.f32 %v259, %v265
      %v267 = vadd.f32 %v260, %v265
      %v268 = vadd.f32 %v261, %v265
      %v269 = vmul.f32 %v266, 0.5
      %v270 = vmul.f32 %v267, 0.5
      %v271 = vmul.f32 %v268, 0.5
      %v272 = vmul.f32 %v266, 0.044715
      %v273 = vmul.f32 %v267, 0.044715
      %v274 = vmul.f32 %v268, 0.044715
      %v275 = vmul.f32 %v272, %v266
      %v276 = vmul.f32 %v273, %v267
      %v277 = vmul.f32 %v274, %v268
      %v278 = vmul.f32 %v275, %v266
      %v279 = vmul.f32 %v276, %v267
      %v280 = vmul.f32 %v277, %v268
      %v281 = vadd.f32 %v266, %v278
      %v282 = vadd.f32 %v267, %v279
      %v283 = vadd.f32 %v268, %v280
      %v284 = vmul.f32 %v281, 0.7978846
      %v285 = vmul.f32 %v282, 0.7978846
      %v286 = vmul.f32 %v283, 0.7978846
      %v287 = vtanh.pop %v284
      %v288 = vtanh.pop %v285
      %v289 = vtanh.pop %v286
      %v290 = vadd.f32 %v287, 1.0
      %v291 = vadd.f32 %v288, 1.0
      %v292 = vadd.f32 %v289, 1.0
      %v293 = vmul.f32 %v269, %v290
      %v294 = vmul.f32 %v270, %v291
      %v295 = vmul.f32 %v271, %v292
      %v296 = vlaneseq
      %v297 = vshrl.u32 %v296, 7
      %v298 = vadd.s32 %v297, 8
      %v299 = vadd.s32 %v297, 16
      %v300 = vlaneseq
      %v301 = vand.u32 %v300, 127
      %vm302 = vcmp.lt.s32.totalorder %v297, 16
      %vm303 = vcmp.lt.s32.totalorder %v298, 16
      %vm304 = vcmp.lt.s32.totalorder %v299, 16
      %v305 = vsel %vm302, 8, 2
      %v306 = vsel %vm303, 8, 2
      %v307 = vsel %vm304, 8, 2
      %vm308 = vcmp.lt.s32.totalorder %v297, 8
      %vm309 = vcmp.lt.s32.totalorder %v298, 8
      %vm310 = vcmp.lt.s32.totalorder %v299, 8
      %v311 = vsel %vm308, 8, %v305
      %v312 = vsel %vm309, 8, %v306
      %v313 = vsel %vm310, 8, %v307
      %vm314 = vcmp.lt.s32.totalorder %v301, %v311
      %vm315 = vcmp.lt.s32.totalorder %v301, %v312
      %vm316 = vcmp.lt.s32.totalorder %v301, %v313
      %v317 = vsel %vm314, 0.0, -1e+30
      %v318 = vsel %vm315, 0.0, -1e+30
      %v319 = vsel %vm316, 0.0, -1e+30
      %vm320 = vcmp.lt.s32.totalorder %v297, 2
      %v321 = vsel %vm320, 8, 2
      %v322 = vsel %vm320, 0.125, 0.5
      %vm323 = vcmp.lt.s32.totalorder %v297, 1
      %v324 = vsel %vm323, 8, %v321
      %v325 = vsel %vm323, 0.125, %v322
      %v326 = vmul.u32 %v297, 8
      %vm327 = vcmp.ge.s32.totalorder %v301, %v326
      %v328 = vadd.s32 %v326, %v324
      %vm329 = vcmp.lt.s32.totalorder %v301, %v328
      %vm330 = vmand %vm327, %vm329
      %v331 = vsel %vm330, %v325, 0.0
      %v332 = vpack.c.bf16 %v294, %v293
      %v333 = vpack.c.bf16 %v295, %v295
      %v334 = vld [vmem:[%s1 + $0x20] sm:$0xff]
      %v335 = vld [vmem:[%s1 + $0x28] sm:$0xff]
      %v336 = vld [vmem:[%s1 + $0x30] sm:$0xff]
      %v337 = vld [vmem:[%s1 + $0x38] sm:$0xff]
      %v338 = vpack.c.bf16 %v335, %v334
      %v339 = vpack.c.bf16 %v337, %v336
      %v340 = vld [vmem:[%s1 + $0x40] sm:$0x1]
      %v341 = vlaneseq
      %v342 = vshrl.u32 %v341, 7
      %v343 = vsub.s32 0, %v342
      %v344 = vrot.slane %v340, %v343
      %v346 = vsel %vm214, %v332, 0
      %v349 = vsel %vm214, %v333, 0
      %351 = vmatprep.subr.bf16.mxu0 0
      %352 = vmatpush1.bf16.msra.mxu0 %v338
      %353 = vmatprep.subr.bf16.mxu0 0
      %354 = vmatpush1.bf16.msra.mxu0 %v339
      %355 = vmatprep.subr.bf16.mxu0 0
      %356 = vmatpush1.bf16.msra.mxu0 0
      %357 = vmatprep.subr.bf16.mxu0 0
      %358 = vmatpush1.bf16.msra.mxu0 0
      %359 = vmatprep.subr.bf16.mxu0 0
      %360 = vmatpush1.bf16.msra.mxu0 0
      %361 = vmatprep.subr.bf16.mxu0 0
      %362 = vmatpush1.bf16.msra.mxu0 0
      %363 = vmatprep.subr.bf16.mxu0 0
      %364 = vmatpush1.bf16.msra.mxu0 0
      %365 = vmatprep.subr.bf16.mxu0 0
      %366 = vmatpush1.bf16.msra.mxu0 0
      %367 = vmatprep.subr.bf16.mxu0 0
      %368 = vmatpush1.bf16.msra.mxu0 0
      %369 = vmatprep.subr.bf16.mxu0 0
      %370 = vmatpush1.bf16.msra.mxu0 0
      %371 = vmatprep.subr.bf16.mxu0 0
      %372 = vmatpush1.bf16.msra.mxu0 0
      %373 = vmatprep.subr.bf16.mxu0 0
      %374 = vmatpush1.bf16.msra.mxu0 0
      %375 = vmatprep.subr.bf16.mxu0 0
      %376 = vmatpush1.bf16.msra.mxu0 0
      %377 = vmatprep.subr.bf16.mxu0 0
      %378 = vmatpush1.bf16.msra.mxu0 0
      %379 = vmatprep.subr.bf16.mxu0 0
      %380 = vmatpush1.bf16.msra.mxu0 0
      %381 = vmatprep.subr.bf16.mxu0 0
      %382 = vmatpush1.bf16.msra.mxu0 0
      %383 = vmatprep.mubr.bf16.mxu0 0
      %384 = vmatmul.mubr.bf16.gmra.mrb[0].mxu0 %v346
      %v385 = vpop.f32.mrb[0].mxu0
      %v386 = vadd.f32 %v344, %v385
      %v387 = vpop.f32.mrb[0].mxu0
      %v388 = vpop.f32.mrb[0].mxu0
      %v389 = vadd.f32 %v344, %v388
      %v390 = vpop.f32.mrb[0].mxu0
      %391 = vmatprep.mubr.bf16.mxu0 0
      %392 = vmatmul.mubr.bf16.gmra.mrb[0].mxu0 %v349
      %v393 = vpop.f32.mrb[0].mxu0
      %v394 = vadd.f32 %v344, %v393
      %v395 = vpop.f32.mrb[0].mxu0
      %v396 = vpop.f32.mrb[0].mxu0
      %v397 = vpop.f32.mrb[0].mxu0
      %398 = vdwg.mxu0
      %400 = vrot.lane.b32.xlu0 %v386, 96
      %v401 = vpop.permute.xlu0 %400
      %v402 = vsel %vm153, %v386, 0
      %v404 = vsel %vm153, %v401, 0
      %406 = vmatprep.subr.mxu0 0.0
      %407 = vmatpush1.xpose.msra.mxu0 %v404
      %408 = vmatprep.subr.mxu0 0.0
      %409 = vmatpush1.xpose.msra.mxu0 0.0
      %410 = vmatprep.subr.mxu0 0.0
      %411 = vmatpush1.xpose.msra.mxu0 0.0
      %412 = vmatprep.subr.mxu0 0.0
      %413 = vmatpush1.xpose.msra.mxu0 0.0
      %414 = vmatprep.subr.mxu0 0.0
      %415 = vmatpush1.xpose.msra.mxu0 0.0
      %416 = vmatprep.subr.mxu0 0.0
      %417 = vmatpush1.xpose.msra.mxu0 0.0
      %418 = vmatprep.subr.mxu0 0.0
      %419 = vmatpush1.xpose.msra.mxu0 0.0
      %420 = vmatprep.subr.mxu0 0.0
      %421 = vmatpush1.xpose.msra.mxu0 0.0
      %422 = vmatprep.subr.mxu0 0.0
      %423 = vmatpush1.xpose.msra.mxu0 0.0
      %424 = vmatprep.subr.mxu0 0.0
      %425 = vmatpush1.xpose.msra.mxu0 0.0
      %426 = vmatprep.subr.mxu0 0.0
      %427 = vmatpush1.xpose.msra.mxu0 0.0
      %428 = vmatprep.subr.mxu0 0.0
      %429 = vmatpush1.xpose.msra.mxu0 0.0
      %430 = vmatprep.subr.mxu0 0.0
      %431 = vmatpush1.xpose.msra.mxu0 0.0
      %432 = vmatprep.subr.mxu0 0.0
      %433 = vmatpush1.xpose.msra.mxu0 0.0
      %434 = vmatprep.subr.mxu0 0.0
      %435 = vmatpush1.xpose.msra.mxu0 0.0
      %436 = vmatprep.subr.mxu0 0.0
      %437 = vmatpush1.xpose.msra.mxu0 0.0
      %438 = vmatprep.subr.mxu0 0.0
      %439 = vmatpush1.xpose.msra.mxu0 0.0
      %440 = vmatprep.subr.mxu0 0.0
      %441 = vmatpush1.xpose.msra.mxu0 0.0
      %442 = vmatprep.subr.mxu0 0.0
      %443 = vmatpush1.xpose.msra.mxu0 0.0
      %444 = vmatprep.subr.mxu0 0.0
      %445 = vmatpush1.xpose.msra.mxu0 0.0
      %446 = vmatprep.subr.mxu0 0.0
      %447 = vmatpush1.xpose.msra.mxu0 0.0
      %448 = vmatprep.subr.mxu0 0.0
      %449 = vmatpush1.xpose.msra.mxu0 0.0
      %450 = vmatprep.subr.mxu0 0.0
      %451 = vmatpush1.xpose.msra.mxu0 0.0
      %452 = vmatprep.subr.mxu0 0.0
      %453 = vmatpush1.xpose.msra.mxu0 0.0
      %454 = vmatprep.subr.mxu0 0.0
      %455 = vmatpush1.xpose.msra.mxu0 0.0
      %456 = vmatprep.subr.mxu0 0.0
      %457 = vmatpush1.xpose.msra.mxu0 0.0
      %458 = vmatprep.subr.mxu0 0.0
      %459 = vmatpush1.xpose.msra.mxu0 0.0
      %460 = vmatprep.subr.mxu0 0.0
      %461 = vmatpush1.xpose.msra.mxu0 0.0
      %462 = vmatprep.subr.mxu0 0.0
      %463 = vmatpush1.xpose.msra.mxu0 0.0
      %464 = vmatprep.subr.mxu0 0.0
      %465 = vmatpush1.xpose.msra.mxu0 0.0
      %466 = vmatprep.subr.mxu0 0.0
      %467 = vmatpush1.xpose.msra.mxu0 0.0
      %468 = vmatprep.subr.mxu0 0.0
      %469 = vmatpush1.xpose.msra.mxu0 0.0
      %470 = vmatprep.mubr.f32.mxu0 0.0
      %471 = vmatmul.mubr.f32.gmra.mrb[0].mxu0 %v402
      %v472 = vpop.f32.mrb[0].mxu0
      %v473 = vadd.f32 %v317, %v472
      %v474 = vpop.f32.mrb[0].mxu0
      %475 = vdwg.mxu0
      %477 = vrot.lane.b32.xlu0 %v389, 96
      %v478 = vpop.permute.xlu0 %477
      %v479 = vsel %vm153, %v389, 0
      %v481 = vsel %vm153, %v478, 0
      %483 = vmatprep.subr.mxu0 0.0
      %484 = vmatpush1.xpose.msra.mxu0 %v481
      %485 = vmatprep.subr.mxu0 0.0
      %486 = vmatpush1.xpose.msra.mxu0 0.0
      %487 = vmatprep.subr.mxu0 0.0
      %488 = vmatpush1.xpose.msra.mxu0 0.0
      %489 = vmatprep.subr.mxu0 0.0
      %490 = vmatpush1.xpose.msra.mxu0 0.0
      %491 = vmatprep.subr.mxu0 0.0
      %492 = vmatpush1.xpose.msra.mxu0 0.0
      %493 = vmatprep.subr.mxu0 0.0
      %494 = vmatpush1.xpose.msra.mxu0 0.0
      %495 = vmatprep.subr.mxu0 0.0
      %496 = vmatpush1.xpose.msra.mxu0 0.0
      %497 = vmatprep.subr.mxu0 0.0
      %498 = vmatpush1.xpose.msra.mxu0 0.0
      %499 = vmatprep.subr.mxu0 0.0
      %500 = vmatpush1.xpose.msra.mxu0 0.0
      %501 = vmatprep.subr.mxu0 0.0
      %502 = vmatpush1.xpose.msra.mxu0 0.0
      %503 = vmatprep.subr.mxu0 0.0
      %504 = vmatpush1.xpose.msra.mxu0 0.0
      %505 = vmatprep.subr.mxu0 0.0
      %506 = vmatpush1.xpose.msra.mxu0 0.0
      %507 = vmatprep.subr.mxu0 0.0
      %508 = vmatpush1.xpose.msra.mxu0 0.0
      %509 = vmatprep.subr.mxu0 0.0
      %510 = vmatpush1.xpose.msra.mxu0 0.0
      %511 = vmatprep.subr.mxu0 0.0
      %512 = vmatpush1.xpose.msra.mxu0 0.0
      %513 = vmatprep.subr.mxu0 0.0
      %514 = vmatpush1.xpose.msra.mxu0 0.0
      %515 = vmatprep.subr.mxu0 0.0
      %516 = vmatpush1.xpose.msra.mxu0 0.0
      %517 = vmatprep.subr.mxu0 0.0
      %518 = vmatpush1.xpose.msra.mxu0 0.0
      %519 = vmatprep.subr.mxu0 0.0
      %520 = vmatpush1.xpose.msra.mxu0 0.0
      %521 = vmatprep.subr.mxu0 0.0
      %522 = vmatpush1.xpose.msra.mxu0 0.0
      %523 = vmatprep.subr.mxu0 0.0
      %524 = vmatpush1.xpose.msra.mxu0 0.0
      %525 = vmatprep.subr.mxu0 0.0
      %526 = vmatpush1.xpose.msra.mxu0 0.0
      %527 = vmatprep.subr.mxu0 0.0
      %528 = vmatpush1.xpose.msra.mxu0 0.0
      %529 = vmatprep.subr.mxu0 0.0
      %530 = vmatpush1.xpose.msra.mxu0 0.0
      %531 = vmatprep.subr.mxu0 0.0
      %532 = vmatpush1.xpose.msra.mxu0 0.0
      %533 = vmatprep.subr.mxu0 0.0
      %534 = vmatpush1.xpose.msra.mxu0 0.0
      %535 = vmatprep.subr.mxu0 0.0
      %536 = vmatpush1.xpose.msra.mxu0 0.0
      %537 = vmatprep.subr.mxu0 0.0
      %538 = vmatpush1.xpose.msra.mxu0 0.0
      %539 = vmatprep.subr.mxu0 0.0
      %540 = vmatpush1.xpose.msra.mxu0 0.0
      %541 = vmatprep.subr.mxu0 0.0
      %542 = vmatpush1.xpose.msra.mxu0 0.0
      %543 = vmatprep.subr.mxu0 0.0
      %544 = vmatpush1.xpose.msra.mxu0 0.0
      %545 = vmatprep.subr.mxu0 0.0
      %546 = vmatpush1.xpose.msra.mxu0 0.0
      %547 = vmatprep.mubr.f32.mxu0 0.0
      %548 = vmatmul.mubr.f32.gmra.mrb[0].mxu0 %v479
      %v549 = vpop.f32.mrb[0].mxu0
      %v550 = vadd.f32 %v318, %v549
      %v551 = vpop.f32.mrb[0].mxu0
      %552 = vdwg.mxu0
      %554 = vrot.lane.b32.xlu0 %v394, 96
      %v555 = vpop.permute.xlu0 %554
      %v556 = vsel %vm153, %v394, 0
      %v558 = vsel %vm153, %v555, 0
      %560 = vmatprep.subr.mxu0 0.0
      %561 = vmatpush1.xpose.msra.mxu0 %v558
      %562 = vmatprep.subr.mxu0 0.0
      %563 = vmatpush1.xpose.msra.mxu0 0.0
      %564 = vmatprep.subr.mxu0 0.0
      %565 = vmatpush1.xpose.msra.mxu0 0.0
      %566 = vmatprep.subr.mxu0 0.0
      %567 = vmatpush1.xpose.msra.mxu0 0.0
      %568 = vmatprep.subr.mxu0 0.0
      %569 = vmatpush1.xpose.msra.mxu0 0.0
      %570 = vmatprep.subr.mxu0 0.0
      %571 = vmatpush1.xpose.msra.mxu0 0.0
      %572 = vmatprep.subr.mxu0 0.0
      %573 = vmatpush1.xpose.msra.mxu0 0.0
      %574 = vmatprep.subr.mxu0 0.0
      %575 = vmatpush1.xpose.msra.mxu0 0.0
      %576 = vmatprep.subr.mxu0 0.0
      %577 = vmatpush1.xpose.msra.mxu0 0.0
      %578 = vmatprep.subr.mxu0 0.0
      %579 = vmatpush1.xpose.msra.mxu0 0.0
      %580 = vmatprep.subr.mxu0 0.0
      %581 = vmatpush1.xpose.msra.mxu0 0.0
      %582 = vmatprep.subr.mxu0 0.0
      %583 = vmatpush1.xpose.msra.mxu0 0.0
      %584 = vmatprep.subr.mxu0 0.0
      %585 = vmatpush1.xpose.msra.mxu0 0.0
      %586 = vmatprep.subr.mxu0 0.0
      %587 = vmatpush1.xpose.msra.mxu0 0.0
      %588 = vmatprep.subr.mxu0 0.0
      %589 = vmatpush1.xpose.msra.mxu0 0.0
      %590 = vmatprep.subr.mxu0 0.0
      %591 = vmatpush1.xpose.msra.mxu0 0.0
      %592 = vmatprep.subr.mxu0 0.0
      %593 = vmatpush1.xpose.msra.mxu0 0.0
      %594 = vmatprep.subr.mxu0 0.0
      %595 = vmatpush1.xpose.msra.mxu0 0.0
      %596 = vmatprep.subr.mxu0 0.0
      %597 = vmatpush1.xpose.msra.mxu0 0.0
      %598 = vmatprep.subr.mxu0 0.0
      %599 = vmatpush1.xpose.msra.mxu0 0.0
      %600 = vmatprep.subr.mxu0 0.0
      %601 = vmatpush1.xpose.msra.mxu0 0.0
      %602 = vmatprep.subr.mxu0 0.0
      %603 = vmatpush1.xpose.msra.mxu0 0.0
      %604 = vmatprep.subr.mxu0 0.0
      %605 = vmatpush1.xpose.msra.mxu0 0.0
      %606 = vmatprep.subr.mxu0 0.0
      %607 = vmatpush1.xpose.msra.mxu0 0.0
      %608 = vmatprep.subr.mxu0 0.0
      %609 = vmatpush1.xpose.msra.mxu0 0.0
      %610 = vmatprep.subr.mxu0 0.0
      %611 = vmatpush1.xpose.msra.mxu0 0.0
      %612 = vmatprep.subr.mxu0 0.0
      %613 = vmatpush1.xpose.msra.mxu0 0.0
      %614 = vmatprep.subr.mxu0 0.0
      %615 = vmatpush1.xpose.msra.mxu0 0.0
      %616 = vmatprep.subr.mxu0 0.0
      %617 = vmatpush1.xpose.msra.mxu0 0.0
      %618 = vmatprep.subr.mxu0 0.0
      %619 = vmatpush1.xpose.msra.mxu0 0.0
      %620 = vmatprep.subr.mxu0 0.0
      %621 = vmatpush1.xpose.msra.mxu0 0.0
      %622 = vmatprep.subr.mxu0 0.0
      %623 = vmatpush1.xpose.msra.mxu0 0.0
      %624 = vmatprep.mubr.f32.mxu0 0.0
      %625 = vmatmul.mubr.f32.gmra.mrb[0].mxu0 %v556
      %v626 = vpop.f32.mrb[0].mxu0
      %v627 = vadd.f32 %v319, %v626
      %v628 = vpop.f32.mrb[0].mxu0
      %629 = vdwg.mxu0
      %v630 = vsel %vm153, %v473, -inf
      %631 = vmax.xlane.f32.xlu0 %v630
      %v632 = vpop.xlane.xlu0 %631
      %v633 = vsel %vm153, %v550, -inf
      %634 = vmax.xlane.f32.xlu0 %v633
      %v635 = vpop.xlane.xlu0 %634
      %v636 = vsel %vm153, %v627, -inf
      %637 = vmax.xlane.f32.xlu0 %v636
      %v638 = vpop.xlane.xlu0 %637
      %v639 = vsub.f32 %v473, %v632
      %v640 = vsub.f32 %v550, %v635
      %v641 = vsub.f32 %v627, %v638
      %v642 = vmul.f32 %v639, 1.442695
      %v643 = vpow.pop %v642
      %v644 = vmul.f32 %v640, 1.442695
      %v645 = vpow.pop %v644
      %v646 = vmul.f32 %v641, 1.442695
      %v647 = vpow.pop %v646
      %v648 = vsel %vm153, %v643, 0.0
      %649 = vadd.xlane.f32.xlu0 %v648
      %v650 = vpop.xlane.xlu0 %649
      %v651 = vsel %vm153, %v645, 0.0
      %652 = vadd.xlane.f32.xlu0 %v651
      %v653 = vpop.xlane.xlu0 %652
      %v654 = vsel %vm153, %v647, 0.0
      %655 = vadd.xlane.f32.xlu0 %v654
      %v656 = vpop.xlane.xlu0 %655
      %v657 = vrcp.pop %v650
      %v658 = vrcp.pop %v653
      %v659 = vrcp.pop %v656
      %v660 = vmul.f32 %v643, %v657
      %v661 = vmul.f32 %v645, %v658
      %v662 = vmul.f32 %v647, %v659
      %663 = vrot.lane.b32.xlu0 %v386, 64
      %v664 = vpop.permute.xlu0 %663
      %v667 = vsel %vm153, %v660, 0
      %669 = vmatprep.subr.mxu0 0.0
      %670 = vmatpush1.msra.mxu0 %v664
      %671 = vmatprep.subr.mxu0 0.0
      %672 = vmatpush1.msra.mxu0 0.0
      %673 = vmatprep.subr.mxu0 0.0
      %674 = vmatpush1.msra.mxu0 0.0
      %675 = vmatprep.subr.mxu0 0.0
      %676 = vmatpush1.msra.mxu0 0.0
      %677 = vmatprep.subr.mxu0 0.0
      %678 = vmatpush1.msra.mxu0 0.0
      %679 = vmatprep.subr.mxu0 0.0
      %680 = vmatpush1.msra.mxu0 0.0
      %681 = vmatprep.subr.mxu0 0.0
      %682 = vmatpush1.msra.mxu0 0.0
      %683 = vmatprep.subr.mxu0 0.0
      %684 = vmatpush1.msra.mxu0 0.0
      %685 = vmatprep.subr.mxu0 0.0
      %686 = vmatpush1.msra.mxu0 0.0
      %687 = vmatprep.subr.mxu0 0.0
      %688 = vmatpush1.msra.mxu0 0.0
      %689 = vmatprep.subr.mxu0 0.0
      %690 = vmatpush1.msra.mxu0 0.0
      %691 = vmatprep.subr.mxu0 0.0
      %692 = vmatpush1.msra.mxu0 0.0
      %693 = vmatprep.subr.mxu0 0.0
      %694 = vmatpush1.msra.mxu0 0.0
      %695 = vmatprep.subr.mxu0 0.0
      %696 = vmatpush1.msra.mxu0 0.0
      %697 = vmatprep.subr.mxu0 0.0
      %698 = vmatpush1.msra.mxu0 0.0
      %699 = vmatprep.subr.mxu0 0.0
      %700 = vmatpush1.msra.mxu0 0.0
      %701 = vmatprep.subr.mxu0 0.0
      %702 = vmatpush1.msra.mxu0 0.0
      %703 = vmatprep.subr.mxu0 0.0
      %704 = vmatpush1.msra.mxu0 0.0
      %705 = vmatprep.subr.mxu0 0.0
      %706 = vmatpush1.msra.mxu0 0.0
      %707 = vmatprep.subr.mxu0 0.0
      %708 = vmatpush1.msra.mxu0 0.0
      %709 = vmatprep.subr.mxu0 0.0
      %710 = vmatpush1.msra.mxu0 0.0
      %711 = vmatprep.subr.mxu0 0.0
      %712 = vmatpush1.msra.mxu0 0.0
      %713 = vmatprep.subr.mxu0 0.0
      %714 = vmatpush1.msra.mxu0 0.0
      %715 = vmatprep.subr.mxu0 0.0
      %716 = vmatpush1.msra.mxu0 0.0
      %717 = vmatprep.subr.mxu0 0.0
      %718 = vmatpush1.msra.mxu0 0.0
      %719 = vmatprep.subr.mxu0 0.0
      %720 = vmatpush1.msra.mxu0 0.0
      %721 = vmatprep.subr.mxu0 0.0
      %722 = vmatpush1.msra.mxu0 0.0
      %723 = vmatprep.subr.mxu0 0.0
      %724 = vmatpush1.msra.mxu0 0.0
      %725 = vmatprep.subr.mxu0 0.0
      %726 = vmatpush1.msra.mxu0 0.0
      %727 = vmatprep.subr.mxu0 0.0
      %728 = vmatpush1.msra.mxu0 0.0
      %729 = vmatprep.subr.mxu0 0.0
      %730 = vmatpush1.msra.mxu0 0.0
      %731 = vmatprep.subr.mxu0 0.0
      %732 = vmatpush1.msra.mxu0 0.0
      %733 = vmatprep.mubr.f32.mxu0 0.0
      %734 = vmatmul.mubr.f32.gmra.mrb[0].mxu0 %v667
      %v735 = vpop.f32.mrb[0].mxu0
      %v736 = vadd.f32 0.0, %v735
      %v737 = vpop.f32.mrb[0].mxu0
      %738 = vdwg.mxu0
      %739 = vrot.lane.b32.xlu0 %v389, 64
      %v740 = vpop.permute.xlu0 %739
      %v743 = vsel %vm153, %v661, 0
      %745 = vmatprep.subr.mxu0 0.0
      %746 = vmatpush1.msra.mxu0 %v740
      %747 = vmatprep.subr.mxu0 0.0
      %748 = vmatpush1.msra.mxu0 0.0
      %749 = vmatprep.subr.mxu0 0.0
      %750 = vmatpush1.msra.mxu0 0.0
      %751 = vmatprep.subr.mxu0 0.0
      %752 = vmatpush1.msra.mxu0 0.0
      %753 = vmatprep.subr.mxu0 0.0
      %754 = vmatpush1.msra.mxu0 0.0
      %755 = vmatprep.subr.mxu0 0.0
      %756 = vmatpush1.msra.mxu0 0.0
      %757 = vmatprep.subr.mxu0 0.0
      %758 = vmatpush1.msra.mxu0 0.0
      %759 = vmatprep.subr.mxu0 0.0
      %760 = vmatpush1.msra.mxu0 0.0
      %761 = vmatprep.subr.mxu0 0.0
      %762 = vmatpush1.msra.mxu0 0.0
      %763 = vmatprep.subr.mxu0 0.0
      %764 = vmatpush1.msra.mxu0 0.0
      %765 = vmatprep.subr.mxu0 0.0
      %766 = vmatpush1.msra.mxu0 0.0
      %767 = vmatprep.subr.mxu0 0.0
      %768 = vmatpush1.msra.mxu0 0.0
      %769 = vmatprep.subr.mxu0 0.0
      %770 = vmatpush1.msra.mxu0 0.0
      %771 = vmatprep.subr.mxu0 0.0
      %772 = vmatpush1.msra.mxu0 0.0
      %773 = vmatprep.subr.mxu0 0.0
      %774 = vmatpush1.msra.mxu0 0.0
      %775 = vmatprep.subr.mxu0 0.0
      %776 = vmatpush1.msra.mxu0 0.0
      %777 = vmatprep.subr.mxu0 0.0
      %778 = vmatpush1.msra.mxu0 0.0
      %779 = vmatprep.subr.mxu0 0.0
      %780 = vmatpush1.msra.mxu0 0.0
      %781 = vmatprep.subr.mxu0 0.0
      %782 = vmatpush1.msra.mxu0 0.0
      %783 = vmatprep.subr.mxu0 0.0
      %784 = vmatpush1.msra.mxu0 0.0
      %785 = vmatprep.subr.mxu0 0.0
      %786 = vmatpush1.msra.mxu0 0.0
      %787 = vmatprep.subr.mxu0 0.0
      %788 = vmatpush1.msra.mxu0 0.0
      %789 = vmatprep.subr.mxu0 0.0
      %790 = vmatpush1.msra.mxu0 0.0
      %791 = vmatprep.subr.mxu0 0.0
      %792 = vmatpush1.msra.mxu0 0.0
      %793 = vmatprep.subr.mxu0 0.0
      %794 = vmatpush1.msra.mxu0 0.0
      %795 = vmatprep.subr.mxu0 0.0
      %796 = vmatpush1.msra.mxu0 0.0
      %797 = vmatprep.subr.mxu0 0.0
      %798 = vmatpush1.msra.mxu0 0.0
      %799 = vmatprep.subr.mxu0 0.0
      %800 = vmatpush1.msra.mxu0 0.0
      %801 = vmatprep.subr.mxu0 0.0
      %802 = vmatpush1.msra.mxu0 0.0
      %803 = vmatprep.subr.mxu0 0.0
      %804 = vmatpush1.msra.mxu0 0.0
      %805 = vmatprep.subr.mxu0 0.0
      %806 = vmatpush1.msra.mxu0 0.0
      %807 = vmatprep.subr.mxu0 0.0
      %808 = vmatpush1.msra.mxu0 0.0
      %809 = vmatprep.mubr.f32.mxu0 0.0
      %810 = vmatmul.mubr.f32.gmra.mrb[0].mxu0 %v743
      %v811 = vpop.f32.mrb[0].mxu0
      %v812 = vadd.f32 0.0, %v811
      %v813 = vpop.f32.mrb[0].mxu0
      %814 = vdwg.mxu0
      %815 = vrot.lane.b32.xlu0 %v394, 64
      %v816 = vpop.permute.xlu0 %815
      %v819 = vsel %vm153, %v662, 0
      %821 = vmatprep.subr.mxu0 0.0
      %822 = vmatpush1.msra.mxu0 %v816
      %823 = vmatprep.subr.mxu0 0.0
      %824 = vmatpush1.msra.mxu0 0.0
      %825 = vmatprep.subr.mxu0 0.0
      %826 = vmatpush1.msra.mxu0 0.0
      %827 = vmatprep.subr.mxu0 0.0
      %828 = vmatpush1.msra.mxu0 0.0
      %829 = vmatprep.subr.mxu0 0.0
      %830 = vmatpush1.msra.mxu0 0.0
      %831 = vmatprep.subr.mxu0 0.0
      %832 = vmatpush1.msra.mxu0 0.0
      %833 = vmatprep.subr.mxu0 0.0
      %834 = vmatpush1.msra.mxu0 0.0
      %835 = vmatprep.subr.mxu0 0.0
      %836 = vmatpush1.msra.mxu0 0.0
      %837 = vmatprep.subr.mxu0 0.0
      %838 = vmatpush1.msra.mxu0 0.0
      %839 = vmatprep.subr.mxu0 0.0
      %840 = vmatpush1.msra.mxu0 0.0
      %841 = vmatprep.subr.mxu0 0.0
      %842 = vmatpush1.msra.mxu0 0.0
      %843 = vmatprep.subr.mxu0 0.0
      %844 = vmatpush1.msra.mxu0 0.0
      %845 = vmatprep.subr.mxu0 0.0
      %846 = vmatpush1.msra.mxu0 0.0
      %847 = vmatprep.subr.mxu0 0.0
      %848 = vmatpush1.msra.mxu0 0.0
      %849 = vmatprep.subr.mxu0 0.0
      %850 = vmatpush1.msra.mxu0 0.0
      %851 = vmatprep.subr.mxu0 0.0
      %852 = vmatpush1.msra.mxu0 0.0
      %853 = vmatprep.subr.mxu0 0.0
      %854 = vmatpush1.msra.mxu0 0.0
      %855 = vmatprep.subr.mxu0 0.0
      %856 = vmatpush1.msra.mxu0 0.0
      %857 = vmatprep.subr.mxu0 0.0
      %858 = vmatpush1.msra.mxu0 0.0
      %859 = vmatprep.subr.mxu0 0.0
      %860 = vmatpush1.msra.mxu0 0.0
      %861 = vmatprep.subr.mxu0 0.0
      %862 = vmatpush1.msra.mxu0 0.0
      %863 = vmatprep.subr.mxu0 0.0
      %864 = vmatpush1.msra.mxu0 0.0
      %865 = vmatprep.subr.mxu0 0.0
      %866 = vmatpush1.msra.mxu0 0.0
      %867 = vmatprep.subr.mxu0 0.0
      %868 = vmatpush1.msra.mxu0 0.0
      %869 = vmatprep.subr.mxu0 0.0
      %870 = vmatpush1.msra.mxu0 0.0
      %871 = vmatprep.subr.mxu0 0.0
      %872 = vmatpush1.msra.mxu0 0.0
      %873 = vmatprep.subr.mxu0 0.0
      %874 = vmatpush1.msra.mxu0 0.0
      %875 = vmatprep.subr.mxu0 0.0
      %876 = vmatpush1.msra.mxu0 0.0
      %877 = vmatprep.subr.mxu0 0.0
      %878 = vmatpush1.msra.mxu0 0.0
      %879 = vmatprep.subr.mxu0 0.0
      %880 = vmatpush1.msra.mxu0 0.0
      %881 = vmatprep.subr.mxu0 0.0
      %882 = vmatpush1.msra.mxu0 0.0
      %883 = vmatprep.subr.mxu0 0.0
      %884 = vmatpush1.msra.mxu0 0.0
      %885 = vmatprep.mubr.f32.mxu0 0.0
      %886 = vmatmul.mubr.f32.gmra.mrb[0].mxu0 %v819
      %v887 = vpop.f32.mrb[0].mxu0
      %v888 = vadd.f32 0.0, %v887
      %v889 = vpop.f32.mrb[0].mxu0
      %890 = vdwg.mxu0
      %891 = vrot.lane.b32.xlu0 %v386, 120
      %v892 = vpop.permute.xlu0 %891
      %893 = vrot.lane.b32.xlu0 %v386, 88
      %v894 = vpop.permute.xlu0 %893
      %v895 = vsel %vm153, %v892, 0
      %v897 = vsel %vm153, %v894, 0
      %899 = vmatprep.subr.mxu0 0.0
      %900 = vmatpush1.xpose.msra.mxu0 %v897
      %901 = vmatprep.subr.mxu0 0.0
      %902 = vmatpush1.xpose.msra.mxu0 0.0
      %903 = vmatprep.subr.mxu0 0.0
      %904 = vmatpush1.xpose.msra.mxu0 0.0
      %905 = vmatprep.subr.mxu0 0.0
      %906 = vmatpush1.xpose.msra.mxu0 0.0
      %907 = vmatprep.subr.mxu0 0.0
      %908 = vmatpush1.xpose.msra.mxu0 0.0
      %909 = vmatprep.subr.mxu0 0.0
      %910 = vmatpush1.xpose.msra.mxu0 0.0
      %911 = vmatprep.subr.mxu0 0.0
      %912 = vmatpush1.xpose.msra.mxu0 0.0
      %913 = vmatprep.subr.mxu0 0.0
      %914 = vmatpush1.xpose.msra.mxu0 0.0
      %915 = vmatprep.subr.mxu0 0.0
      %916 = vmatpush1.xpose.msra.mxu0 0.0
      %917 = vmatprep.subr.mxu0 0.0
      %918 = vmatpush1.xpose.msra.mxu0 0.0
      %919 = vmatprep.subr.mxu0 0.0
      %920 = vmatpush1.xpose.msra.mxu0 0.0
      %921 = vmatprep.subr.mxu0 0.0
      %922 = vmatpush1.xpose.msra.mxu0 0.0
      %923 = vmatprep.subr.mxu0 0.0
      %924 = vmatpush1.xpose.msra.mxu0 0.0
      %925 = vmatprep.subr.mxu0 0.0
      %926 = vmatpush1.xpose.msra.mxu0 0.0
      %927 = vmatprep.subr.mxu0 0.0
      %928 = vmatpush1.xpose.msra.mxu0 0.0
      %929 = vmatprep.subr.mxu0 0.0
      %930 = vmatpush1.xpose.msra.mxu0 0.0
      %931 = vmatprep.subr.mxu0 0.0
      %932 = vmatpush1.xpose.msra.mxu0 0.0
      %933 = vmatprep.subr.mxu0 0.0
      %934 = vmatpush1.xpose.msra.mxu0 0.0
      %935 = vmatprep.subr.mxu0 0.0
      %936 = vmatpush1.xpose.msra.mxu0 0.0
      %937 = vmatprep.subr.mxu0 0.0
      %938 = vmatpush1.xpose.msra.mxu0 0.0
      %939 = vmatprep.subr.mxu0 0.0
      %940 = vmatpush1.xpose.msra.mxu0 0.0
      %941 = vmatprep.subr.mxu0 0.0
      %942 = vmatpush1.xpose.msra.mxu0 0.0
      %943 = vmatprep.subr.mxu0 0.0
      %944 = vmatpush1.xpose.msra.mxu0 0.0
      %945 = vmatprep.subr.mxu0 0.0
      %946 = vmatpush1.xpose.msra.mxu0 0.0
      %947 = vmatprep.subr.mxu0 0.0
      %948 = vmatpush1.xpose.msra.mxu0 0.0
      %949 = vmatprep.subr.mxu0 0.0
      %950 = vmatpush1.xpose.msra.mxu0 0.0
      %951 = vmatprep.subr.mxu0 0.0
      %952 = vmatpush1.xpose.msra.mxu0 0.0
      %953 = vmatprep.subr.mxu0 0.0
      %954 = vmatpush1.xpose.msra.mxu0 0.0
      %955 = vmatprep.subr.mxu0 0.0
      %956 = vmatpush1.xpose.msra.mxu0 0.0
      %957 = vmatprep.subr.mxu0 0.0
      %958 = vmatpush1.xpose.msra.mxu0 0.0
      %959 = vmatprep.subr.mxu0 0.0
      %960 = vmatpush1.xpose.msra.mxu0 0.0
      %961 = vmatprep.subr.mxu0 0.0
      %962 = vmatpush1.xpose.msra.mxu0 0.0
      %963 = vmatprep.mubr.f32.mxu0 0.0
      %964 = vmatmul.mubr.f32.gmra.mrb[0].mxu0 %v895
      %v965 = vpop.f32.mrb[0].mxu0
      %v966 = vadd.f32 %v317, %v965
      %v967 = vpop.f32.mrb[0].mxu0
      %968 = vdwg.mxu0
      %969 = vrot.lane.b32.xlu0 %v389, 120
      %v970 = vpop.permute.xlu0 %969
      %971 = vrot.lane.b32.xlu0 %v389, 88
      %v972 = vpop.permute.xlu0 %971
      %v973 = vsel %vm153, %v970, 0
      %v975 = vsel %vm153, %v972, 0
      %977 = vmatprep.subr.mxu0 0.0
      %978 = vmatpush1.xpose.msra.mxu0 %v975
      %979 = vmatprep.subr.mxu0 0.0
      %980 = vmatpush1.xpose.msra.mxu0 0.0
      %981 = vmatprep.subr.mxu0 0.0
      %982 = vmatpush1.xpose.msra.mxu0 0.0
      %983 = vmatprep.subr.mxu0 0.0
      %984 = vmatpush1.xpose.msra.mxu0 0.0
      %985 = vmatprep.subr.mxu0 0.0
      %986 = vmatpush1.xpose.msra.mxu0 0.0
      %987 = vmatprep.subr.mxu0 0.0
      %988 = vmatpush1.xpose.msra.mxu0 0.0
      %989 = vmatprep.subr.mxu0 0.0
      %990 = vmatpush1.xpose.msra.mxu0 0.0
      %991 = vmatprep.subr.mxu0 0.0
      %992 = vmatpush1.xpose.msra.mxu0 0.0
      %993 = vmatprep.subr.mxu0 0.0
      %994 = vmatpush1.xpose.msra.mxu0 0.0
      %995 = vmatprep.subr.mxu0 0.0
      %996 = vmatpush1.xpose.msra.mxu0 0.0
      %997 = vmatprep.subr.mxu0 0.0
      %998 = vmatpush1.xpose.msra.mxu0 0.0
      %999 = vmatprep.subr.mxu0 0.0
      %1000 = vmatpush1.xpose.msra.mxu0 0.0
      %1001 = vmatprep.subr.mxu0 0.0
      %1002 = vmatpush1.xpose.msra.mxu0 0.0
      %1003 = vmatprep.subr.mxu0 0.0
      %1004 = vmatpush1.xpose.msra.mxu0 0.0
      %1005 = vmatprep.subr.mxu0 0.0
      %1006 = vmatpush1.xpose.msra.mxu0 0.0
      %1007 = vmatprep.subr.mxu0 0.0
      %1008 = vmatpush1.xpose.msra.mxu0 0.0
      %1009 = vmatprep.subr.mxu0 0.0
      %1010 = vmatpush1.xpose.msra.mxu0 0.0
      %1011 = vmatprep.subr.mxu0 0.0
      %1012 = vmatpush1.xpose.msra.mxu0 0.0
      %1013 = vmatprep.subr.mxu0 0.0
      %1014 = vmatpush1.xpose.msra.mxu0 0.0
      %1015 = vmatprep.subr.mxu0 0.0
      %1016 = vmatpush1.xpose.msra.mxu0 0.0
      %1017 = vmatprep.subr.mxu0 0.0
      %1018 = vmatpush1.xpose.msra.mxu0 0.0
      %1019 = vmatprep.subr.mxu0 0.0
      %1020 = vmatpush1.xpose.msra.mxu0 0.0
      %1021 = vmatprep.subr.mxu0 0.0
      %1022 = vmatpush1.xpose.msra.mxu0 0.0
      %1023 = vmatprep.subr.mxu0 0.0
      %1024 = vmatpush1.xpose.msra.mxu0 0.0
      %1025 = vmatprep.subr.mxu0 0.0
      %1026 = vmatpush1.xpose.msra.mxu0 0.0
      %1027 = vmatprep.subr.mxu0 0.0
      %1028 = vmatpush1.xpose.msra.mxu0 0.0
      %1029 = vmatprep.subr.mxu0 0.0
      %1030 = vmatpush1.xpose.msra.mxu0 0.0
      %1031 = vmatprep.subr.mxu0 0.0
      %1032 = vmatpush1.xpose.msra.mxu0 0.0
      %1033 = vmatprep.subr.mxu0 0.0
      %1034 = vmatpush1.xpose.msra.mxu0 0.0
      %1035 = vmatprep.subr.mxu0 0.0
      %1036 = vmatpush1.xpose.msra.mxu0 0.0
      %1037 = vmatprep.subr.mxu0 0.0
      %1038 = vmatpush1.xpose.msra.mxu0 0.0
      %1039 = vmatprep.subr.mxu0 0.0
      %1040 = vmatpush1.xpose.msra.mxu0 0.0
      %1041 = vmatprep.mubr.f32.mxu0 0.0
      %1042 = vmatmul.mubr.f32.gmra.mrb[0].mxu0 %v973
      %v1043 = vpop.f32.mrb[0].mxu0
      %v1044 = vadd.f32 %v318, %v1043
      %v1045 = vpop.f32.mrb[0].mxu0
      %1046 = vdwg.mxu0
      %1047 = vrot.lane.b32.xlu0 %v394, 120
      %v1048 = vpop.permute.xlu0 %1047
      %1049 = vrot.lane.b32.xlu0 %v394, 88
      %v1050 = vpop.permute.xlu0 %1049
      %v1051 = vsel %vm153, %v1048, 0
      %v1053 = vsel %vm153, %v1050, 0
      %1055 = vmatprep.subr.mxu0 0.0
      %1056 = vmatpush1.xpose.msra.mxu0 %v1053
      %1057 = vmatprep.subr.mxu0 0.0
      %1058 = vmatpush1.xpose.msra.mxu0 0.0
      %1059 = vmatprep.subr.mxu0 0.0
      %1060 = vmatpush1.xpose.msra.mxu0 0.0
      %1061 = vmatprep.subr.mxu0 0.0
      %1062 = vmatpush1.xpose.msra.mxu0 0.0
      %1063 = vmatprep.subr.mxu0 0.0
      %1064 = vmatpush1.xpose.msra.mxu0 0.0
      %1065 = vmatprep.subr.mxu0 0.0
      %1066 = vmatpush1.xpose.msra.mxu0 0.0
      %1067 = vmatprep.subr.mxu0 0.0
      %1068 = vmatpush1.xpose.msra.mxu0 0.0
      %1069 = vmatprep.subr.mxu0 0.0
      %1070 = vmatpush1.xpose.msra.mxu0 0.0
      %1071 = vmatprep.subr.mxu0 0.0
      %1072 = vmatpush1.xpose.msra.mxu0 0.0
      %1073 = vmatprep.subr.mxu0 0.0
      %1074 = vmatpush1.xpose.msra.mxu0 0.0
      %1075 = vmatprep.subr.mxu0 0.0
      %1076 = vmatpush1.xpose.msra.mxu0 0.0
      %1077 = vmatprep.subr.mxu0 0.0
      %1078 = vmatpush1.xpose.msra.mxu0 0.0
      %1079 = vmatprep.subr.mxu0 0.0
      %1080 = vmatpush1.xpose.msra.mxu0 0.0
      %1081 = vmatprep.subr.mxu0 0.0
      %1082 = vmatpush1.xpose.msra.mxu0 0.0
      %1083 = vmatprep.subr.mxu0 0.0
      %1084 = vmatpush1.xpose.msra.mxu0 0.0
      %1085 = vmatprep.subr.mxu0 0.0
      %1086 = vmatpush1.xpose.msra.mxu0 0.0
      %1087 = vmatprep.subr.mxu0 0.0
      %1088 = vmatpush1.xpose.msra.mxu0 0.0
      %1089 = vmatprep.subr.mxu0 0.0
      %1090 = vmatpush1.xpose.msra.mxu0 0.0
      %1091 = vmatprep.subr.mxu0 0.0
      %1092 = vmatpush1.xpose.msra.mxu0 0.0
      %1093 = vmatprep.subr.mxu0 0.0
      %1094 = vmatpush1.xpose.msra.mxu0 0.0
      %1095 = vmatprep.subr.mxu0 0.0
      %1096 = vmatpush1.xpose.msra.mxu0 0.0
      %1097 = vmatprep.subr.mxu0 0.0
      %1098 = vmatpush1.xpose.msra.mxu0 0.0
      %1099 = vmatprep.subr.mxu0 0.0
      %1100 = vmatpush1.xpose.msra.mxu0 0.0
      %1101 = vmatprep.subr.mxu0 0.0
      %1102 = vmatpush1.xpose.msra.mxu0 0.0
      %1103 = vmatprep.subr.mxu0 0.0
      %1104 = vmatpush1.xpose.msra.mxu0 0.0
      %1105 = vmatprep.subr.mxu0 0.0
      %1106 = vmatpush1.xpose.msra.mxu0 0.0
      %1107 = vmatprep.subr.mxu0 0.0
      %1108 = vmatpush1.xpose.msra.mxu0 0.0
      %1109 = vmatprep.subr.mxu0 0.0
      %1110 = vmatpush1.xpose.msra.mxu0 0.0
      %1111 = vmatprep.subr.mxu0 0.0
      %1112 = vmatpush1.xpose.msra.mxu0 0.0
      %1113 = vmatprep.subr.mxu0 0.0
      %1114 = vmatpush1.xpose.msra.mxu0 0.0
      %1115 = vmatprep.subr.mxu0 0.0
      %1116 = vmatpush1.xpose.msra.mxu0 0.0
      %1117 = vmatprep.subr.mxu0 0.0
      %1118 = vmatpush1.xpose.msra.mxu0 0.0
      %1119 = vmatprep.mubr.f32.mxu0 0.0
      %1120 = vmatmul.mubr.f32.gmra.mrb[0].mxu0 %v1051
      %v1121 = vpop.f32.mrb[0].mxu0
      %v1122 = vadd.f32 %v319, %v1121
      %v1123 = vpop.f32.mrb[0].mxu0
      %1124 = vdwg.mxu0
      %v1125 = vsel %vm153, %v966, -inf
      %1126 = vmax.xlane.f32.xlu0 %v1125
      %v1127 = vpop.xlane.xlu0 %1126
      %v1128 = vsel %vm153, %v1044, -inf
      %1129 = vmax.xlane.f32.xlu0 %v1128
      %v1130 = vpop.xlane.xlu0 %1129
      %v1131 = vsel %vm153, %v1122, -inf
      %1132 = vmax.xlane.f32.xlu0 %v1131
      %v1133 = vpop.xlane.xlu0 %1132
      %v1134 = vsub.f32 %v966, %v1127
      %v1135 = vsub.f32 %v1044, %v1130
      %v1136 = vsub.f32 %v1122, %v1133
      %v1137 = vmul.f32 %v1134, 1.442695
      %v1138 = vpow.pop %v1137
      %v1139 = vmul.f32 %v1135, 1.442695
      %v1140 = vpow.pop %v1139
      %v1141 = vmul.f32 %v1136, 1.442695
      %v1142 = vpow.pop %v1141
      %v1143 = vsel %vm153, %v1138, 0.0
      %1144 = vadd.xlane.f32.xlu0 %v1143
      %v1145 = vpop.xlane.xlu0 %1144
      %v1146 = vsel %vm153, %v1140, 0.0
      %1147 = vadd.xlane.f32.xlu0 %v1146
      %v1148 = vpop.xlane.xlu0 %1147
      %v1149 = vsel %vm153, %v1142, 0.0
      %1150 = vadd.xlane.f32.xlu0 %v1149
      %v1151 = vpop.xlane.xlu0 %1150
      %v1152 = vrcp.pop %v1145
      %v1153 = vrcp.pop %v1148
      %v1154 = vrcp.pop %v1151
      %v1155 = vmul.f32 %v1138, %v1152
      %v1156 = vmul.f32 %v1140, %v1153
      %v1157 = vmul.f32 %v1142, %v1154
      %1158 = vrot.lane.b32.xlu0 %v386, 56
      %v1159 = vpop.permute.xlu0 %1158
      %v1162 = vsel %vm153, %v1155, 0
      %1164 = vmatprep.subr.mxu0 0.0
      %1165 = vmatpush1.msra.mxu0 %v1159
      %1166 = vmatprep.subr.mxu0 0.0
      %1167 = vmatpush1.msra.mxu0 0.0
      %1168 = vmatprep.subr.mxu0 0.0
      %1169 = vmatpush1.msra.mxu0 0.0
      %1170 = vmatprep.subr.mxu0 0.0
      %1171 = vmatpush1.msra.mxu0 0.0
      %1172 = vmatprep.subr.mxu0 0.0
      %1173 = vmatpush1.msra.mxu0 0.0
      %1174 = vmatprep.subr.mxu0 0.0
      %1175 = vmatpush1.msra.mxu0 0.0
      %1176 = vmatprep.subr.mxu0 0.0
      %1177 = vmatpush1.msra.mxu0 0.0
      %1178 = vmatprep.subr.mxu0 0.0
      %1179 = vmatpush1.msra.mxu0 0.0
      %1180 = vmatprep.subr.mxu0 0.0
      %1181 = vmatpush1.msra.mxu0 0.0
      %1182 = vmatprep.subr.mxu0 0.0
      %1183 = vmatpush1.msra.mxu0 0.0
      %1184 = vmatprep.subr.mxu0 0.0
      %1185 = vmatpush1.msra.mxu0 0.0
      %1186 = vmatprep.subr.mxu0 0.0
      %1187 = vmatpush1.msra.mxu0 0.0
      %1188 = vmatprep.subr.mxu0 0.0
      %1189 = vmatpush1.msra.mxu0 0.0
      %1190 = vmatprep.subr.mxu0 0.0
      %1191 = vmatpush1.msra.mxu0 0.0
      %1192 = vmatprep.subr.mxu0 0.0
      %1193 = vmatpush1.msra.mxu0 0.0
      %1194 = vmatprep.subr.mxu0 0.0
      %1195 = vmatpush1.msra.mxu0 0.0
      %1196 = vmatprep.subr.mxu0 0.0
      %1197 = vmatpush1.msra.mxu0 0.0
      %1198 = vmatprep.subr.mxu0 0.0
      %1199 = vmatpush1.msra.mxu0 0.0
      %1200 = vmatprep.subr.mxu0 0.0
      %1201 = vmatpush1.msra.mxu0 0.0
      %1202 = vmatprep.subr.mxu0 0.0
      %1203 = vmatpush1.msra.mxu0 0.0
      %1204 = vmatprep.subr.mxu0 0.0
      %1205 = vmatpush1.msra.mxu0 0.0
      %1206 = vmatprep.subr.mxu0 0.0
      %1207 = vmatpush1.msra.mxu0 0.0
      %1208 = vmatprep.subr.mxu0 0.0
      %1209 = vmatpush1.msra.mxu0 0.0
      %1210 = vmatprep.subr.mxu0 0.0
      %1211 = vmatpush1.msra.mxu0 0.0
      %1212 = vmatprep.subr.mxu0 0.0
      %1213 = vmatpush1.msra.mxu0 0.0
      %1214 = vmatprep.subr.mxu0 0.0
      %1215 = vmatpush1.msra.mxu0 0.0
      %1216 = vmatprep.subr.mxu0 0.0
      %1217 = vmatpush1.msra.mxu0 0.0
      %1218 = vmatprep.subr.mxu0 0.0
      %1219 = vmatpush1.msra.mxu0 0.0
      %1220 = vmatprep.subr.mxu0 0.0
      %1221 = vmatpush1.msra.mxu0 0.0
      %1222 = vmatprep.subr.mxu0 0.0
      %1223 = vmatpush1.msra.mxu0 0.0
      %1224 = vmatprep.subr.mxu0 0.0
      %1225 = vmatpush1.msra.mxu0 0.0
      %1226 = vmatprep.subr.mxu0 0.0
      %1227 = vmatpush1.msra.mxu0 0.0
      %1228 = vmatprep.mubr.f32.mxu0 0.0
      %1229 = vmatmul.mubr.f32.gmra.mrb[0].mxu0 %v1162
      %v1230 = vpop.f32.mrb[0].mxu0
      %v1231 = vadd.f32 0.0, %v1230
      %v1232 = vpop.f32.mrb[0].mxu0
      %1233 = vdwg.mxu0
      %1234 = vrot.lane.b32.xlu0 %v389, 56
      %v1235 = vpop.permute.xlu0 %1234
      %v1238 = vsel %vm153, %v1156, 0
      %1240 = vmatprep.subr.mxu0 0.0
      %1241 = vmatpush1.msra.mxu0 %v1235
      %1242 = vmatprep.subr.mxu0 0.0
      %1243 = vmatpush1.msra.mxu0 0.0
      %1244 = vmatprep.subr.mxu0 0.0
      %1245 = vmatpush1.msra.mxu0 0.0
      %1246 = vmatprep.subr.mxu0 0.0
      %1247 = vmatpush1.msra.mxu0 0.0
      %1248 = vmatprep.subr.mxu0 0.0
      %1249 = vmatpush1.msra.mxu0 0.0
      %1250 = vmatprep.subr.mxu0 0.0
      %1251 = vmatpush1.msra.mxu0 0.0
      %1252 = vmatprep.subr.mxu0 0.0
      %1253 = vmatpush1.msra.mxu0 0.0
      %1254 = vmatprep.subr.mxu0 0.0
      %1255 = vmatpush1.msra.mxu0 0.0
      %1256 = vmatprep.subr.mxu0 0.0
      %1257 = vmatpush1.msra.mxu0 0.0
      %1258 = vmatprep.subr.mxu0 0.0
      %1259 = vmatpush1.msra.mxu0 0.0
      %1260 = vmatprep.subr.mxu0 0.0
      %1261 = vmatpush1.msra.mxu0 0.0
      %1262 = vmatprep.subr.mxu0 0.0
      %1263 = vmatpush1.msra.mxu0 0.0
      %1264 = vmatprep.subr.mxu0 0.0
      %1265 = vmatpush1.msra.mxu0 0.0
      %1266 = vmatprep.subr.mxu0 0.0
      %1267 = vmatpush1.msra.mxu0 0.0
      %1268 = vmatprep.subr.mxu0 0.0
      %1269 = vmatpush1.msra.mxu0 0.0
      %1270 = vmatprep.subr.mxu0 0.0
      %1271 = vmatpush1.msra.mxu0 0.0
      %1272 = vmatprep.subr.mxu0 0.0
      %1273 = vmatpush1.msra.mxu0 0.0
      %1274 = vmatprep.subr.mxu0 0.0
      %1275 = vmatpush1.msra.mxu0 0.0
      %1276 = vmatprep.subr.mxu0 0.0
      %1277 = vmatpush1.msra.mxu0 0.0
      %1278 = vmatprep.subr.mxu0 0.0
      %1279 = vmatpush1.msra.mxu0 0.0
      %1280 = vmatprep.subr.mxu0 0.0
      %1281 = vmatpush1.msra.mxu0 0.0
      %1282 = vmatprep.subr.mxu0 0.0
      %1283 = vmatpush1.msra.mxu0 0.0
      %1284 = vmatprep.subr.mxu0 0.0
      %1285 = vmatpush1.msra.mxu0 0.0
      %1286 = vmatprep.subr.mxu0 0.0
      %1287 = vmatpush1.msra.mxu0 0.0
      %1288 = vmatprep.subr.mxu0 0.0
      %1289 = vmatpush1.msra.mxu0 0.0
      %1290 = vmatprep.subr.mxu0 0.0
      %1291 = vmatpush1.msra.mxu0 0.0
      %1292 = vmatprep.subr.mxu0 0.0
      %1293 = vmatpush1.msra.mxu0 0.0
      %1294 = vmatprep.subr.mxu0 0.0
      %1295 = vmatpush1.msra.mxu0 0.0
      %1296 = vmatprep.subr.mxu0 0.0
      %1297 = vmatpush1.msra.mxu0 0.0
      %1298 = vmatprep.subr.mxu0 0.0
      %1299 = vmatpush1.msra.mxu0 0.0
      %1300 = vmatprep.subr.mxu0 0.0
      %1301 = vmatpush1.msra.mxu0 0.0
      %1302 = vmatprep.subr.mxu0 0.0
      %1303 = vmatpush1.msra.mxu0 0.0
      %1304 = vmatprep.mubr.f32.mxu0 0.0
      %1305 = vmatmul.mubr.f32.gmra.mrb[0].mxu0 %v1238
      %v1306 = vpop.f32.mrb[0].mxu0
      %v1307 = vadd.f32 0.0, %v1306
      %v1308 = vpop.f32.mrb[0].mxu0
      %1309 = vdwg.mxu0
      %1310 = vrot.lane.b32.xlu0 %v394, 56
      %v1311 = vpop.permute.xlu0 %1310
      %v1314 = vsel %vm153, %v1157, 0
      %1316 = vmatprep.subr.mxu0 0.0
      %1317 = vmatpush1.msra.mxu0 %v1311
      %1318 = vmatprep.subr.mxu0 0.0
      %1319 = vmatpush1.msra.mxu0 0.0
      %1320 = vmatprep.subr.mxu0 0.0
      %1321 = vmatpush1.msra.mxu0 0.0
      %1322 = vmatprep.subr.mxu0 0.0
      %1323 = vmatpush1.msra.mxu0 0.0
      %1324 = vmatprep.subr.mxu0 0.0
      %1325 = vmatpush1.msra.mxu0 0.0
      %1326 = vmatprep.subr.mxu0 0.0
      %1327 = vmatpush1.msra.mxu0 0.0
      %1328 = vmatprep.subr.mxu0 0.0
      %1329 = vmatpush1.msra.mxu0 0.0
      %1330 = vmatprep.subr.mxu0 0.0
      %1331 = vmatpush1.msra.mxu0 0.0
      %1332 = vmatprep.subr.mxu0 0.0
      %1333 = vmatpush1.msra.mxu0 0.0
      %1334 = vmatprep.subr.mxu0 0.0
      %1335 = vmatpush1.msra.mxu0 0.0
      %1336 = vmatprep.subr.mxu0 0.0
      %1337 = vmatpush1.msra.mxu0 0.0
      %1338 = vmatprep.subr.mxu0 0.0
      %1339 = vmatpush1.msra.mxu0 0.0
      %1340 = vmatprep.subr.mxu0 0.0
      %1341 = vmatpush1.msra.mxu0 0.0
      %1342 = vmatprep.subr.mxu0 0.0
      %1343 = vmatpush1.msra.mxu0 0.0
      %1344 = vmatprep.subr.mxu0 0.0
      %1345 = vmatpush1.msra.mxu0 0.0
      %1346 = vmatprep.subr.mxu0 0.0
      %1347 = vmatpush1.msra.mxu0 0.0
      %1348 = vmatprep.subr.mxu0 0.0
      %1349 = vmatpush1.msra.mxu0 0.0
      %1350 = vmatprep.subr.mxu0 0.0
      %1351 = vmatpush1.msra.mxu0 0.0
      %1352 = vmatprep.subr.mxu0 0.0
      %1353 = vmatpush1.msra.mxu0 0.0
      %1354 = vmatprep.subr.mxu0 0.0
      %1355 = vmatpush1.msra.mxu0 0.0
      %1356 = vmatprep.subr.mxu0 0.0
      %1357 = vmatpush1.msra.mxu0 0.0
      %1358 = vmatprep.subr.mxu0 0.0
      %1359 = vmatpush1.msra.mxu0 0.0
      %1360 = vmatprep.subr.mxu0 0.0
      %1361 = vmatpush1.msra.mxu0 0.0
      %1362 = vmatprep.subr.mxu0 0.0
      %1363 = vmatpush1.msra.mxu0 0.0
      %1364 = vmatprep.subr.mxu0 0.0
      %1365 = vmatpush1.msra.mxu0 0.0
      %1366 = vmatprep.subr.mxu0 0.0
      %1367 = vmatpush1.msra.mxu0 0.0
      %1368 = vmatprep.subr.mxu0 0.0
      %1369 = vmatpush1.msra.mxu0 0.0
      %1370 = vmatprep.subr.mxu0 0.0
      %1371 = vmatpush1.msra.mxu0 0.0
      %1372 = vmatprep.subr.mxu0 0.0
      %1373 = vmatpush1.msra.mxu0 0.0
      %1374 = vmatprep.subr.mxu0 0.0
      %1375 = vmatpush1.msra.mxu0 0.0
      %1376 = vmatprep.subr.mxu0 0.0
      %1377 = vmatpush1.msra.mxu0 0.0
      %1378 = vmatprep.subr.mxu0 0.0
      %1379 = vmatpush1.msra.mxu0 0.0
      %1380 = vmatprep.mubr.f32.mxu0 0.0
      %1381 = vmatmul.mubr.f32.gmra.mrb[0].mxu0 %v1314
      %v1382 = vpop.f32.mrb[0].mxu0
      %v1383 = vadd.f32 0.0, %v1382
      %v1384 = vpop.f32.mrb[0].mxu0
      %1385 = vdwg.mxu0
      %1386 = vrot.lane.b32.xlu0 %v386, 112
      %v1387 = vpop.permute.xlu0 %1386
      %1388 = vrot.lane.b32.xlu0 %v386, 80
      %v1389 = vpop.permute.xlu0 %1388
      %v1390 = vsel %vm153, %v1387, 0
      %v1392 = vsel %vm153, %v1389, 0
      %1394 = vmatprep.subr.mxu0 0.0
      %1395 = vmatpush1.xpose.msra.mxu0 %v1392
      %1396 = vmatprep.subr.mxu0 0.0
      %1397 = vmatpush1.xpose.msra.mxu0 0.0
      %1398 = vmatprep.subr.mxu0 0.0
      %1399 = vmatpush1.xpose.msra.mxu0 0.0
      %1400 = vmatprep.subr.mxu0 0.0
      %1401 = vmatpush1.xpose.msra.mxu0 0.0
      %1402 = vmatprep.subr.mxu0 0.0
      %1403 = vmatpush1.xpose.msra.mxu0 0.0
      %1404 = vmatprep.subr.mxu0 0.0
      %1405 = vmatpush1.xpose.msra.mxu0 0.0
      %1406 = vmatprep.subr.mxu0 0.0
      %1407 = vmatpush1.xpose.msra.mxu0 0.0
      %1408 = vmatprep.subr.mxu0 0.0
      %1409 = vmatpush1.xpose.msra.mxu0 0.0
      %1410 = vmatprep.subr.mxu0 0.0
      %1411 = vmatpush1.xpose.msra.mxu0 0.0
      %1412 = vmatprep.subr.mxu0 0.0
      %1413 = vmatpush1.xpose.msra.mxu0 0.0
      %1414 = vmatprep.subr.mxu0 0.0
      %1415 = vmatpush1.xpose.msra.mxu0 0.0
      %1416 = vmatprep.subr.mxu0 0.0
      %1417 = vmatpush1.xpose.msra.mxu0 0.0
      %1418 = vmatprep.subr.mxu0 0.0
      %1419 = vmatpush1.xpose.msra.mxu0 0.0
      %1420 = vmatprep.subr.mxu0 0.0
      %1421 = vmatpush1.xpose.msra.mxu0 0.0
      %1422 = vmatprep.subr.mxu0 0.0
      %1423 = vmatpush1.xpose.msra.mxu0 0.0
      %1424 = vmatprep.subr.mxu0 0.0
      %1425 = vmatpush1.xpose.msra.mxu0 0.0
      %1426 = vmatprep.subr.mxu0 0.0
      %1427 = vmatpush1.xpose.msra.mxu0 0.0
      %1428 = vmatprep.subr.mxu0 0.0
      %1429 = vmatpush1.xpose.msra.mxu0 0.0
      %1430 = vmatprep.subr.mxu0 0.0
      %1431 = vmatpush1.xpose.msra.mxu0 0.0
      %1432 = vmatprep.subr.mxu0 0.0
      %1433 = vmatpush1.xpose.msra.mxu0 0.0
      %1434 = vmatprep.subr.mxu0 0.0
      %1435 = vmatpush1.xpose.msra.mxu0 0.0
      %1436 = vmatprep.subr.mxu0 0.0
      %1437 = vmatpush1.xpose.msra.mxu0 0.0
      %1438 = vmatprep.subr.mxu0 0.0
      %1439 = vmatpush1.xpose.msra.mxu0 0.0
      %1440 = vmatprep.subr.mxu0 0.0
      %1441 = vmatpush1.xpose.msra.mxu0 0.0
      %1442 = vmatprep.subr.mxu0 0.0
      %1443 = vmatpush1.xpose.msra.mxu0 0.0
      %1444 = vmatprep.subr.mxu0 0.0
      %1445 = vmatpush1.xpose.msra.mxu0 0.0
      %1446 = vmatprep.subr.mxu0 0.0
      %1447 = vmatpush1.xpose.msra.mxu0 0.0
      %1448 = vmatprep.subr.mxu0 0.0
      %1449 = vmatpush1.xpose.msra.mxu0 0.0
      %1450 = vmatprep.subr.mxu0 0.0
      %1451 = vmatpush1.xpose.msra.mxu0 0.0
      %1452 = vmatprep.subr.mxu0 0.0
      %1453 = vmatpush1.xpose.msra.mxu0 0.0
      %1454 = vmatprep.subr.mxu0 0.0
      %1455 = vmatpush1.xpose.msra.mxu0 0.0
      %1456 = vmatprep.subr.mxu0 0.0
      %1457 = vmatpush1.xpose.msra.mxu0 0.0
      %1458 = vmatprep.mubr.f32.mxu0 0.0
      %1459 = vmatmul.mubr.f32.gmra.mrb[0].mxu0 %v1390
      %v1460 = vpop.f32.mrb[0].mxu0
      %v1461 = vadd.f32 %v317, %v1460
      %v1462 = vpop.f32.mrb[0].mxu0
      %1463 = vdwg.mxu0
      %1464 = vrot.lane.b32.xlu0 %v389, 112
      %v1465 = vpop.permute.xlu0 %1464
      %1466 = vrot.lane.b32.xlu0 %v389, 80
      %v1467 = vpop.permute.xlu0 %1466
      %v1468 = vsel %vm153, %v1465, 0
      %v1470 = vsel %vm153, %v1467, 0
      %1472 = vmatprep.subr.mxu0 0.0
      %1473 = vmatpush1.xpose.msra.mxu0 %v1470
      %1474 = vmatprep.subr.mxu0 0.0
      %1475 = vmatpush1.xpose.msra.mxu0 0.0
      %1476 = vmatprep.subr.mxu0 0.0
      %1477 = vmatpush1.xpose.msra.mxu0 0.0
      %1478 = vmatprep.subr.mxu0 0.0
      %1479 = vmatpush1.xpose.msra.mxu0 0.0
      %1480 = vmatprep.subr.mxu0 0.0
      %1481 = vmatpush1.xpose.msra.mxu0 0.0
      %1482 = vmatprep.subr.mxu0 0.0
      %1483 = vmatpush1.xpose.msra.mxu0 0.0
      %1484 = vmatprep.subr.mxu0 0.0
      %1485 = vmatpush1.xpose.msra.mxu0 0.0
      %1486 = vmatprep.subr.mxu0 0.0
      %1487 = vmatpush1.xpose.msra.mxu0 0.0
      %1488 = vmatprep.subr.mxu0 0.0
      %1489 = vmatpush1.xpose.msra.mxu0 0.0
      %1490 = vmatprep.subr.mxu0 0.0
      %1491 = vmatpush1.xpose.msra.mxu0 0.0
      %1492 = vmatprep.subr.mxu0 0.0
      %1493 = vmatpush1.xpose.msra.mxu0 0.0
      %1494 = vmatprep.subr.mxu0 0.0
      %1495 = vmatpush1.xpose.msra.mxu0 0.0
      %1496 = vmatprep.subr.mxu0 0.0
      %1497 = vmatpush1.xpose.msra.mxu0 0.0
      %1498 = vmatprep.subr.mxu0 0.0
      %1499 = vmatpush1.xpose.msra.mxu0 0.0
      %1500 = vmatprep.subr.mxu0 0.0
      %1501 = vmatpush1.xpose.msra.mxu0 0.0
      %1502 = vmatprep.subr.mxu0 0.0
      %1503 = vmatpush1.xpose.msra.mxu0 0.0
      %1504 = vmatprep.subr.mxu0 0.0
      %1505 = vmatpush1.xpose.msra.mxu0 0.0
      %1506 = vmatprep.subr.mxu0 0.0
      %1507 = vmatpush1.xpose.msra.mxu0 0.0
      %1508 = vmatprep.subr.mxu0 0.0
      %1509 = vmatpush1.xpose.msra.mxu0 0.0
      %1510 = vmatprep.subr.mxu0 0.0
      %1511 = vmatpush1.xpose.msra.mxu0 0.0
      %1512 = vmatprep.subr.mxu0 0.0
      %1513 = vmatpush1.xpose.msra.mxu0 0.0
      %1514 = vmatprep.subr.mxu0 0.0
      %1515 = vmatpush1.xpose.msra.mxu0 0.0
      %1516 = vmatprep.subr.mxu0 0.0
      %1517 = vmatpush1.xpose.msra.mxu0 0.0
      %1518 = vmatprep.subr.mxu0 0.0
      %1519 = vmatpush1.xpose.msra.mxu0 0.0
      %1520 = vmatprep.subr.mxu0 0.0
      %1521 = vmatpush1.xpose.msra.mxu0 0.0
      %1522 = vmatprep.subr.mxu0 0.0
      %1523 = vmatpush1.xpose.msra.mxu0 0.0
      %1524 = vmatprep.subr.mxu0 0.0
      %1525 = vmatpush1.xpose.msra.mxu0 0.0
      %1526 = vmatprep.subr.mxu0 0.0
      %1527 = vmatpush1.xpose.msra.mxu0 0.0
      %1528 = vmatprep.subr.mxu0 0.0
      %1529 = vmatpush1.xpose.msra.mxu0 0.0
      %1530 = vmatprep.subr.mxu0 0.0
      %1531 = vmatpush1.xpose.msra.mxu0 0.0
      %1532 = vmatprep.subr.mxu0 0.0
      %1533 = vmatpush1.xpose.msra.mxu0 0.0
      %1534 = vmatprep.subr.mxu0 0.0
      %1535 = vmatpush1.xpose.msra.mxu0 0.0
      %1536 = vmatprep.mubr.f32.mxu0 0.0
      %1537 = vmatmul.mubr.f32.gmra.mrb[0].mxu0 %v1468
      %v1538 = vpop.f32.mrb[0].mxu0
      %v1539 = vadd.f32 %v318, %v1538
      %v1540 = vpop.f32.mrb[0].mxu0
      %1541 = vdwg.mxu0
      %1542 = vrot.lane.b32.xlu0 %v394, 112
      %v1543 = vpop.permute.xlu0 %1542
      %1544 = vrot.lane.b32.xlu0 %v394, 80
      %v1545 = vpop.permute.xlu0 %1544
      %v1546 = vsel %vm153, %v1543, 0
      %v1548 = vsel %vm153, %v1545, 0
      %1550 = vmatprep.subr.mxu0 0.0
      %1551 = vmatpush1.xpose.msra.mxu0 %v1548
      %1552 = vmatprep.subr.mxu0 0.0
      %1553 = vmatpush1.xpose.msra.mxu0 0.0
      %1554 = vmatprep.subr.mxu0 0.0
      %1555 = vmatpush1.xpose.msra.mxu0 0.0
      %1556 = vmatprep.subr.mxu0 0.0
      %1557 = vmatpush1.xpose.msra.mxu0 0.0
      %1558 = vmatprep.subr.mxu0 0.0
      %1559 = vmatpush1.xpose.msra.mxu0 0.0
      %1560 = vmatprep.subr.mxu0 0.0
      %1561 = vmatpush1.xpose.msra.mxu0 0.0
      %1562 = vmatprep.subr.mxu0 0.0
      %1563 = vmatpush1.xpose.msra.mxu0 0.0
      %1564 = vmatprep.subr.mxu0 0.0
      %1565 = vmatpush1.xpose.msra.mxu0 0.0
      %1566 = vmatprep.subr.mxu0 0.0
      %1567 = vmatpush1.xpose.msra.mxu0 0.0
      %1568 = vmatprep.subr.mxu0 0.0
      %1569 = vmatpush1.xpose.msra.mxu0 0.0
      %1570 = vmatprep.subr.mxu0 0.0
      %1571 = vmatpush1.xpose.msra.mxu0 0.0
      %1572 = vmatprep.subr.mxu0 0.0
      %1573 = vmatpush1.xpose.msra.mxu0 0.0
      %1574 = vmatprep.subr.mxu0 0.0
      %1575 = vmatpush1.xpose.msra.mxu0 0.0
      %1576 = vmatprep.subr.mxu0 0.0
      %1577 = vmatpush1.xpose.msra.mxu0 0.0
      %1578 = vmatprep.subr.mxu0 0.0
      %1579 = vmatpush1.xpose.msra.mxu0 0.0
      %1580 = vmatprep.subr.mxu0 0.0
      %1581 = vmatpush1.xpose.msra.mxu0 0.0
      %1582 = vmatprep.subr.mxu0 0.0
      %1583 = vmatpush1.xpose.msra.mxu0 0.0
      %1584 = vmatprep.subr.mxu0 0.0
      %1585 = vmatpush1.xpose.msra.mxu0 0.0
      %1586 = vmatprep.subr.mxu0 0.0
      %1587 = vmatpush1.xpose.msra.mxu0 0.0
      %1588 = vmatprep.subr.mxu0 0.0
      %1589 = vmatpush1.xpose.msra.mxu0 0.0
      %1590 = vmatprep.subr.mxu0 0.0
      %1591 = vmatpush1.xpose.msra.mxu0 0.0
      %1592 = vmatprep.subr.mxu0 0.0
      %1593 = vmatpush1.xpose.msra.mxu0 0.0
      %1594 = vmatprep.subr.mxu0 0.0
      %1595 = vmatpush1.xpose.msra.mxu0 0.0
      %1596 = vmatprep.subr.mxu0 0.0
      %1597 = vmatpush1.xpose.msra.mxu0 0.0
      %1598 = vmatprep.subr.mxu0 0.0
      %1599 = vmatpush1.xpose.msra.mxu0 0.0
      %1600 = vmatprep.subr.mxu0 0.0
      %1601 = vmatpush1.xpose.msra.mxu0 0.0
      %1602 = vmatprep.subr.mxu0 0.0
      %1603 = vmatpush1.xpose.msra.mxu0 0.0
      %1604 = vmatprep.subr.mxu0 0.0
      %1605 = vmatpush1.xpose.msra.mxu0 0.0
      %1606 = vmatprep.subr.mxu0 0.0
      %1607 = vmatpush1.xpose.msra.mxu0 0.0
      %1608 = vmatprep.subr.mxu0 0.0
      %1609 = vmatpush1.xpose.msra.mxu0 0.0
      %1610 = vmatprep.subr.mxu0 0.0
      %1611 = vmatpush1.xpose.msra.mxu0 0.0
      %1612 = vmatprep.subr.mxu0 0.0
      %1613 = vmatpush1.xpose.msra.mxu0 0.0
      %1614 = vmatprep.mubr.f32.mxu0 0.0
      %1615 = vmatmul.mubr.f32.gmra.mrb[0].mxu0 %v1546
      %v1616 = vpop.f32.mrb[0].mxu0
      %v1617 = vadd.f32 %v319, %v1616
      %v1618 = vpop.f32.mrb[0].mxu0
      %1619 = vdwg.mxu0
      %v1620 = vsel %vm153, %v1461, -inf
      %1621 = vmax.xlane.f32.xlu0 %v1620
      %v1622 = vpop.xlane.xlu0 %1621
      %v1623 = vsel %vm153, %v1539, -inf
      %1624 = vmax.xlane.f32.xlu0 %v1623
      %v1625 = vpop.xlane.xlu0 %1624
      %v1626 = vsel %vm153, %v1617, -inf
      %1627 = vmax.xlane.f32.xlu0 %v1626
      %v1628 = vpop.xlane.xlu0 %1627
      %v1629 = vsub.f32 %v1461, %v1622
      %v1630 = vsub.f32 %v1539, %v1625
      %v1631 = vsub.f32 %v1617, %v1628
      %v1632 = vmul.f32 %v1629, 1.442695
      %v1633 = vpow.pop %v1632
      %v1634 = vmul.f32 %v1630, 1.442695
      %v1635 = vpow.pop %v1634
      %v1636 = vmul.f32 %v1631, 1.442695
      %v1637 = vpow.pop %v1636
      %v1638 = vsel %vm153, %v1633, 0.0
      %1639 = vadd.xlane.f32.xlu0 %v1638
      %v1640 = vpop.xlane.xlu0 %1639
      %v1641 = vsel %vm153, %v1635, 0.0
      %1642 = vadd.xlane.f32.xlu0 %v1641
      %v1643 = vpop.xlane.xlu0 %1642
      %v1644 = vsel %vm153, %v1637, 0.0
      %1645 = vadd.xlane.f32.xlu0 %v1644
      %v1646 = vpop.xlane.xlu0 %1645
      %v1647 = vrcp.pop %v1640
      %v1648 = vrcp.pop %v1643
      %v1649 = vrcp.pop %v1646
      %v1650 = vmul.f32 %v1633, %v1647
      %v1651 = vmul.f32 %v1635, %v1648
      %v1652 = vmul.f32 %v1637, %v1649
      %1653 = vrot.lane.b32.xlu0 %v386, 48
      %v1654 = vpop.permute.xlu0 %1653
      %v1657 = vsel %vm153, %v1650, 0
      %1659 = vmatprep.subr.mxu0 0.0
      %1660 = vmatpush1.msra.mxu0 %v1654
      %1661 = vmatprep.subr.mxu0 0.0
      %1662 = vmatpush1.msra.mxu0 0.0
      %1663 = vmatprep.subr.mxu0 0.0
      %1664 = vmatpush1.msra.mxu0 0.0
      %1665 = vmatprep.subr.mxu0 0.0
      %1666 = vmatpush1.msra.mxu0 0.0
      %1667 = vmatprep.subr.mxu0 0.0
      %1668 = vmatpush1.msra.mxu0 0.0
      %1669 = vmatprep.subr.mxu0 0.0
      %1670 = vmatpush1.msra.mxu0 0.0
      %1671 = vmatprep.subr.mxu0 0.0
      %1672 = vmatpush1.msra.mxu0 0.0
      %1673 = vmatprep.subr.mxu0 0.0
      %1674 = vmatpush1.msra.mxu0 0.0
      %1675 = vmatprep.subr.mxu0 0.0
      %1676 = vmatpush1.msra.mxu0 0.0
      %1677 = vmatprep.subr.mxu0 0.0
      %1678 = vmatpush1.msra.mxu0 0.0
      %1679 = vmatprep.subr.mxu0 0.0
      %1680 = vmatpush1.msra.mxu0 0.0
      %1681 = vmatprep.subr.mxu0 0.0
      %1682 = vmatpush1.msra.mxu0 0.0
      %1683 = vmatprep.subr.mxu0 0.0
      %1684 = vmatpush1.msra.mxu0 0.0
      %1685 = vmatprep.subr.mxu0 0.0
      %1686 = vmatpush1.msra.mxu0 0.0
      %1687 = vmatprep.subr.mxu0 0.0
      %1688 = vmatpush1.msra.mxu0 0.0
      %1689 = vmatprep.subr.mxu0 0.0
      %1690 = vmatpush1.msra.mxu0 0.0
      %1691 = vmatprep.subr.mxu0 0.0
      %1692 = vmatpush1.msra.mxu0 0.0
      %1693 = vmatprep.subr.mxu0 0.0
      %1694 = vmatpush1.msra.mxu0 0.0
      %1695 = vmatprep.subr.mxu0 0.0
      %1696 = vmatpush1.msra.mxu0 0.0
      %1697 = vmatprep.subr.mxu0 0.0
      %1698 = vmatpush1.msra.mxu0 0.0
      %1699 = vmatprep.subr.mxu0 0.0
      %1700 = vmatpush1.msra.mxu0 0.0
      %1701 = vmatprep.subr.mxu0 0.0
      %1702 = vmatpush1.msra.mxu0 0.0
      %1703 = vmatprep.subr.mxu0 0.0
      %1704 = vmatpush1.msra.mxu0 0.0
      %1705 = vmatprep.subr.mxu0 0.0
      %1706 = vmatpush1.msra.mxu0 0.0
      %1707 = vmatprep.subr.mxu0 0.0
      %1708 = vmatpush1.msra.mxu0 0.0
      %1709 = vmatprep.subr.mxu0 0.0
      %1710 = vmatpush1.msra.mxu0 0.0
      %1711 = vmatprep.subr.mxu0 0.0
      %1712 = vmatpush1.msra.mxu0 0.0
      %1713 = vmatprep.subr.mxu0 0.0
      %1714 = vmatpush1.msra.mxu0 0.0
      %1715 = vmatprep.subr.mxu0 0.0
      %1716 = vmatpush1.msra.mxu0 0.0
      %1717 = vmatprep.subr.mxu0 0.0
      %1718 = vmatpush1.msra.mxu0 0.0
      %1719 = vmatprep.subr.mxu0 0.0
      %1720 = vmatpush1.msra.mxu0 0.0
      %1721 = vmatprep.subr.mxu0 0.0
      %1722 = vmatpush1.msra.mxu0 0.0
      %1723 = vmatprep.mubr.f32.mxu0 0.0
      %1724 = vmatmul.mubr.f32.gmra.mrb[0].mxu0 %v1657
      %v1725 = vpop.f32.mrb[0].mxu0
      %v1726 = vadd.f32 0.0, %v1725
      %v1727 = vpop.f32.mrb[0].mxu0
      %1728 = vdwg.mxu0
      %1729 = vrot.lane.b32.xlu0 %v389, 48
      %v1730 = vpop.permute.xlu0 %1729
      %v1733 = vsel %vm153, %v1651, 0
      %1735 = vmatprep.subr.mxu0 0.0
      %1736 = vmatpush1.msra.mxu0 %v1730
      %1737 = vmatprep.subr.mxu0 0.0
      %1738 = vmatpush1.msra.mxu0 0.0
      %1739 = vmatprep.subr.mxu0 0.0
      %1740 = vmatpush1.msra.mxu0 0.0
      %1741 = vmatprep.subr.mxu0 0.0
      %1742 = vmatpush1.msra.mxu0 0.0
      %1743 = vmatprep.subr.mxu0 0.0
      %1744 = vmatpush1.msra.mxu0 0.0
      %1745 = vmatprep.subr.mxu0 0.0
      %1746 = vmatpush1.msra.mxu0 0.0
      %1747 = vmatprep.subr.mxu0 0.0
      %1748 = vmatpush1.msra.mxu0 0.0
      %1749 = vmatprep.subr.mxu0 0.0
      %1750 = vmatpush1.msra.mxu0 0.0
      %1751 = vmatprep.subr.mxu0 0.0
      %1752 = vmatpush1.msra.mxu0 0.0
      %1753 = vmatprep.subr.mxu0 0.0
      %1754 = vmatpush1.msra.mxu0 0.0
      %1755 = vmatprep.subr.mxu0 0.0
      %1756 = vmatpush1.msra.mxu0 0.0
      %1757 = vmatprep.subr.mxu0 0.0
      %1758 = vmatpush1.msra.mxu0 0.0
      %1759 = vmatprep.subr.mxu0 0.0
      %1760 = vmatpush1.msra.mxu0 0.0
      %1761 = vmatprep.subr.mxu0 0.0
      %1762 = vmatpush1.msra.mxu0 0.0
      %1763 = vmatprep.subr.mxu0 0.0
      %1764 = vmatpush1.msra.mxu0 0.0
      %1765 = vmatprep.subr.mxu0 0.0
      %1766 = vmatpush1.msra.mxu0 0.0
      %1767 = vmatprep.subr.mxu0 0.0
      %1768 = vmatpush1.msra.mxu0 0.0
      %1769 = vmatprep.subr.mxu0 0.0
      %1770 = vmatpush1.msra.mxu0 0.0
      %1771 = vmatprep.subr.mxu0 0.0
      %1772 = vmatpush1.msra.mxu0 0.0
      %1773 = vmatprep.subr.mxu0 0.0
      %1774 = vmatpush1.msra.mxu0 0.0
      %1775 = vmatprep.subr.mxu0 0.0
      %1776 = vmatpush1.msra.mxu0 0.0
      %1777 = vmatprep.subr.mxu0 0.0
      %1778 = vmatpush1.msra.mxu0 0.0
      %1779 = vmatprep.subr.mxu0 0.0
      %1780 = vmatpush1.msra.mxu0 0.0
      %1781 = vmatprep.subr.mxu0 0.0
      %1782 = vmatpush1.msra.mxu0 0.0
      %1783 = vmatprep.subr.mxu0 0.0
      %1784 = vmatpush1.msra.mxu0 0.0
      %1785 = vmatprep.subr.mxu0 0.0
      %1786 = vmatpush1.msra.mxu0 0.0
      %1787 = vmatprep.subr.mxu0 0.0
      %1788 = vmatpush1.msra.mxu0 0.0
      %1789 = vmatprep.subr.mxu0 0.0
      %1790 = vmatpush1.msra.mxu0 0.0
      %1791 = vmatprep.subr.mxu0 0.0
      %1792 = vmatpush1.msra.mxu0 0.0
      %1793 = vmatprep.subr.mxu0 0.0
      %1794 = vmatpush1.msra.mxu0 0.0
      %1795 = vmatprep.subr.mxu0 0.0
      %1796 = vmatpush1.msra.mxu0 0.0
      %1797 = vmatprep.subr.mxu0 0.0
      %1798 = vmatpush1.msra.mxu0 0.0
      %1799 = vmatprep.mubr.f32.mxu0 0.0
      %1800 = vmatmul.mubr.f32.gmra.mrb[0].mxu0 %v1733
      %v1801 = vpop.f32.mrb[0].mxu0
      %v1802 = vadd.f32 0.0, %v1801
      %v1803 = vpop.f32.mrb[0].mxu0
      %1804 = vdwg.mxu0
      %1805 = vrot.lane.b32.xlu0 %v394, 48
      %v1806 = vpop.permute.xlu0 %1805
      %v1809 = vsel %vm153, %v1652, 0
      %1811 = vmatprep.subr.mxu0 0.0
      %1812 = vmatpush1.msra.mxu0 %v1806
      %1813 = vmatprep.subr.mxu0 0.0
      %1814 = vmatpush1.msra.mxu0 0.0
      %1815 = vmatprep.subr.mxu0 0.0
      %1816 = vmatpush1.msra.mxu0 0.0
      %1817 = vmatprep.subr.mxu0 0.0
      %1818 = vmatpush1.msra.mxu0 0.0
      %1819 = vmatprep.subr.mxu0 0.0
      %1820 = vmatpush1.msra.mxu0 0.0
      %1821 = vmatprep.subr.mxu0 0.0
      %1822 = vmatpush1.msra.mxu0 0.0
      %1823 = vmatprep.subr.mxu0 0.0
      %1824 = vmatpush1.msra.mxu0 0.0
      %1825 = vmatprep.subr.mxu0 0.0
      %1826 = vmatpush1.msra.mxu0 0.0
      %1827 = vmatprep.subr.mxu0 0.0
      %1828 = vmatpush1.msra.mxu0 0.0
      %1829 = vmatprep.subr.mxu0 0.0
      %1830 = vmatpush1.msra.mxu0 0.0
      %1831 = vmatprep.subr.mxu0 0.0
      %1832 = vmatpush1.msra.mxu0 0.0
      %1833 = vmatprep.subr.mxu0 0.0
      %1834 = vmatpush1.msra.mxu0 0.0
      %1835 = vmatprep.subr.mxu0 0.0
      %1836 = vmatpush1.msra.mxu0 0.0
      %1837 = vmatprep.subr.mxu0 0.0
      %1838 = vmatpush1.msra.mxu0 0.0
      %1839 = vmatprep.subr.mxu0 0.0
      %1840 = vmatpush1.msra.mxu0 0.0
      %1841 = vmatprep.subr.mxu0 0.0
      %1842 = vmatpush1.msra.mxu0 0.0
      %1843 = vmatprep.subr.mxu0 0.0
      %1844 = vmatpush1.msra.mxu0 0.0
      %1845 = vmatprep.subr.mxu0 0.0
      %1846 = vmatpush1.msra.mxu0 0.0
      %1847 = vmatprep.subr.mxu0 0.0
      %1848 = vmatpush1.msra.mxu0 0.0
      %1849 = vmatprep.subr.mxu0 0.0
      %1850 = vmatpush1.msra.mxu0 0.0
      %1851 = vmatprep.subr.mxu0 0.0
      %1852 = vmatpush1.msra.mxu0 0.0
      %1853 = vmatprep.subr.mxu0 0.0
      %1854 = vmatpush1.msra.mxu0 0.0
      %1855 = vmatprep.subr.mxu0 0.0
      %1856 = vmatpush1.msra.mxu0 0.0
      %1857 = vmatprep.subr.mxu0 0.0
      %1858 = vmatpush1.msra.mxu0 0.0
      %1859 = vmatprep.subr.mxu0 0.0
      %1860 = vmatpush1.msra.mxu0 0.0
      %1861 = vmatprep.subr.mxu0 0.0
      %1862 = vmatpush1.msra.mxu0 0.0
      %1863 = vmatprep.subr.mxu0 0.0
      %1864 = vmatpush1.msra.mxu0 0.0
      %1865 = vmatprep.subr.mxu0 0.0
      %1866 = vmatpush1.msra.mxu0 0.0
      %1867 = vmatprep.subr.mxu0 0.0
      %1868 = vmatpush1.msra.mxu0 0.0
      %1869 = vmatprep.subr.mxu0 0.0
      %1870 = vmatpush1.msra.mxu0 0.0
      %1871 = vmatprep.subr.mxu0 0.0
      %1872 = vmatpush1.msra.mxu0 0.0
      %1873 = vmatprep.subr.mxu0 0.0
      %1874 = vmatpush1.msra.mxu0 0.0
      %1875 = vmatprep.mubr.f32.mxu0 0.0
      %1876 = vmatmul.mubr.f32.gmra.mrb[0].mxu0 %v1809
      %v1877 = vpop.f32.mrb[0].mxu0
      %v1878 = vadd.f32 0.0, %v1877
      %v1879 = vpop.f32.mrb[0].mxu0
      %1880 = vdwg.mxu0
      %1881 = vrot.lane.b32.xlu0 %v386, 104
      %v1882 = vpop.permute.xlu0 %1881
      %1883 = vrot.lane.b32.xlu0 %v386, 72
      %v1884 = vpop.permute.xlu0 %1883
      %v1885 = vsel %vm153, %v1882, 0
      %v1887 = vsel %vm153, %v1884, 0
      %1889 = vmatprep.subr.mxu0 0.0
      %1890 = vmatpush1.xpose.msra.mxu0 %v1887
      %1891 = vmatprep.subr.mxu0 0.0
      %1892 = vmatpush1.xpose.msra.mxu0 0.0
      %1893 = vmatprep.subr.mxu0 0.0
      %1894 = vmatpush1.xpose.msra.mxu0 0.0
      %1895 = vmatprep.subr.mxu0 0.0
      %1896 = vmatpush1.xpose.msra.mxu0 0.0
      %1897 = vmatprep.subr.mxu0 0.0
      %1898 = vmatpush1.xpose.msra.mxu0 0.0
      %1899 = vmatprep.subr.mxu0 0.0
      %1900 = vmatpush1.xpose.msra.mxu0 0.0
      %1901 = vmatprep.subr.mxu0 0.0
      %1902 = vmatpush1.xpose.msra.mxu0 0.0
      %1903 = vmatprep.subr.mxu0 0.0
      %1904 = vmatpush1.xpose.msra.mxu0 0.0
      %1905 = vmatprep.subr.mxu0 0.0
      %1906 = vmatpush1.xpose.msra.mxu0 0.0
      %1907 = vmatprep.subr.mxu0 0.0
      %1908 = vmatpush1.xpose.msra.mxu0 0.0
      %1909 = vmatprep.subr.mxu0 0.0
      %1910 = vmatpush1.xpose.msra.mxu0 0.0
      %1911 = vmatprep.subr.mxu0 0.0
      %1912 = vmatpush1.xpose.msra.mxu0 0.0
      %1913 = vmatprep.subr.mxu0 0.0
      %1914 = vmatpush1.xpose.msra.mxu0 0.0
      %1915 = vmatprep.subr.mxu0 0.0
      %1916 = vmatpush1.xpose.msra.mxu0 0.0
      %1917 = vmatprep.subr.mxu0 0.0
      %1918 = vmatpush1.xpose.msra.mxu0 0.0
      %1919 = vmatprep.subr.mxu0 0.0
      %1920 = vmatpush1.xpose.msra.mxu0 0.0
      %1921 = vmatprep.subr.mxu0 0.0
      %1922 = vmatpush1.xpose.msra.mxu0 0.0
      %1923 = vmatprep.subr.mxu0 0.0
      %1924 = vmatpush1.xpose.msra.mxu0 0.0
      %1925 = vmatprep.subr.mxu0 0.0
      %1926 = vmatpush1.xpose.msra.mxu0 0.0
      %1927 = vmatprep.subr.mxu0 0.0
      %1928 = vmatpush1.xpose.msra.mxu0 0.0
      %1929 = vmatprep.subr.mxu0 0.0
      %1930 = vmatpush1.xpose.msra.mxu0 0.0
      %1931 = vmatprep.subr.mxu0 0.0
      %1932 = vmatpush1.xpose.msra.mxu0 0.0
      %1933 = vmatprep.subr.mxu0 0.0
      %1934 = vmatpush1.xpose.msra.mxu0 0.0
      %1935 = vmatprep.subr.mxu0 0.0
      %1936 = vmatpush1.xpose.msra.mxu0 0.0
      %1937 = vmatprep.subr.mxu0 0.0
      %1938 = vmatpush1.xpose.msra.mxu0 0.0
      %1939 = vmatprep.subr.mxu0 0.0
      %1940 = vmatpush1.xpose.msra.mxu0 0.0
      %1941 = vmatprep.subr.mxu0 0.0
      %1942 = vmatpush1.xpose.msra.mxu0 0.0
      %1943 = vmatprep.subr.mxu0 0.0
      %1944 = vmatpush1.xpose.msra.mxu0 0.0
      %1945 = vmatprep.subr.mxu0 0.0
      %1946 = vmatpush1.xpose.msra.mxu0 0.0
      %1947 = vmatprep.subr.mxu0 0.0
      %1948 = vmatpush1.xpose.msra.mxu0 0.0
      %1949 = vmatprep.subr.mxu0 0.0
      %1950 = vmatpush1.xpose.msra.mxu0 0.0
      %1951 = vmatprep.subr.mxu0 0.0
      %1952 = vmatpush1.xpose.msra.mxu0 0.0
      %1953 = vmatprep.mubr.f32.mxu0 0.0
      %1954 = vmatmul.mubr.f32.gmra.mrb[0].mxu0 %v1885
      %v1955 = vpop.f32.mrb[0].mxu0
      %v1956 = vadd.f32 %v317, %v1955
      %v1957 = vpop.f32.mrb[0].mxu0
      %1958 = vdwg.mxu0
      %1959 = vrot.lane.b32.xlu0 %v389, 104
      %v1960 = vpop.permute.xlu0 %1959
      %1961 = vrot.lane.b32.xlu0 %v389, 72
      %v1962 = vpop.permute.xlu0 %1961
      %v1963 = vsel %vm153, %v1960, 0
      %v1965 = vsel %vm153, %v1962, 0
      %1967 = vmatprep.subr.mxu0 0.0
      %1968 = vmatpush1.xpose.msra.mxu0 %v1965
      %1969 = vmatprep.subr.mxu0 0.0
      %1970 = vmatpush1.xpose.msra.mxu0 0.0
      %1971 = vmatprep.subr.mxu0 0.0
      %1972 = vmatpush1.xpose.msra.mxu0 0.0
      %1973 = vmatprep.subr.mxu0 0.0
      %1974 = vmatpush1.xpose.msra.mxu0 0.0
      %1975 = vmatprep.subr.mxu0 0.0
      %1976 = vmatpush1.xpose.msra.mxu0 0.0
      %1977 = vmatprep.subr.mxu0 0.0
      %1978 = vmatpush1.xpose.msra.mxu0 0.0
      %1979 = vmatprep.subr.mxu0 0.0
      %1980 = vmatpush1.xpose.msra.mxu0 0.0
      %1981 = vmatprep.subr.mxu0 0.0
      %1982 = vmatpush1.xpose.msra.mxu0 0.0
      %1983 = vmatprep.subr.mxu0 0.0
      %1984 = vmatpush1.xpose.msra.mxu0 0.0
      %1985 = vmatprep.subr.mxu0 0.0
      %1986 = vmatpush1.xpose.msra.mxu0 0.0
      %1987 = vmatprep.subr.mxu0 0.0
      %1988 = vmatpush1.xpose.msra.mxu0 0.0
      %1989 = vmatprep.subr.mxu0 0.0
      %1990 = vmatpush1.xpose.msra.mxu0 0.0
      %1991 = vmatprep.subr.mxu0 0.0
      %1992 = vmatpush1.xpose.msra.mxu0 0.0
      %1993 = vmatprep.subr.mxu0 0.0
      %1994 = vmatpush1.xpose.msra.mxu0 0.0
      %1995 = vmatprep.subr.mxu0 0.0
      %1996 = vmatpush1.xpose.msra.mxu0 0.0
      %1997 = vmatprep.subr.mxu0 0.0
      %1998 = vmatpush1.xpose.msra.mxu0 0.0
      %1999 = vmatprep.subr.mxu0 0.0
      %2000 = vmatpush1.xpose.msra.mxu0 0.0
      %2001 = vmatprep.subr.mxu0 0.0
      %2002 = vmatpush1.xpose.msra.mxu0 0.0
      %2003 = vmatprep.subr.mxu0 0.0
      %2004 = vmatpush1.xpose.msra.mxu0 0.0
      %2005 = vmatprep.subr.mxu0 0.0
      %2006 = vmatpush1.xpose.msra.mxu0 0.0
      %2007 = vmatprep.subr.mxu0 0.0
      %2008 = vmatpush1.xpose.msra.mxu0 0.0
      %2009 = vmatprep.subr.mxu0 0.0
      %2010 = vmatpush1.xpose.msra.mxu0 0.0
      %2011 = vmatprep.subr.mxu0 0.0
      %2012 = vmatpush1.xpose.msra.mxu0 0.0
      %2013 = vmatprep.subr.mxu0 0.0
      %2014 = vmatpush1.xpose.msra.mxu0 0.0
      %2015 = vmatprep.subr.mxu0 0.0
      %2016 = vmatpush1.xpose.msra.mxu0 0.0
      %2017 = vmatprep.subr.mxu0 0.0
      %2018 = vmatpush1.xpose.msra.mxu0 0.0
      %2019 = vmatprep.subr.mxu0 0.0
      %2020 = vmatpush1.xpose.msra.mxu0 0.0
      %2021 = vmatprep.subr.mxu0 0.0
      %2022 = vmatpush1.xpose.msra.mxu0 0.0
      %2023 = vmatprep.subr.mxu0 0.0
      %2024 = vmatpush1.xpose.msra.mxu0 0.0
      %2025 = vmatprep.subr.mxu0 0.0
      %2026 = vmatpush1.xpose.msra.mxu0 0.0
      %2027 = vmatprep.subr.mxu0 0.0
      %2028 = vmatpush1.xpose.msra.mxu0 0.0
      %2029 = vmatprep.subr.mxu0 0.0
      %2030 = vmatpush1.xpose.msra.mxu0 0.0
      %2031 = vmatprep.mubr.f32.mxu0 0.0
      %2032 = vmatmul.mubr.f32.gmra.mrb[0].mxu0 %v1963
      %v2033 = vpop.f32.mrb[0].mxu0
      %v2034 = vadd.f32 %v318, %v2033
      %v2035 = vpop.f32.mrb[0].mxu0
      %2036 = vdwg.mxu0
      %2037 = vrot.lane.b32.xlu0 %v394, 104
      %v2038 = vpop.permute.xlu0 %2037
      %2039 = vrot.lane.b32.xlu0 %v394, 72
      %v2040 = vpop.permute.xlu0 %2039
      %v2041 = vsel %vm153, %v2038, 0
      %v2043 = vsel %vm153, %v2040, 0
      %2045 = vmatprep.subr.mxu0 0.0
      %2046 = vmatpush1.xpose.msra.mxu0 %v2043
      %2047 = vmatprep.subr.mxu0 0.0
      %2048 = vmatpush1.xpose.msra.mxu0 0.0
      %2049 = vmatprep.subr.mxu0 0.0
      %2050 = vmatpush1.xpose.msra.mxu0 0.0
      %2051 = vmatprep.subr.mxu0 0.0
      %2052 = vmatpush1.xpose.msra.mxu0 0.0
      %2053 = vmatprep.subr.mxu0 0.0
      %2054 = vmatpush1.xpose.msra.mxu0 0.0
      %2055 = vmatprep.subr.mxu0 0.0
      %2056 = vmatpush1.xpose.msra.mxu0 0.0
      %2057 = vmatprep.subr.mxu0 0.0
      %2058 = vmatpush1.xpose.msra.mxu0 0.0
      %2059 = vmatprep.subr.mxu0 0.0
      %2060 = vmatpush1.xpose.msra.mxu0 0.0
      %2061 = vmatprep.subr.mxu0 0.0
      %2062 = vmatpush1.xpose.msra.mxu0 0.0
      %2063 = vmatprep.subr.mxu0 0.0
      %2064 = vmatpush1.xpose.msra.mxu0 0.0
      %2065 = vmatprep.subr.mxu0 0.0
      %2066 = vmatpush1.xpose.msra.mxu0 0.0
      %2067 = vmatprep.subr.mxu0 0.0
      %2068 = vmatpush1.xpose.msra.mxu0 0.0
      %2069 = vmatprep.subr.mxu0 0.0
      %2070 = vmatpush1.xpose.msra.mxu0 0.0
      %2071 = vmatprep.subr.mxu0 0.0
      %2072 = vmatpush1.xpose.msra.mxu0 0.0
      %2073 = vmatprep.subr.mxu0 0.0
      %2074 = vmatpush1.xpose.msra.mxu0 0.0
      %2075 = vmatprep.subr.mxu0 0.0
      %2076 = vmatpush1.xpose.msra.mxu0 0.0
      %2077 = vmatprep.subr.mxu0 0.0
      %2078 = vmatpush1.xpose.msra.mxu0 0.0
      %2079 = vmatprep.subr.mxu0 0.0
      %2080 = vmatpush1.xpose.msra.mxu0 0.0
      %2081 = vmatprep.subr.mxu0 0.0
      %2082 = vmatpush1.xpose.msra.mxu0 0.0
      %2083 = vmatprep.subr.mxu0 0.0
      %2084 = vmatpush1.xpose.msra.mxu0 0.0
      %2085 = vmatprep.subr.mxu0 0.0
      %2086 = vmatpush1.xpose.msra.mxu0 0.0
      %2087 = vmatprep.subr.mxu0 0.0
      %2088 = vmatpush1.xpose.msra.mxu0 0.0
      %2089 = vmatprep.subr.mxu0 0.0
      %2090 = vmatpush1.xpose.msra.mxu0 0.0
      %2091 = vmatprep.subr.mxu0 0.0
      %2092 = vmatpush1.xpose.msra.mxu0 0.0
      %2093 = vmatprep.subr.mxu0 0.0
      %2094 = vmatpush1.xpose.msra.mxu0 0.0
      %2095 = vmatprep.subr.mxu0 0.0
      %2096 = vmatpush1.xpose.msra.mxu0 0.0
      %2097 = vmatprep.subr.mxu0 0.0
      %2098 = vmatpush1.xpose.msra.mxu0 0.0
      %2099 = vmatprep.subr.mxu0 0.0
      %2100 = vmatpush1.xpose.msra.mxu0 0.0
      %2101 = vmatprep.subr.mxu0 0.0
      %2102 = vmatpush1.xpose.msra.mxu0 0.0
      %2103 = vmatprep.subr.mxu0 0.0
      %2104 = vmatpush1.xpose.msra.mxu0 0.0
      %2105 = vmatprep.subr.mxu0 0.0
      %2106 = vmatpush1.xpose.msra.mxu0 0.0
      %2107 = vmatprep.subr.mxu0 0.0
      %2108 = vmatpush1.xpose.msra.mxu0 0.0
      %2109 = vmatprep.mubr.f32.mxu0 0.0
      %2110 = vmatmul.mubr.f32.gmra.mrb[0].mxu0 %v2041
      %v2111 = vpop.f32.mrb[0].mxu0
      %v2112 = vadd.f32 %v319, %v2111
      %v2113 = vpop.f32.mrb[0].mxu0
      %2114 = vdwg.mxu0
      %v2115 = vsel %vm153, %v1956, -inf
      %2116 = vmax.xlane.f32.xlu0 %v2115
      %v2117 = vpop.xlane.xlu0 %2116
      %v2118 = vsel %vm153, %v2034, -inf
      %2119 = vmax.xlane.f32.xlu0 %v2118
      %v2120 = vpop.xlane.xlu0 %2119
      %v2121 = vsel %vm153, %v2112, -inf
      %2122 = vmax.xlane.f32.xlu0 %v2121
      %v2123 = vpop.xlane.xlu0 %2122
      %v2124 = vsub.f32 %v1956, %v2117
      %v2125 = vsub.f32 %v2034, %v2120
      %v2126 = vsub.f32 %v2112, %v2123
      %v2127 = vmul.f32 %v2124, 1.442695
      %v2128 = vpow.pop %v2127
      %v2129 = vmul.f32 %v2125, 1.442695
      %v2130 = vpow.pop %v2129
      %v2131 = vmul.f32 %v2126, 1.442695
      %v2132 = vpow.pop %v2131
      %v2133 = vsel %vm153, %v2128, 0.0
      %2134 = vadd.xlane.f32.xlu0 %v2133
      %v2135 = vpop.xlane.xlu0 %2134
      %v2136 = vsel %vm153, %v2130, 0.0
      %2137 = vadd.xlane.f32.xlu0 %v2136
      %v2138 = vpop.xlane.xlu0 %2137
      %v2139 = vsel %vm153, %v2132, 0.0
      %2140 = vadd.xlane.f32.xlu0 %v2139
      %v2141 = vpop.xlane.xlu0 %2140
      %v2142 = vrcp.pop %v2135
      %v2143 = vrcp.pop %v2138
      %v2144 = vrcp.pop %v2141
      %v2145 = vmul.f32 %v2128, %v2142
      %v2146 = vmul.f32 %v2130, %v2143
      %v2147 = vmul.f32 %v2132, %v2144
      %2148 = vrot.lane.b32.xlu0 %v386, 40
      %v2149 = vpop.permute.xlu0 %2148
      %v2152 = vsel %vm153, %v2145, 0
      %2154 = vmatprep.subr.mxu0 0.0
      %2155 = vmatpush1.msra.mxu0 %v2149
      %2156 = vmatprep.subr.mxu0 0.0
      %2157 = vmatpush1.msra.mxu0 0.0
      %2158 = vmatprep.subr.mxu0 0.0
      %2159 = vmatpush1.msra.mxu0 0.0
      %2160 = vmatprep.subr.mxu0 0.0
      %2161 = vmatpush1.msra.mxu0 0.0
      %2162 = vmatprep.subr.mxu0 0.0
      %2163 = vmatpush1.msra.mxu0 0.0
      %2164 = vmatprep.subr.mxu0 0.0
      %2165 = vmatpush1.msra.mxu0 0.0
      %2166 = vmatprep.subr.mxu0 0.0
      %2167 = vmatpush1.msra.mxu0 0.0
      %2168 = vmatprep.subr.mxu0 0.0
      %2169 = vmatpush1.msra.mxu0 0.0
      %2170 = vmatprep.subr.mxu0 0.0
      %2171 = vmatpush1.msra.mxu0 0.0
      %2172 = vmatprep.subr.mxu0 0.0
      %2173 = vmatpush1.msra.mxu0 0.0
      %2174 = vmatprep.subr.mxu0 0.0
      %2175 = vmatpush1.msra.mxu0 0.0
      %2176 = vmatprep.subr.mxu0 0.0
      %2177 = vmatpush1.msra.mxu0 0.0
      %2178 = vmatprep.subr.mxu0 0.0
      %2179 = vmatpush1.msra.mxu0 0.0
      %2180 = vmatprep.subr.mxu0 0.0
      %2181 = vmatpush1.msra.mxu0 0.0
      %2182 = vmatprep.subr.mxu0 0.0
      %2183 = vmatpush1.msra.mxu0 0.0
      %2184 = vmatprep.subr.mxu0 0.0
      %2185 = vmatpush1.msra.mxu0 0.0
      %2186 = vmatprep.subr.mxu0 0.0
      %2187 = vmatpush1.msra.mxu0 0.0
      %2188 = vmatprep.subr.mxu0 0.0
      %2189 = vmatpush1.msra.mxu0 0.0
      %2190 = vmatprep.subr.mxu0 0.0
      %2191 = vmatpush1.msra.mxu0 0.0
      %2192 = vmatprep.subr.mxu0 0.0
      %2193 = vmatpush1.msra.mxu0 0.0
      %2194 = vmatprep.subr.mxu0 0.0
      %2195 = vmatpush1.msra.mxu0 0.0
      %2196 = vmatprep.subr.mxu0 0.0
      %2197 = vmatpush1.msra.mxu0 0.0
      %2198 = vmatprep.subr.mxu0 0.0
      %2199 = vmatpush1.msra.mxu0 0.0
      %2200 = vmatprep.subr.mxu0 0.0
      %2201 = vmatpush1.msra.mxu0 0.0
      %2202 = vmatprep.subr.mxu0 0.0
      %2203 = vmatpush1.msra.mxu0 0.0
      %2204 = vmatprep.subr.mxu0 0.0
      %2205 = vmatpush1.msra.mxu0 0.0
      %2206 = vmatprep.subr.mxu0 0.0
      %2207 = vmatpush1.msra.mxu0 0.0
      %2208 = vmatprep.subr.mxu0 0.0
      %2209 = vmatpush1.msra.mxu0 0.0
      %2210 = vmatprep.subr.mxu0 0.0
      %2211 = vmatpush1.msra.mxu0 0.0
      %2212 = vmatprep.subr.mxu0 0.0
      %2213 = vmatpush1.msra.mxu0 0.0
      %2214 = vmatprep.subr.mxu0 0.0
      %2215 = vmatpush1.msra.mxu0 0.0
      %2216 = vmatprep.subr.mxu0 0.0
      %2217 = vmatpush1.msra.mxu0 0.0
      %2218 = vmatprep.mubr.f32.mxu0 0.0
      %2219 = vmatmul.mubr.f32.gmra.mrb[0].mxu0 %v2152
      %v2220 = vpop.f32.mrb[0].mxu0
      %v2221 = vadd.f32 0.0, %v2220
      %v2222 = vpop.f32.mrb[0].mxu0
      %2223 = vdwg.mxu0
      %2224 = vrot.lane.b32.xlu0 %v389, 40
      %v2225 = vpop.permute.xlu0 %2224
      %v2228 = vsel %vm153, %v2146, 0
      %2230 = vmatprep.subr.mxu0 0.0
      %2231 = vmatpush1.msra.mxu0 %v2225
      %2232 = vmatprep.subr.mxu0 0.0
      %2233 = vmatpush1.msra.mxu0 0.0
      %2234 = vmatprep.subr.mxu0 0.0
      %2235 = vmatpush1.msra.mxu0 0.0
      %2236 = vmatprep.subr.mxu0 0.0
      %2237 = vmatpush1.msra.mxu0 0.0
      %2238 = vmatprep.subr.mxu0 0.0
      %2239 = vmatpush1.msra.mxu0 0.0
      %2240 = vmatprep.subr.mxu0 0.0
      %2241 = vmatpush1.msra.mxu0 0.0
      %2242 = vmatprep.subr.mxu0 0.0
      %2243 = vmatpush1.msra.mxu0 0.0
      %2244 = vmatprep.subr.mxu0 0.0
      %2245 = vmatpush1.msra.mxu0 0.0
      %2246 = vmatprep.subr.mxu0 0.0
      %2247 = vmatpush1.msra.mxu0 0.0
      %2248 = vmatprep.subr.mxu0 0.0
      %2249 = vmatpush1.msra.mxu0 0.0
      %2250 = vmatprep.subr.mxu0 0.0
      %2251 = vmatpush1.msra.mxu0 0.0
      %2252 = vmatprep.subr.mxu0 0.0
      %2253 = vmatpush1.msra.mxu0 0.0
      %2254 = vmatprep.subr.mxu0 0.0
      %2255 = vmatpush1.msra.mxu0 0.0
      %2256 = vmatprep.subr.mxu0 0.0
      %2257 = vmatpush1.msra.mxu0 0.0
      %2258 = vmatprep.subr.mxu0 0.0
      %2259 = vmatpush1.msra.mxu0 0.0
      %2260 = vmatprep.subr.mxu0 0.0
      %2261 = vmatpush1.msra.mxu0 0.0
      %2262 = vmatprep.subr.mxu0 0.0
      %2263 = vmatpush1.msra.mxu0 0.0
      %2264 = vmatprep.subr.mxu0 0.0
      %2265 = vmatpush1.msra.mxu0 0.0
      %2266 = vmatprep.subr.mxu0 0.0
      %2267 = vmatpush1.msra.mxu0 0.0
      %2268 = vmatprep.subr.mxu0 0.0
      %2269 = vmatpush1.msra.mxu0 0.0
      %2270 = vmatprep.subr.mxu0 0.0
      %2271 = vmatpush1.msra.mxu0 0.0
      %2272 = vmatprep.subr.mxu0 0.0
      %2273 = vmatpush1.msra.mxu0 0.0
      %2274 = vmatprep.subr.mxu0 0.0
      %2275 = vmatpush1.msra.mxu0 0.0
      %2276 = vmatprep.subr.mxu0 0.0
      %2277 = vmatpush1.msra.mxu0 0.0
      %2278 = vmatprep.subr.mxu0 0.0
      %2279 = vmatpush1.msra.mxu0 0.0
      %2280 = vmatprep.subr.mxu0 0.0
      %2281 = vmatpush1.msra.mxu0 0.0
      %2282 = vmatprep.subr.mxu0 0.0
      %2283 = vmatpush1.msra.mxu0 0.0
      %2284 = vmatprep.subr.mxu0 0.0
      %2285 = vmatpush1.msra.mxu0 0.0
      %2286 = vmatprep.subr.mxu0 0.0
      %2287 = vmatpush1.msra.mxu0 0.0
      %2288 = vmatprep.subr.mxu0 0.0
      %2289 = vmatpush1.msra.mxu0 0.0
      %2290 = vmatprep.subr.mxu0 0.0
      %2291 = vmatpush1.msra.mxu0 0.0
      %2292 = vmatprep.subr.mxu0 0.0
      %2293 = vmatpush1.msra.mxu0 0.0
      %2294 = vmatprep.mubr.f32.mxu0 0.0
      %2295 = vmatmul.mubr.f32.gmra.mrb[0].mxu0 %v2228
      %v2296 = vpop.f32.mrb[0].mxu0
      %v2297 = vadd.f32 0.0, %v2296
      %v2298 = vpop.f32.mrb[0].mxu0
      %2299 = vdwg.mxu0
      %2300 = vrot.lane.b32.xlu0 %v394, 40
      %v2301 = vpop.permute.xlu0 %2300
      %v2304 = vsel %vm153, %v2147, 0
      %2306 = vmatprep.subr.mxu0 0.0
      %2307 = vmatpush1.msra.mxu0 %v2301
      %2308 = vmatprep.subr.mxu0 0.0
      %2309 = vmatpush1.msra.mxu0 0.0
      %2310 = vmatprep.subr.mxu0 0.0
      %2311 = vmatpush1.msra.mxu0 0.0
      %2312 = vmatprep.subr.mxu0 0.0
      %2313 = vmatpush1.msra.mxu0 0.0
      %2314 = vmatprep.subr.mxu0 0.0
      %2315 = vmatpush1.msra.mxu0 0.0
      %2316 = vmatprep.subr.mxu0 0.0
      %2317 = vmatpush1.msra.mxu0 0.0
      %2318 = vmatprep.subr.mxu0 0.0
      %2319 = vmatpush1.msra.mxu0 0.0
      %2320 = vmatprep.subr.mxu0 0.0
      %2321 = vmatpush1.msra.mxu0 0.0
      %2322 = vmatprep.subr.mxu0 0.0
      %2323 = vmatpush1.msra.mxu0 0.0
      %2324 = vmatprep.subr.mxu0 0.0
      %2325 = vmatpush1.msra.mxu0 0.0
      %2326 = vmatprep.subr.mxu0 0.0
      %2327 = vmatpush1.msra.mxu0 0.0
      %2328 = vmatprep.subr.mxu0 0.0
      %2329 = vmatpush1.msra.mxu0 0.0
      %2330 = vmatprep.subr.mxu0 0.0
      %2331 = vmatpush1.msra.mxu0 0.0
      %2332 = vmatprep.subr.mxu0 0.0
      %2333 = vmatpush1.msra.mxu0 0.0
      %2334 = vmatprep.subr.mxu0 0.0
      %2335 = vmatpush1.msra.mxu0 0.0
      %2336 = vmatprep.subr.mxu0 0.0
      %2337 = vmatpush1.msra.mxu0 0.0
      %2338 = vmatprep.subr.mxu0 0.0
      %2339 = vmatpush1.msra.mxu0 0.0
      %2340 = vmatprep.subr.mxu0 0.0
      %2341 = vmatpush1.msra.mxu0 0.0
      %2342 = vmatprep.subr.mxu0 0.0
      %2343 = vmatpush1.msra.mxu0 0.0
      %2344 = vmatprep.subr.mxu0 0.0
      %2345 = vmatpush1.msra.mxu0 0.0
      %2346 = vmatprep.subr.mxu0 0.0
      %2347 = vmatpush1.msra.mxu0 0.0
      %2348 = vmatprep.subr.mxu0 0.0
      %2349 = vmatpush1.msra.mxu0 0.0
      %2350 = vmatprep.subr.mxu0 0.0
      %2351 = vmatpush1.msra.mxu0 0.0
      %2352 = vmatprep.subr.mxu0 0.0
      %2353 = vmatpush1.msra.mxu0 0.0
      %2354 = vmatprep.subr.mxu0 0.0
      %2355 = vmatpush1.msra.mxu0 0.0
      %2356 = vmatprep.subr.mxu0 0.0
      %2357 = vmatpush1.msra.mxu0 0.0
      %2358 = vmatprep.subr.mxu0 0.0
      %2359 = vmatpush1.msra.mxu0 0.0
      %2360 = vmatprep.subr.mxu0 0.0
      %2361 = vmatpush1.msra.mxu0 0.0
      %2362 = vmatprep.subr.mxu0 0.0
      %2363 = vmatpush1.msra.mxu0 0.0
      %2364 = vmatprep.subr.mxu0 0.0
      %2365 = vmatpush1.msra.mxu0 0.0
      %2366 = vmatprep.subr.mxu0 0.0
      %2367 = vmatpush1.msra.mxu0 0.0
      %2368 = vmatprep.subr.mxu0 0.0
      %2369 = vmatpush1.msra.mxu0 0.0
      %2370 = vmatprep.mubr.f32.mxu0 0.0
      %2371 = vmatmul.mubr.f32.gmra.mrb[0].mxu0 %v2304
      %v2372 = vpop.f32.mrb[0].mxu0
      %v2373 = vadd.f32 0.0, %v2372
      %v2374 = vpop.f32.mrb[0].mxu0
      %2375 = vdwg.mxu0
      %2379 = vrot.lane.b32.xlu0 %v1231, 8
      %v2380 = vpop.permute.xlu0 %2379
      %2381 = vrot.lane.b32.xlu0 %v1307, 8
      %v2382 = vpop.permute.xlu0 %2381
      %2383 = vrot.lane.b32.xlu0 %v1383, 8
      %v2384 = vpop.permute.xlu0 %2383
      %2391 = vrot.lane.b32.xlu0 %v1726, 16
      %v2392 = vpop.permute.xlu0 %2391
      %2393 = vrot.lane.b32.xlu0 %v1802, 16
      %v2394 = vpop.permute.xlu0 %2393
      %2395 = vrot.lane.b32.xlu0 %v1878, 16
      %v2396 = vpop.permute.xlu0 %2395
      %2403 = vrot.lane.b32.xlu0 %v2221, 24
      %v2404 = vpop.permute.xlu0 %2403
      %2405 = vrot.lane.b32.xlu0 %v2297, 24
      %v2406 = vpop.permute.xlu0 %2405
      %2407 = vrot.lane.b32.xlu0 %v2373, 24
      %v2408 = vpop.permute.xlu0 %2407
      %v2412 = vsel %vm153, %v736, %v2380
      %v2413 = vsel %vm153, %v812, %v2382
      %v2414 = vsel %vm153, %v888, %v2384
      %vm2415 = vcmask 130048
      %v2416 = vsel %vm2415, %v2412, %v2392
      %v2417 = vsel %vm2415, %v2413, %v2394
      %v2418 = vsel %vm2415, %v2414, %v2396
      %vm2419 = vcmask 195584
      %v2420 = vsel %vm2419, %v2416, %v2404
      %v2421 = vsel %vm2419, %v2417, %v2406
      %v2422 = vsel %vm2419, %v2418, %v2408
      %v2423 = vpack.c.bf16 %v2421, %v2420
      %v2424 = vpack.c.bf16 %v2422, %v2422
      %v2425 = vld [vmem:[%s1 + $0x48] sm:$0xff]
      %v2426 = vld [vmem:[%s1 + $0x50] sm:$0xff]
      %v2427 = vld [vmem:[%s1 + $0x58] sm:$0xff]
      %v2428 = vld [vmem:[%s1 + $0x60] sm:$0xff]
      %v2429 = vpack.c.bf16 %v2426, %v2425
      %v2430 = vpack.c.bf16 %v2428, %v2427
      %v2431 = vld [vmem:[%s1 + $0x68] sm:$0x1]
      %v2432 = vlaneseq
      %v2433 = vshrl.u32 %v2432, 7
      %v2434 = vsub.s32 0, %v2433
      %v2435 = vrot.slane %v2431, %v2434
      %v2437 = vsel %vm214, %v2423, 0
      %v2440 = vsel %vm214, %v2424, 0
      %2442 = vmatprep.subr.bf16.mxu0 0
      %2443 = vmatpush1.bf16.msra.mxu0 %v2429
      %2444 = vmatprep.subr.bf16.mxu0 0
      %2445 = vmatpush1.bf16.msra.mxu0 %v2430
      %2446 = vmatprep.subr.bf16.mxu0 0
      %2447 = vmatpush1.bf16.msra.mxu0 0
      %2448 = vmatprep.subr.bf16.mxu0 0
      %2449 = vmatpush1.bf16.msra.mxu0 0
      %2450 = vmatprep.subr.bf16.mxu0 0
      %2451 = vmatpush1.bf16.msra.mxu0 0
      %2452 = vmatprep.subr.bf16.mxu0 0
      %2453 = vmatpush1.bf16.msra.mxu0 0
      %2454 = vmatprep.subr.bf16.mxu0 0
      %2455 = vmatpush1.bf16.msra.mxu0 0
      %2456 = vmatprep.subr.bf16.mxu0 0
      %2457 = vmatpush1.bf16.msra.mxu0 0
      %2458 = vmatprep.subr.bf16.mxu0 0
      %2459 = vmatpush1.bf16.msra.mxu0 0
      %2460 = vmatprep.subr.bf16.mxu0 0
      %2461 = vmatpush1.bf16.msra.mxu0 0
      %2462 = vmatprep.subr.bf16.mxu0 0
      %2463 = vmatpush1.bf16.msra.mxu0 0
      %2464 = vmatprep.subr.bf16.mxu0 0
      %2465 = vmatpush1.bf16.msra.mxu0 0
      %2466 = vmatprep.subr.bf16.mxu0 0
      %2467 = vmatpush1.bf16.msra.mxu0 0
      %2468 = vmatprep.subr.bf16.mxu0 0
      %2469 = vmatpush1.bf16.msra.mxu0 0
      %2470 = vmatprep.subr.bf16.mxu0 0
      %2471 = vmatpush1.bf16.msra.mxu0 0
      %2472 = vmatprep.subr.bf16.mxu0 0
      %2473 = vmatpush1.bf16.msra.mxu0 0
      %2474 = vmatprep.mubr.bf16.mxu0 0
      %2475 = vmatmul.mubr.bf16.gmra.mrb[0].mxu0 %v2437
      %v2476 = vpop.f32.mrb[0].mxu0
      %v2477 = vadd.f32 %v2435, %v2476
      %v2478 = vpop.f32.mrb[0].mxu0
      %v2479 = vpop.f32.mrb[0].mxu0
      %v2480 = vadd.f32 %v2435, %v2479
      %v2481 = vpop.f32.mrb[0].mxu0
      %2482 = vmatprep.mubr.bf16.mxu0 0
      %2483 = vmatmul.mubr.bf16.gmra.mrb[0].mxu0 %v2440
      %v2484 = vpop.f32.mrb[0].mxu0
      %v2485 = vadd.f32 %v2435, %v2484
      %v2486 = vpop.f32.mrb[0].mxu0
      %v2487 = vpop.f32.mrb[0].mxu0
      %v2488 = vpop.f32.mrb[0].mxu0
      %2489 = vdwg.mxu0
      %v2490 = vadd.f32 %v293, %v2477
      %v2491 = vadd.f32 %v294, %v2480
      %v2492 = vadd.f32 %v295, %v2485
      %v2493 = vld [vmem:[%s1 + $0x70] sm:$0x1]
      %v2494 = vld [vmem:[%s1 + $0x78] sm:$0x1]
      %v2495 = vsel %vm214, %v2490, 0.0
      %2496 = vadd.xlane.f32.xlu0 %v2495
      %v2497 = vpop.xlane.xlu0 %2496
      %v2498 = vsel %vm214, %v2491, 0.0
      %2499 = vadd.xlane.f32.xlu0 %v2498
      %v2500 = vpop.xlane.xlu0 %2499
      %v2501 = vsel %vm214, %v2492, 0.0
      %2502 = vadd.xlane.f32.xlu0 %v2501
      %v2503 = vpop.xlane.xlu0 %2502
      %v2504 = vmul.f32 %v2497, %v224
      %v2505 = vmul.f32 %v2500, %v224
      %v2506 = vmul.f32 %v2503, %v224
      %v2507 = vsub.f32 %v2490, %v2504
      %v2508 = vsub.f32 %v2491, %v2505
      %v2509 = vsub.f32 %v2492, %v2506
      %v2510 = vmul.f32 %v2507, %v2507
      %v2511 = vmul.f32 %v2508, %v2508
      %v2512 = vmul.f32 %v2509, %v2509
      %v2513 = vsel %vm214, %v2510, 0.0
      %2514 = vadd.xlane.f32.xlu0 %v2513
      %v2515 = vpop.xlane.xlu0 %2514
      %v2516 = vsel %vm214, %v2511, 0.0
      %2517 = vadd.xlane.f32.xlu0 %v2516
      %v2518 = vpop.xlane.xlu0 %2517
      %v2519 = vsel %vm214, %v2512, 0.0
      %2520 = vadd.xlane.f32.xlu0 %v2519
      %v2521 = vpop.xlane.xlu0 %2520
      %v2522 = vmul.f32 %v2515, %v224
      %v2523 = vmul.f32 %v2518, %v224
      %v2524 = vmul.f32 %v2521, %v224
      %v2525 = vadd.f32 %v2522, 1e-05
      %v2526 = vadd.f32 %v2523, 1e-05
      %v2527 = vadd.f32 %v2524, 1e-05
      %v2528 = vrsqrt.pop %v2525
      %v2529 = vrsqrt.pop %v2526
      %v2530 = vrsqrt.pop %v2527
      %v2531 = vmul.f32 %v2507, %v2528
      %v2532 = vmul.f32 %v2508, %v2529
      %v2533 = vmul.f32 %v2509, %v2530
      %v2534 = vlaneseq
      %v2535 = vshrl.u32 %v2534, 7
      %v2536 = vsub.s32 0, %v2535
      %v2537 = vrot.slane %v2493, %v2536
      %v2538 = vmul.f32 %v2531, %v2537
      %v2539 = vmul.f32 %v2532, %v2537
      %v2540 = vmul.f32 %v2533, %v2537
      %v2541 = vlaneseq
      %v2542 = vshrl.u32 %v2541, 7
      %v2543 = vsub.s32 0, %v2542
      %v2544 = vrot.slane %v2494, %v2543
      %v2545 = vadd.f32 %v2538, %v2544
      %v2546 = vadd.f32 %v2539, %v2544
      %v2547 = vadd.f32 %v2540, %v2544
      %v2548 = vpack.c.bf16 %v2546, %v2545
      %v2549 = vpack.c.bf16 %v2547, %v2547
      %v2550 = vld [vmem:[%s1 + $0x80] sm:$0xff]
      %v2551 = vld [vmem:[%s1 + $0x88] sm:$0xff]
      %v2552 = vld [vmem:[%s1 + $0x90] sm:$0xff]
      %v2553 = vld [vmem:[%s1 + $0x98] sm:$0xff]
      %v2554 = vpack.c.bf16 %v2551, %v2550
      %v2555 = vpack.c.bf16 %v2553, %v2552
      %v2556 = vld [vmem:[%s1 + $0xa0] sm:$0x1]
      %v2557 = vlaneseq
      %v2558 = vshrl.u32 %v2557, 7
      %v2559 = vsub.s32 0, %v2558
      %v2560 = vrot.slane %v2556, %v2559
      %v2562 = vsel %vm214, %v2548, 0
      %v2565 = vsel %vm214, %v2549, 0
      %2567 = vmatprep.subr.bf16.mxu0 0
      %2568 = vmatpush1.bf16.msra.mxu0 %v2554
      %2569 = vmatprep.subr.bf16.mxu0 0
      %2570 = vmatpush1.bf16.msra.mxu0 %v2555
      %2571 = vmatprep.subr.bf16.mxu0 0
      %2572 = vmatpush1.bf16.msra.mxu0 0
      %2573 = vmatprep.subr.bf16.mxu0 0
      %2574 = vmatpush1.bf16.msra.mxu0 0
      %2575 = vmatprep.subr.bf16.mxu0 0
      %2576 = vmatpush1.bf16.msra.mxu0 0
      %2577 = vmatprep.subr.bf16.mxu0 0
      %2578 = vmatpush1.bf16.msra.mxu0 0
      %2579 = vmatprep.subr.bf16.mxu0 0
      %2580 = vmatpush1.bf16.msra.mxu0 0
      %2581 = vmatprep.subr.bf16.mxu0 0
      %2582 = vmatpush1.bf16.msra.mxu0 0
      %2583 = vmatprep.subr.bf16.mxu0 0
      %2584 = vmatpush1.bf16.msra.mxu0 0
      %2585 = vmatprep.subr.bf16.mxu0 0
      %2586 = vmatpush1.bf16.msra.mxu0 0
      %2587 = vmatprep.subr.bf16.mxu0 0
      %2588 = vmatpush1.bf16.msra.mxu0 0
      %2589 = vmatprep.subr.bf16.mxu0 0
      %2590 = vmatpush1.bf16.msra.mxu0 0
      %2591 = vmatprep.subr.bf16.mxu0 0
      %2592 = vmatpush1.bf16.msra.mxu0 0
      %2593 = vmatprep.subr.bf16.mxu0 0
      %2594 = vmatpush1.bf16.msra.mxu0 0
      %2595 = vmatprep.subr.bf16.mxu0 0
      %2596 = vmatpush1.bf16.msra.mxu0 0
      %2597 = vmatprep.subr.bf16.mxu0 0
      %2598 = vmatpush1.bf16.msra.mxu0 0
      %2599 = vmatprep.mubr.bf16.mxu0 0
      %2600 = vmatmul.mubr.bf16.gmra.mrb[0].mxu0 %v2562
      %v2601 = vpop.f32.mrb[0].mxu0
      %v2602 = vadd.f32 %v2560, %v2601
      %v2603 = vpop.f32.mrb[0].mxu0
      %v2604 = vpop.f32.mrb[0].mxu0
      %v2605 = vadd.f32 %v2560, %v2604
      %v2606 = vpop.f32.mrb[0].mxu0
      %2607 = vmatprep.mubr.bf16.mxu0 0
      %2608 = vmatmul.mubr.bf16.gmra.mrb[0].mxu0 %v2565
      %v2609 = vpop.f32.mrb[0].mxu0
      %v2610 = vadd.f32 %v2560, %v2609
      %v2611 = vpop.f32.mrb[0].mxu0
      %v2612 = vpop.f32.mrb[0].mxu0
      %v2613 = vpop.f32.mrb[0].mxu0
      %2614 = vdwg.mxu0
      %v2615 = vmax.f32 %v2602, 0.0
      %v2616 = vmax.f32 %v2605, 0.0
      %v2617 = vmax.f32 %v2610, 0.0
      %v2618 = vpack.c.bf16 %v2616, %v2615
      %v2619 = vpack.c.bf16 %v2617, %v2617
      %v2620 = vld [vmem:[%s1 + $0xa8] sm:$0xff]
      %v2621 = vld [vmem:[%s1 + $0xb0] sm:$0xff]
      %v2622 = vld [vmem:[%s1 + $0xb8] sm:$0xff]
      %v2623 = vld [vmem:[%s1 + $0xc0] sm:$0xff]
      %v2624 = vld [vmem:[%s1 + $0xc8] sm:$0xff]
      %v2625 = vld [vmem:[%s1 + $0xd0] sm:$0xff]
      %v2626 = vld [vmem:[%s1 + $0xd8] sm:$0xff]
      %v2627 = vld [vmem:[%s1 + $0xe0] sm:$0xff]
      %v2628 = vpack.c.bf16 %v2621, %v2620
      %v2629 = vpack.c.bf16 %v2623, %v2622
      %v2630 = vpack.c.bf16 %v2625, %v2624
      %v2631 = vpack.c.bf16 %v2627, %v2626
      %v2632 = vld [vmem:[%s1 + $0xe8] sm:$0x1]
      %v2633 = vlaneseq
      %v2634 = vshrl.u32 %v2633, 7
      %v2635 = vsub.s32 0, %v2634
      %v2636 = vrot.slane %v2632, %v2635
      %vm2637 = vcmask 523264
      %v2639 = vsel %vm2637, %v2618, 0
      %v2642 = vsel %vm2637, %v2619, 0
      %2644 = vmatprep.subr.bf16.mxu0 0
      %2645 = vmatpush1.bf16.msra.mxu0 %v2628
      %2646 = vmatprep.subr.bf16.mxu0 0
      %2647 = vmatpush1.bf16.msra.mxu0 %v2629
      %2648 = vmatprep.subr.bf16.mxu0 0
      %2649 = vmatpush1.bf16.msra.mxu0 %v2630
      %2650 = vmatprep.subr.bf16.mxu0 0
      %2651 = vmatpush1.bf16.msra.mxu0 %v2631
      %2652 = vmatprep.subr.bf16.mxu0 0
      %2653 = vmatpush1.bf16.msra.mxu0 0
      %2654 = vmatprep.subr.bf16.mxu0 0
      %2655 = vmatpush1.bf16.msra.mxu0 0
      %2656 = vmatprep.subr.bf16.mxu0 0
      %2657 = vmatpush1.bf16.msra.mxu0 0
      %2658 = vmatprep.subr.bf16.mxu0 0
      %2659 = vmatpush1.bf16.msra.mxu0 0
      %2660 = vmatprep.subr.bf16.mxu0 0
      %2661 = vmatpush1.bf16.msra.mxu0 0
      %2662 = vmatprep.subr.bf16.mxu0 0
      %2663 = vmatpush1.bf16.msra.mxu0 0
      %2664 = vmatprep.subr.bf16.mxu0 0
      %2665 = vmatpush1.bf16.msra.mxu0 0
      %2666 = vmatprep.subr.bf16.mxu0 0
      %2667 = vmatpush1.bf16.msra.mxu0 0
      %2668 = vmatprep.subr.bf16.mxu0 0
      %2669 = vmatpush1.bf16.msra.mxu0 0
      %2670 = vmatprep.subr.bf16.mxu0 0
      %2671 = vmatpush1.bf16.msra.mxu0 0
      %2672 = vmatprep.subr.bf16.mxu0 0
      %2673 = vmatpush1.bf16.msra.mxu0 0
      %2674 = vmatprep.subr.bf16.mxu0 0
      %2675 = vmatpush1.bf16.msra.mxu0 0
      %2676 = vmatprep.mubr.bf16.mxu0 0
      %2677 = vmatmul.mubr.bf16.gmra.mrb[0].mxu0 %v2639
      %v2678 = vpop.f32.mrb[0].mxu0
      %v2679 = vadd.f32 %v2636, %v2678
      %v2680 = vpop.f32.mrb[0].mxu0
      %v2681 = vpop.f32.mrb[0].mxu0
      %v2682 = vadd.f32 %v2636, %v2681
      %v2683 = vpop.f32.mrb[0].mxu0
      %2684 = vmatprep.mubr.bf16.mxu0 0
      %2685 = vmatmul.mubr.bf16.gmra.mrb[0].mxu0 %v2642
      %v2686 = vpop.f32.mrb[0].mxu0
      %v2687 = vadd.f32 %v2636, %v2686
      %v2688 = vpop.f32.mrb[0].mxu0
      %v2689 = vpop.f32.mrb[0].mxu0
      %v2690 = vpop.f32.mrb[0].mxu0
      %2691 = vdwg.mxu0
      %v2692 = vadd.f32 %v2545, %v2679
      %v2693 = vadd.f32 %v2546, %v2682
      %v2694 = vadd.f32 %v2547, %v2687
      %v2695 = vld [vmem:[%s1 + $0xf0] sm:$0x1]
      %v2696 = vld [vmem:[%s1 + $0xf8] sm:$0x1]
      %v2697 = vsel %vm214, %v2692, 0.0
      %2698 = vadd.xlane.f32.xlu0 %v2697
      %v2699 = vpop.xlane.xlu0 %2698
      %v2700 = vsel %vm214, %v2693, 0.0
      %2701 = vadd.xlane.f32.xlu0 %v2700
      %v2702 = vpop.xlane.xlu0 %2701
      %v2703 = vsel %vm214, %v2694, 0.0
      %2704 = vadd.xlane.f32.xlu0 %v2703
      %v2705 = vpop.xlane.xlu0 %2704
      %v2706 = vmul.f32 %v2699, %v224
      %v2707 = vmul.f32 %v2702, %v224
      %v2708 = vmul.f32 %v2705, %v224
      %v2709 = vsub.f32 %v2692, %v2706
      %v2710 = vsub.f32 %v2693, %v2707
      %v2711 = vsub.f32 %v2694, %v2708
      %v2712 = vmul.f32 %v2709, %v2709
      %v2713 = vmul.f32 %v2710, %v2710
      %v2714 = vmul.f32 %v2711, %v2711
      %v2715 = vsel %vm214, %v2712, 0.0
      %2716 = vadd.xlane.f32.xlu0 %v2715
      %v2717 = vpop.xlane.xlu0 %2716
      %v2718 = vsel %vm214, %v2713, 0.0
      %2719 = vadd.xlane.f32.xlu0 %v2718
      %v2720 = vpop.xlane.xlu0 %2719
      %v2721 = vsel %vm214, %v2714, 0.0
      %2722 = vadd.xlane.f32.xlu0 %v2721
      %v2723 = vpop.xlane.xlu0 %2722
      %v2724 = vmul.f32 %v2717, %v224
      %v2725 = vmul.f32 %v2720, %v224
      %v2726 = vmul.f32 %v2723, %v224
      %v2727 = vadd.f32 %v2724, 1e-05
      %v2728 = vadd.f32 %v2725, 1e-05
      %v2729 = vadd.f32 %v2726, 1e-05
      %v2730 = vrsqrt.pop %v2727
      %v2731 = vrsqrt.pop %v2728
      %v2732 = vrsqrt.pop %v2729
      %v2733 = vmul.f32 %v2709, %v2730
      %v2734 = vmul.f32 %v2710, %v2731
      %v2735 = vmul.f32 %v2711, %v2732
      %v2736 = vlaneseq
      %v2737 = vshrl.u32 %v2736, 7
      %v2738 = vsub.s32 0, %v2737
      %v2739 = vrot.slane %v2695, %v2738
      %v2740 = vmul.f32 %v2733, %v2739
      %v2741 = vmul.f32 %v2734, %v2739
      %v2742 = vmul.f32 %v2735, %v2739
      %v2743 = vlaneseq
      %v2744 = vshrl.u32 %v2743, 7
      %v2745 = vsub.s32 0, %v2744
      %v2746 = vrot.slane %v2696, %v2745
      %v2747 = vadd.f32 %v2740, %v2746
      %v2748 = vadd.f32 %v2741, %v2746
      %v2749 = vadd.f32 %v2742, %v2746
      %v2750 = vpack.c.bf16 %v2748, %v2747
      %v2751 = vpack.c.bf16 %v2749, %v2749
      %v2752 = vld [vmem:[%s1 + $0x100] sm:$0xff]
      %v2753 = vld [vmem:[%s1 + $0x108] sm:$0xff]
      %v2754 = vld [vmem:[%s1 + $0x110] sm:$0xff]
      %v2755 = vld [vmem:[%s1 + $0x118] sm:$0xff]
      %v2756 = vpack.c.bf16 %v2753, %v2752
      %v2757 = vpack.c.bf16 %v2755, %v2754
      %v2758 = vld [vmem:[%s1 + $0x120] sm:$0x1]
      %v2759 = vlaneseq
      %v2760 = vshrl.u32 %v2759, 7
      %v2761 = vsub.s32 0, %v2760
      %v2762 = vrot.slane %v2758, %v2761
      %v2764 = vsel %vm214, %v2750, 0
      %v2767 = vsel %vm214, %v2751, 0
      %2769 = vmatprep.subr.bf16.mxu0 0
      %2770 = vmatpush1.bf16.msra.mxu0 %v2756
      %2771 = vmatprep.subr.bf16.mxu0 0
      %2772 = vmatpush1.bf16.msra.mxu0 %v2757
      %2773 = vmatprep.subr.bf16.mxu0 0
      %2774 = vmatpush1.bf16.msra.mxu0 0
      %2775 = vmatprep.subr.bf16.mxu0 0
      %2776 = vmatpush1.bf16.msra.mxu0 0
      %2777 = vmatprep.subr.bf16.mxu0 0
      %2778 = vmatpush1.bf16.msra.mxu0 0
      %2779 = vmatprep.subr.bf16.mxu0 0
      %2780 = vmatpush1.bf16.msra.mxu0 0
      %2781 = vmatprep.subr.bf16.mxu0 0
      %2782 = vmatpush1.bf16.msra.mxu0 0
      %2783 = vmatprep.subr.bf16.mxu0 0
      %2784 = vmatpush1.bf16.msra.mxu0 0
      %2785 = vmatprep.subr.bf16.mxu0 0
      %2786 = vmatpush1.bf16.msra.mxu0 0
      %2787 = vmatprep.subr.bf16.mxu0 0
      %2788 = vmatpush1.bf16.msra.mxu0 0
      %2789 = vmatprep.subr.bf16.mxu0 0
      %2790 = vmatpush1.bf16.msra.mxu0 0
      %2791 = vmatprep.subr.bf16.mxu0 0
      %2792 = vmatpush1.bf16.msra.mxu0 0
      %2793 = vmatprep.subr.bf16.mxu0 0
      %2794 = vmatpush1.bf16.msra.mxu0 0
      %2795 = vmatprep.subr.bf16.mxu0 0
      %2796 = vmatpush1.bf16.msra.mxu0 0
      %2797 = vmatprep.subr.bf16.mxu0 0
      %2798 = vmatpush1.bf16.msra.mxu0 0
      %2799 = vmatprep.subr.bf16.mxu0 0
      %2800 = vmatpush1.bf16.msra.mxu0 0
      %2801 = vmatprep.mubr.bf16.mxu0 0
      %2802 = vmatmul.mubr.bf16.gmra.mrb[0].mxu0 %v2764
      %v2803 = vpop.f32.mrb[0].mxu0
      %v2804 = vadd.f32 %v2762, %v2803
      %v2805 = vpop.f32.mrb[0].mxu0
      %v2806 = vpop.f32.mrb[0].mxu0
      %v2807 = vadd.f32 %v2762, %v2806
      %v2808 = vpop.f32.mrb[0].mxu0
      %2809 = vmatprep.mubr.bf16.mxu0 0
      %2810 = vmatmul.mubr.bf16.gmra.mrb[0].mxu0 %v2767
      %v2811 = vpop.f32.mrb[0].mxu0
      %v2812 = vadd.f32 %v2762, %v2811
      %v2813 = vpop.f32.mrb[0].mxu0
      %v2814 = vpop.f32.mrb[0].mxu0
      %v2815 = vpop.f32.mrb[0].mxu0
      %2816 = vdwg.mxu0
      %2818 = vrot.lane.b32.xlu0 %v2804, 96
      %v2819 = vpop.permute.xlu0 %2818
      %v2820 = vsel %vm153, %v2804, 0
      %v2822 = vsel %vm153, %v2819, 0
      %2824 = vmatprep.subr.mxu0 0.0
      %2825 = vmatpush1.xpose.msra.mxu0 %v2822
      %2826 = vmatprep.subr.mxu0 0.0
      %2827 = vmatpush1.xpose.msra.mxu0 0.0
      %2828 = vmatprep.subr.mxu0 0.0
      %2829 = vmatpush1.xpose.msra.mxu0 0.0
      %2830 = vmatprep.subr.mxu0 0.0
      %2831 = vmatpush1.xpose.msra.mxu0 0.0
      %2832 = vmatprep.subr.mxu0 0.0
      %2833 = vmatpush1.xpose.msra.mxu0 0.0
      %2834 = vmatprep.subr.mxu0 0.0
      %2835 = vmatpush1.xpose.msra.mxu0 0.0
      %2836 = vmatprep.subr.mxu0 0.0
      %2837 = vmatpush1.xpose.msra.mxu0 0.0
      %2838 = vmatprep.subr.mxu0 0.0
      %2839 = vmatpush1.xpose.msra.mxu0 0.0
      %2840 = vmatprep.subr.mxu0 0.0
      %2841 = vmatpush1.xpose.msra.mxu0 0.0
      %2842 = vmatprep.subr.mxu0 0.0
      %2843 = vmatpush1.xpose.msra.mxu0 0.0
      %2844 = vmatprep.subr.mxu0 0.0
      %2845 = vmatpush1.xpose.msra.mxu0 0.0
      %2846 = vmatprep.subr.mxu0 0.0
      %2847 = vmatpush1.xpose.msra.mxu0 0.0
      %2848 = vmatprep.subr.mxu0 0.0
      %2849 = vmatpush1.xpose.msra.mxu0 0.0
      %2850 = vmatprep.subr.mxu0 0.0
      %2851 = vmatpush1.xpose.msra.mxu0 0.0
      %2852 = vmatprep.subr.mxu0 0.0
      %2853 = vmatpush1.xpose.msra.mxu0 0.0
      %2854 = vmatprep.subr.mxu0 0.0
      %2855 = vmatpush1.xpose.msra.mxu0 0.0
      %2856 = vmatprep.subr.mxu0 0.0
      %2857 = vmatpush1.xpose.msra.mxu0 0.0
      %2858 = vmatprep.subr.mxu0 0.0
      %2859 = vmatpush1.xpose.msra.mxu0 0.0
      %2860 = vmatprep.subr.mxu0 0.0
      %2861 = vmatpush1.xpose.msra.mxu0 0.0
      %2862 = vmatprep.subr.mxu0 0.0
      %2863 = vmatpush1.xpose.msra.mxu0 0.0
      %2864 = vmatprep.subr.mxu0 0.0
      %2865 = vmatpush1.xpose.msra.mxu0 0.0
      %2866 = vmatprep.subr.mxu0 0.0
      %2867 = vmatpush1.xpose.msra.mxu0 0.0
      %2868 = vmatprep.subr.mxu0 0.0
      %2869 = vmatpush1.xpose.msra.mxu0 0.0
      %2870 = vmatprep.subr.mxu0 0.0
      %2871 = vmatpush1.xpose.msra.mxu0 0.0
      %2872 = vmatprep.subr.mxu0 0.0
      %2873 = vmatpush1.xpose.msra.mxu0 0.0
      %2874 = vmatprep.subr.mxu0 0.0
      %2875 = vmatpush1.xpose.msra.mxu0 0.0
      %2876 = vmatprep.subr.mxu0 0.0
      %2877 = vmatpush1.xpose.msra.mxu0 0.0
      %2878 = vmatprep.subr.mxu0 0.0
      %2879 = vmatpush1.xpose.msra.mxu0 0.0
      %2880 = vmatprep.subr.mxu0 0.0
      %2881 = vmatpush1.xpose.msra.mxu0 0.0
      %2882 = vmatprep.subr.mxu0 0.0
      %2883 = vmatpush1.xpose.msra.mxu0 0.0
      %2884 = vmatprep.subr.mxu0 0.0
      %2885 = vmatpush1.xpose.msra.mxu0 0.0
      %2886 = vmatprep.subr.mxu0 0.0
      %2887 = vmatpush1.xpose.msra.mxu0 0.0
      %2888 = vmatprep.mubr.f32.mxu0 0.0
      %2889 = vmatmul.mubr.f32.gmra.mrb[0].mxu0 %v2820
      %v2890 = vpop.f32.mrb[0].mxu0
      %v2891 = vadd.f32 %v317, %v2890
      %v2892 = vpop.f32.mrb[0].mxu0
      %2893 = vdwg.mxu0
      %2895 = vrot.lane.b32.xlu0 %v2807, 96
      %v2896 = vpop.permute.xlu0 %2895
      %v2897 = vsel %vm153, %v2807, 0
      %v2899 = vsel %vm153, %v2896, 0
      %2901 = vmatprep.subr.mxu0 0.0
      %2902 = vmatpush1.xpose.msra.mxu0 %v2899
      %2903 = vmatprep.subr.mxu0 0.0
      %2904 = vmatpush1.xpose.msra.mxu0 0.0
      %2905 = vmatprep.subr.mxu0 0.0
      %2906 = vmatpush1.xpose.msra.mxu0 0.0
      %2907 = vmatprep.subr.mxu0 0.0
      %2908 = vmatpush1.xpose.msra.mxu0 0.0
      %2909 = vmatprep.subr.mxu0 0.0
      %2910 = vmatpush1.xpose.msra.mxu0 0.0
      %2911 = vmatprep.subr.mxu0 0.0
      %2912 = vmatpush1.xpose.msra.mxu0 0.0
      %2913 = vmatprep.subr.mxu0 0.0
      %2914 = vmatpush1.xpose.msra.mxu0 0.0
      %2915 = vmatprep.subr.mxu0 0.0
      %2916 = vmatpush1.xpose.msra.mxu0 0.0
      %2917 = vmatprep.subr.mxu0 0.0
      %2918 = vmatpush1.xpose.msra.mxu0 0.0
      %2919 = vmatprep.subr.mxu0 0.0
      %2920 = vmatpush1.xpose.msra.mxu0 0.0
      %2921 = vmatprep.subr.mxu0 0.0
      %2922 = vmatpush1.xpose.msra.mxu0 0.0
      %2923 = vmatprep.subr.mxu0 0.0
      %2924 = vmatpush1.xpose.msra.mxu0 0.0
      %2925 = vmatprep.subr.mxu0 0.0
      %2926 = vmatpush1.xpose.msra.mxu0 0.0
      %2927 = vmatprep.subr.mxu0 0.0
      %2928 = vmatpush1.xpose.msra.mxu0 0.0
      %2929 = vmatprep.subr.mxu0 0.0
      %2930 = vmatpush1.xpose.msra.mxu0 0.0
      %2931 = vmatprep.subr.mxu0 0.0
      %2932 = vmatpush1.xpose.msra.mxu0 0.0
      %2933 = vmatprep.subr.mxu0 0.0
      %2934 = vmatpush1.xpose.msra.mxu0 0.0
      %2935 = vmatprep.subr.mxu0 0.0
      %2936 = vmatpush1.xpose.msra.mxu0 0.0
      %2937 = vmatprep.subr.mxu0 0.0
      %2938 = vmatpush1.xpose.msra.mxu0 0.0
      %2939 = vmatprep.subr.mxu0 0.0
      %2940 = vmatpush1.xpose.msra.mxu0 0.0
      %2941 = vmatprep.subr.mxu0 0.0
      %2942 = vmatpush1.xpose.msra.mxu0 0.0
      %2943 = vmatprep.subr.mxu0 0.0
      %2944 = vmatpush1.xpose.msra.mxu0 0.0
      %2945 = vmatprep.subr.mxu0 0.0
      %2946 = vmatpush1.xpose.msra.mxu0 0.0
      %2947 = vmatprep.subr.mxu0 0.0
      %2948 = vmatpush1.xpose.msra.mxu0 0.0
      %2949 = vmatprep.subr.mxu0 0.0
      %2950 = vmatpush1.xpose.msra.mxu0 0.0
      %2951 = vmatprep.subr.mxu0 0.0
      %2952 = vmatpush1.xpose.msra.mxu0 0.0
      %2953 = vmatprep.subr.mxu0 0.0
      %2954 = vmatpush1.xpose.msra.mxu0 0.0
      %2955 = vmatprep.subr.mxu0 0.0
      %2956 = vmatpush1.xpose.msra.mxu0 0.0
      %2957 = vmatprep.subr.mxu0 0.0
      %2958 = vmatpush1.xpose.msra.mxu0 0.0
      %2959 = vmatprep.subr.mxu0 0.0
      %2960 = vmatpush1.xpose.msra.mxu0 0.0
      %2961 = vmatprep.subr.mxu0 0.0
      %2962 = vmatpush1.xpose.msra.mxu0 0.0
      %2963 = vmatprep.subr.mxu0 0.0
      %2964 = vmatpush1.xpose.msra.mxu0 0.0
      %2965 = vmatprep.mubr.f32.mxu0 0.0
      %2966 = vmatmul.mubr.f32.gmra.mrb[0].mxu0 %v2897
      %v2967 = vpop.f32.mrb[0].mxu0
      %v2968 = vadd.f32 %v318, %v2967
      %v2969 = vpop.f32.mrb[0].mxu0
      %2970 = vdwg.mxu0
      %2972 = vrot.lane.b32.xlu0 %v2812, 96
      %v2973 = vpop.permute.xlu0 %2972
      %v2974 = vsel %vm153, %v2812, 0
      %v2976 = vsel %vm153, %v2973, 0
      %2978 = vmatprep.subr.mxu0 0.0
      %2979 = vmatpush1.xpose.msra.mxu0 %v2976
      %2980 = vmatprep.subr.mxu0 0.0
      %2981 = vmatpush1.xpose.msra.mxu0 0.0
      %2982 = vmatprep.subr.mxu0 0.0
      %2983 = vmatpush1.xpose.msra.mxu0 0.0
      %2984 = vmatprep.subr.mxu0 0.0
      %2985 = vmatpush1.xpose.msra.mxu0 0.0
      %2986 = vmatprep.subr.mxu0 0.0
      %2987 = vmatpush1.xpose.msra.mxu0 0.0
      %2988 = vmatprep.subr.mxu0 0.0
      %2989 = vmatpush1.xpose.msra.mxu0 0.0
      %2990 = vmatprep.subr.mxu0 0.0
      %2991 = vmatpush1.xpose.msra.mxu0 0.0
      %2992 = vmatprep.subr.mxu0 0.0
      %2993 = vmatpush1.xpose.msra.mxu0 0.0
      %2994 = vmatprep.subr.mxu0 0.0
      %2995 = vmatpush1.xpose.msra.mxu0 0.0
      %2996 = vmatprep.subr.mxu0 0.0
      %2997 = vmatpush1.xpose.msra.mxu0 0.0
      %2998 = vmatprep.subr.mxu0 0.0
      %2999 = vmatpush1.xpose.msra.mxu0 0.0
      %3000 = vmatprep.subr.mxu0 0.0
      %3001 = vmatpush1.xpose.msra.mxu0 0.0
      %3002 = vmatprep.subr.mxu0 0.0
      %3003 = vmatpush1.xpose.msra.mxu0 0.0
      %3004 = vmatprep.subr.mxu0 0.0
      %3005 = vmatpush1.xpose.msra.mxu0 0.0
      %3006 = vmatprep.subr.mxu0 0.0
      %3007 = vmatpush1.xpose.msra.mxu0 0.0
      %3008 = vmatprep.subr.mxu0 0.0
      %3009 = vmatpush1.xpose.msra.mxu0 0.0
      %3010 = vmatprep.subr.mxu0 0.0
      %3011 = vmatpush1.xpose.msra.mxu0 0.0
      %3012 = vmatprep.subr.mxu0 0.0
      %3013 = vmatpush1.xpose.msra.mxu0 0.0
      %3014 = vmatprep.subr.mxu0 0.0
      %3015 = vmatpush1.xpose.msra.mxu0 0.0
      %3016 = vmatprep.subr.mxu0 0.0
      %3017 = vmatpush1.xpose.msra.mxu0 0.0
      %3018 = vmatprep.subr.mxu0 0.0
      %3019 = vmatpush1.xpose.msra.mxu0 0.0
      %3020 = vmatprep.subr.mxu0 0.0
      %3021 = vmatpush1.xpose.msra.mxu0 0.0
      %3022 = vmatprep.subr.mxu0 0.0
      %3023 = vmatpush1.xpose.msra.mxu0 0.0
      %3024 = vmatprep.subr.mxu0 0.0
      %3025 = vmatpush1.xpose.msra.mxu0 0.0
      %3026 = vmatprep.subr.mxu0 0.0
      %3027 = vmatpush1.xpose.msra.mxu0 0.0
      %3028 = vmatprep.subr.mxu0 0.0
      %3029 = vmatpush1.xpose.msra.mxu0 0.0
      %3030 = vmatprep.subr.mxu0 0.0
      %3031 = vmatpush1.xpose.msra.mxu0 0.0
      %3032 = vmatprep.subr.mxu0 0.0
      %3033 = vmatpush1.xpose.msra.mxu0 0.0
      %3034 = vmatprep.subr.mxu0 0.0
      %3035 = vmatpush1.xpose.msra.mxu0 0.0
      %3036 = vmatprep.subr.mxu0 0.0
      %3037 = vmatpush1.xpose.msra.mxu0 0.0
      %3038 = vmatprep.subr.mxu0 0.0
      %3039 = vmatpush1.xpose.msra.mxu0 0.0
      %3040 = vmatprep.subr.mxu0 0.0
      %3041 = vmatpush1.xpose.msra.mxu0 0.0
      %3042 = vmatprep.mubr.f32.mxu0 0.0
      %3043 = vmatmul.mubr.f32.gmra.mrb[0].mxu0 %v2974
      %v3044 = vpop.f32.mrb[0].mxu0
      %v3045 = vadd.f32 %v319, %v3044
      %v3046 = vpop.f32.mrb[0].mxu0
      %3047 = vdwg.mxu0
      %v3048 = vsel %vm153, %v2891, -inf
      %3049 = vmax.xlane.f32.xlu0 %v3048
      %v3050 = vpop.xlane.xlu0 %3049
      %v3051 = vsel %vm153, %v2968, -inf
      %3052 = vmax.xlane.f32.xlu0 %v3051
      %v3053 = vpop.xlane.xlu0 %3052
      %v3054 = vsel %vm153, %v3045, -inf
      %3055 = vmax.xlane.f32.xlu0 %v3054
      %v3056 = vpop.xlane.xlu0 %3055
      %v3057 = vsub.f32 %v2891, %v3050
      %v3058 = vsub.f32 %v2968, %v3053
      %v3059 = vsub.f32 %v3045, %v3056
      %v3060 = vmul.f32 %v3057, 1.442695
      %v3061 = vpow.pop %v3060
      %v3062 = vmul.f32 %v3058, 1.442695
      %v3063 = vpow.pop %v3062
      %v3064 = vmul.f32 %v3059, 1.442695
      %v3065 = vpow.pop %v3064
      %v3066 = vsel %vm153, %v3061, 0.0
      %3067 = vadd.xlane.f32.xlu0 %v3066
      %v3068 = vpop.xlane.xlu0 %3067
      %v3069 = vsel %vm153, %v3063, 0.0
      %3070 = vadd.xlane.f32.xlu0 %v3069
      %v3071 = vpop.xlane.xlu0 %3070
      %v3072 = vsel %vm153, %v3065, 0.0
      %3073 = vadd.xlane.f32.xlu0 %v3072
      %v3074 = vpop.xlane.xlu0 %3073
      %v3075 = vrcp.pop %v3068
      %v3076 = vrcp.pop %v3071
      %v3077 = vrcp.pop %v3074
      %v3078 = vmul.f32 %v3061, %v3075
      %v3079 = vmul.f32 %v3063, %v3076
      %v3080 = vmul.f32 %v3065, %v3077
      %3081 = vrot.lane.b32.xlu0 %v2804, 64
      %v3082 = vpop.permute.xlu0 %3081
      %v3085 = vsel %vm153, %v3078, 0
      %3087 = vmatprep.subr.mxu0 0.0
      %3088 = vmatpush1.msra.mxu0 %v3082
      %3089 = vmatprep.subr.mxu0 0.0
      %3090 = vmatpush1.msra.mxu0 0.0
      %3091 = vmatprep.subr.mxu0 0.0
      %3092 = vmatpush1.msra.mxu0 0.0
      %3093 = vmatprep.subr.mxu0 0.0
      %3094 = vmatpush1.msra.mxu0 0.0
      %3095 = vmatprep.subr.mxu0 0.0
      %3096 = vmatpush1.msra.mxu0 0.0
      %3097 = vmatprep.subr.mxu0 0.0
      %3098 = vmatpush1.msra.mxu0 0.0
      %3099 = vmatprep.subr.mxu0 0.0
      %3100 = vmatpush1.msra.mxu0 0.0
      %3101 = vmatprep.subr.mxu0 0.0
      %3102 = vmatpush1.msra.mxu0 0.0
      %3103 = vmatprep.subr.mxu0 0.0
      %3104 = vmatpush1.msra.mxu0 0.0
      %3105 = vmatprep.subr.mxu0 0.0
      %3106 = vmatpush1.msra.mxu0 0.0
      %3107 = vmatprep.subr.mxu0 0.0
      %3108 = vmatpush1.msra.mxu0 0.0
      %3109 = vmatprep.subr.mxu0 0.0
      %3110 = vmatpush1.msra.mxu0 0.0
      %3111 = vmatprep.subr.mxu0 0.0
      %3112 = vmatpush1.msra.mxu0 0.0
      %3113 = vmatprep.subr.mxu0 0.0
      %3114 = vmatpush1.msra.mxu0 0.0
      %3115 = vmatprep.subr.mxu0 0.0
      %3116 = vmatpush1.msra.mxu0 0.0
      %3117 = vmatprep.subr.mxu0 0.0
      %3118 = vmatpush1.msra.mxu0 0.0
      %3119 = vmatprep.subr.mxu0 0.0
      %3120 = vmatpush1.msra.mxu0 0.0
      %3121 = vmatprep.subr.mxu0 0.0
      %3122 = vmatpush1.msra.mxu0 0.0
      %3123 = vmatprep.subr.mxu0 0.0
      %3124 = vmatpush1.msra.mxu0 0.0
      %3125 = vmatprep.subr.mxu0 0.0
      %3126 = vmatpush1.msra.mxu0 0.0
      %3127 = vmatprep.subr.mxu0 0.0
      %3128 = vmatpush1.msra.mxu0 0.0
      %3129 = vmatprep.subr.mxu0 0.0
      %3130 = vmatpush1.msra.mxu0 0.0
      %3131 = vmatprep.subr.mxu0 0.0
      %3132 = vmatpush1.msra.mxu0 0.0
      %3133 = vmatprep.subr.mxu0 0.0
      %3134 = vmatpush1.msra.mxu0 0.0
      %3135 = vmatprep.subr.mxu0 0.0
      %3136 = vmatpush1.msra.mxu0 0.0
      %3137 = vmatprep.subr.mxu0 0.0
      %3138 = vmatpush1.msra.mxu0 0.0
      %3139 = vmatprep.subr.mxu0 0.0
      %3140 = vmatpush1.msra.mxu0 0.0
      %3141 = vmatprep.subr.mxu0 0.0
      %3142 = vmatpush1.msra.mxu0 0.0
      %3143 = vmatprep.subr.mxu0 0.0
      %3144 = vmatpush1.msra.mxu0 0.0
      %3145 = vmatprep.subr.mxu0 0.0
      %3146 = vmatpush1.msra.mxu0 0.0
      %3147 = vmatprep.subr.mxu0 0.0
      %3148 = vmatpush1.msra.mxu0 0.0
      %3149 = vmatprep.subr.mxu0 0.0
      %3150 = vmatpush1.msra.mxu0 0.0
      %3151 = vmatprep.mubr.f32.mxu0 0.0
      %3152 = vmatmul.mubr.f32.gmra.mrb[0].mxu0 %v3085
      %v3153 = vpop.f32.mrb[0].mxu0
      %v3154 = vadd.f32 0.0, %v3153
      %v3155 = vpop.f32.mrb[0].mxu0
      %3156 = vdwg.mxu0
      %3157 = vrot.lane.b32.xlu0 %v2807, 64
      %v3158 = vpop.permute.xlu0 %3157
      %v3161 = vsel %vm153, %v3079, 0
      %3163 = vmatprep.subr.mxu0 0.0
      %3164 = vmatpush1.msra.mxu0 %v3158
      %3165 = vmatprep.subr.mxu0 0.0
      %3166 = vmatpush1.msra.mxu0 0.0
      %3167 = vmatprep.subr.mxu0 0.0
      %3168 = vmatpush1.msra.mxu0 0.0
      %3169 = vmatprep.subr.mxu0 0.0
      %3170 = vmatpush1.msra.mxu0 0.0
      %3171 = vmatprep.subr.mxu0 0.0
      %3172 = vmatpush1.msra.mxu0 0.0
      %3173 = vmatprep.subr.mxu0 0.0
      %3174 = vmatpush1.msra.mxu0 0.0
      %3175 = vmatprep.subr.mxu0 0.0
      %3176 = vmatpush1.msra.mxu0 0.0
      %3177 = vmatprep.subr.mxu0 0.0
      %3178 = vmatpush1.msra.mxu0 0.0
      %3179 = vmatprep.subr.mxu0 0.0
      %3180 = vmatpush1.msra.mxu0 0.0
      %3181 = vmatprep.subr.mxu0 0.0
      %3182 = vmatpush1.msra.mxu0 0.0
      %3183 = vmatprep.subr.mxu0 0.0
      %3184 = vmatpush1.msra.mxu0 0.0
      %3185 = vmatprep.subr.mxu0 0.0
      %3186 = vmatpush1.msra.mxu0 0.0
      %3187 = vmatprep.subr.mxu0 0.0
      %3188 = vmatpush1.msra.mxu0 0.0
      %3189 = vmatprep.subr.mxu0 0.0
      %3190 = vmatpush1.msra.mxu0 0.0
      %3191 = vmatprep.subr.mxu0 0.0
      %3192 = vmatpush1.msra.mxu0 0.0
      %3193 = vmatprep.subr.mxu0 0.0
      %3194 = vmatpush1.msra.mxu0 0.0
      %3195 = vmatprep.subr.mxu0 0.0
      %3196 = vmatpush1.msra.mxu0 0.0
      %3197 = vmatprep.subr.mxu0 0.0
      %3198 = vmatpush1.msra.mxu0 0.0
      %3199 = vmatprep.subr.mxu0 0.0
      %3200 = vmatpush1.msra.mxu0 0.0
      %3201 = vmatprep.subr.mxu0 0.0
      %3202 = vmatpush1.msra.mxu0 0.0
      %3203 = vmatprep.subr.mxu0 0.0
      %3204 = vmatpush1.msra.mxu0 0.0
      %3205 = vmatprep.subr.mxu0 0.0
      %3206 = vmatpush1.msra.mxu0 0.0
      %3207 = vmatprep.subr.mxu0 0.0
      %3208 = vmatpush1.msra.mxu0 0.0
      %3209 = vmatprep.subr.mxu0 0.0
      %3210 = vmatpush1.msra.mxu0 0.0
      %3211 = vmatprep.subr.mxu0 0.0
      %3212 = vmatpush1.msra.mxu0 0.0
      %3213 = vmatprep.subr.mxu0 0.0
      %3214 = vmatpush1.msra.mxu0 0.0
      %3215 = vmatprep.subr.mxu0 0.0
      %3216 = vmatpush1.msra.mxu0 0.0
      %3217 = vmatprep.subr.mxu0 0.0
      %3218 = vmatpush1.msra.mxu0 0.0
      %3219 = vmatprep.subr.mxu0 0.0
      %3220 = vmatpush1.msra.mxu0 0.0
      %3221 = vmatprep.subr.mxu0 0.0
      %3222 = vmatpush1.msra.mxu0 0.0
      %3223 = vmatprep.subr.mxu0 0.0
      %3224 = vmatpush1.msra.mxu0 0.0
      %3225 = vmatprep.subr.mxu0 0.0
      %3226 = vmatpush1.msra.mxu0 0.0
      %3227 = vmatprep.mubr.f32.mxu0 0.0
      %3228 = vmatmul.mubr.f32.gmra.mrb[0].mxu0 %v3161
      %v3229 = vpop.f32.mrb[0].mxu0
      %v3230 = vadd.f32 0.0, %v3229
      %v3231 = vpop.f32.mrb[0].mxu0
      %3232 = vdwg.mxu0
      %3233 = vrot.lane.b32.xlu0 %v2812, 64
      %v3234 = vpop.permute.xlu0 %3233
      %v3237 = vsel %vm153, %v3080, 0
      %3239 = vmatprep.subr.mxu0 0.0
      %3240 = vmatpush1.msra.mxu0 %v3234
      %3241 = vmatprep.subr.mxu0 0.0
      %3242 = vmatpush1.msra.mxu0 0.0
      %3243 = vmatprep.subr.mxu0 0.0
      %3244 = vmatpush1.msra.mxu0 0.0
      %3245 = vmatprep.subr.mxu0 0.0
      %3246 = vmatpush1.msra.mxu0 0.0
      %3247 = vmatprep.subr.mxu0 0.0
      %3248 = vmatpush1.msra.mxu0 0.0
      %3249 = vmatprep.subr.mxu0 0.0
      %3250 = vmatpush1.msra.mxu0 0.0
      %3251 = vmatprep.subr.mxu0 0.0
      %3252 = vmatpush1.msra.mxu0 0.0
      %3253 = vmatprep.subr.mxu0 0.0
      %3254 = vmatpush1.msra.mxu0 0.0
      %3255 = vmatprep.subr.mxu0 0.0
      %3256 = vmatpush1.msra.mxu0 0.0
      %3257 = vmatprep.subr.mxu0 0.0
      %3258 = vmatpush1.msra.mxu0 0.0
      %3259 = vmatprep.subr.mxu0 0.0
      %3260 = vmatpush1.msra.mxu0 0.0
      %3261 = vmatprep.subr.mxu0 0.0
      %3262 = vmatpush1.msra.mxu0 0.0
      %3263 = vmatprep.subr.mxu0 0.0
      %3264 = vmatpush1.msra.mxu0 0.0
      %3265 = vmatprep.subr.mxu0 0.0
      %3266 = vmatpush1.msra.mxu0 0.0
      %3267 = vmatprep.subr.mxu0 0.0
      %3268 = vmatpush1.msra.mxu0 0.0
      %3269 = vmatprep.subr.mxu0 0.0
      %3270 = vmatpush1.msra.mxu0 0.0
      %3271 = vmatprep.subr.mxu0 0.0
      %3272 = vmatpush1.msra.mxu0 0.0
      %3273 = vmatprep.subr.mxu0 0.0
      %3274 = vmatpush1.msra.mxu0 0.0
      %3275 = vmatprep.subr.mxu0 0.0
      %3276 = vmatpush1.msra.mxu0 0.0
      %3277 = vmatprep.subr.mxu0 0.0
      %3278 = vmatpush1.msra.mxu0 0.0
      %3279 = vmatprep.subr.mxu0 0.0
      %3280 = vmatpush1.msra.mxu0 0.0
      %3281 = vmatprep.subr.mxu0 0.0
      %3282 = vmatpush1.msra.mxu0 0.0
      %3283 = vmatprep.subr.mxu0 0.0
      %3284 = vmatpush1.msra.mxu0 0.0
      %3285 = vmatprep.subr.mxu0 0.0
      %3286 = vmatpush1.msra.mxu0 0.0
      %3287 = vmatprep.subr.mxu0 0.0
      %3288 = vmatpush1.msra.mxu0 0.0
      %3289 = vmatprep.subr.mxu0 0.0
      %3290 = vmatpush1.msra.mxu0 0.0
      %3291 = vmatprep.subr.mxu0 0.0
      %3292 = vmatpush1.msra.mxu0 0.0
      %3293 = vmatprep.subr.mxu0 0.0
      %3294 = vmatpush1.msra.mxu0 0.0
      %3295 = vmatprep.subr.mxu0 0.0
      %3296 = vmatpush1.msra.mxu0 0.0
      %3297 = vmatprep.subr.mxu0 0.0
      %3298 = vmatpush1.msra.mxu0 0.0
      %3299 = vmatprep.subr.mxu0 0.0
      %3300 = vmatpush1.msra.mxu0 0.0
      %3301 = vmatprep.subr.mxu0 0.0
      %3302 = vmatpush1.msra.mxu0 0.0
      %3303 = vmatprep.mubr.f32.mxu0 0.0
      %3304 = vmatmul.mubr.f32.gmra.mrb[0].mxu0 %v3237
      %v3305 = vpop.f32.mrb[0].mxu0
      %v3306 = vadd.f32 0.0, %v3305
      %v3307 = vpop.f32.mrb[0].mxu0
      %3308 = vdwg.mxu0
      %3309 = vrot.lane.b32.xlu0 %v2804, 120
      %v3310 = vpop.permute.xlu0 %3309
      %3311 = vrot.lane.b32.xlu0 %v2804, 88
      %v3312 = vpop.permute.xlu0 %3311
      %v3313 = vsel %vm153, %v3310, 0
      %v3315 = vsel %vm153, %v3312, 0
      %3317 = vmatprep.subr.mxu0 0.0
      %3318 = vmatpush1.xpose.msra.mxu0 %v3315
      %3319 = vmatprep.subr.mxu0 0.0
      %3320 = vmatpush1.xpose.msra.mxu0 0.0
      %3321 = vmatprep.subr.mxu0 0.0
      %3322 = vmatpush1.xpose.msra.mxu0 0.0
      %3323 = vmatprep.subr.mxu0 0.0
      %3324 = vmatpush1.xpose.msra.mxu0 0.0
      %3325 = vmatprep.subr.mxu0 0.0
      %3326 = vmatpush1.xpose.msra.mxu0 0.0
      %3327 = vmatprep.subr.mxu0 0.0
      %3328 = vmatpush1.xpose.msra.mxu0 0.0
      %3329 = vmatprep.subr.mxu0 0.0
      %3330 = vmatpush1.xpose.msra.mxu0 0.0
      %3331 = vmatprep.subr.mxu0 0.0
      %3332 = vmatpush1.xpose.msra.mxu0 0.0
      %3333 = vmatprep.subr.mxu0 0.0
      %3334 = vmatpush1.xpose.msra.mxu0 0.0
      %3335 = vmatprep.subr.mxu0 0.0
      %3336 = vmatpush1.xpose.msra.mxu0 0.0
      %3337 = vmatprep.subr.mxu0 0.0
      %3338 = vmatpush1.xpose.msra.mxu0 0.0
      %3339 = vmatprep.subr.mxu0 0.0
      %3340 = vmatpush1.xpose.msra.mxu0 0.0
      %3341 = vmatprep.subr.mxu0 0.0
      %3342 = vmatpush1.xpose.msra.mxu0 0.0
      %3343 = vmatprep.subr.mxu0 0.0
      %3344 = vmatpush1.xpose.msra.mxu0 0.0
      %3345 = vmatprep.subr.mxu0 0.0
      %3346 = vmatpush1.xpose.msra.mxu0 0.0
      %3347 = vmatprep.subr.mxu0 0.0
      %3348 = vmatpush1.xpose.msra.mxu0 0.0
      %3349 = vmatprep.subr.mxu0 0.0
      %3350 = vmatpush1.xpose.msra.mxu0 0.0
      %3351 = vmatprep.subr.mxu0 0.0
      %3352 = vmatpush1.xpose.msra.mxu0 0.0
      %3353 = vmatprep.subr.mxu0 0.0
      %3354 = vmatpush1.xpose.msra.mxu0 0.0
      %3355 = vmatprep.subr.mxu0 0.0
      %3356 = vmatpush1.xpose.msra.mxu0 0.0
      %3357 = vmatprep.subr.mxu0 0.0
      %3358 = vmatpush1.xpose.msra.mxu0 0.0
      %3359 = vmatprep.subr.mxu0 0.0
      %3360 = vmatpush1.xpose.msra.mxu0 0.0
      %3361 = vmatprep.subr.mxu0 0.0
      %3362 = vmatpush1.xpose.msra.mxu0 0.0
      %3363 = vmatprep.subr.mxu0 0.0
      %3364 = vmatpush1.xpose.msra.mxu0 0.0
      %3365 = vmatprep.subr.mxu0 0.0
      %3366 = vmatpush1.xpose.msra.mxu0 0.0
      %3367 = vmatprep.subr.mxu0 0.0
      %3368 = vmatpush1.xpose.msra.mxu0 0.0
      %3369 = vmatprep.subr.mxu0 0.0
      %3370 = vmatpush1.xpose.msra.mxu0 0.0
      %3371 = vmatprep.subr.mxu0 0.0
      %3372 = vmatpush1.xpose.msra.mxu0 0.0
      %3373 = vmatprep.subr.mxu0 0.0
      %3374 = vmatpush1.xpose.msra.mxu0 0.0
      %3375 = vmatprep.subr.mxu0 0.0
      %3376 = vmatpush1.xpose.msra.mxu0 0.0
      %3377 = vmatprep.subr.mxu0 0.0
      %3378 = vmatpush1.xpose.msra.mxu0 0.0
      %3379 = vmatprep.subr.mxu0 0.0
      %3380 = vmatpush1.xpose.msra.mxu0 0.0
      %3381 = vmatprep.mubr.f32.mxu0 0.0
      %3382 = vmatmul.mubr.f32.gmra.mrb[0].mxu0 %v3313
      %v3383 = vpop.f32.mrb[0].mxu0
      %v3384 = vadd.f32 %v317, %v3383
      %v3385 = vpop.f32.mrb[0].mxu0
      %3386 = vdwg.mxu0
      %3387 = vrot.lane.b32.xlu0 %v2807, 120
      %v3388 = vpop.permute.xlu0 %3387
      %3389 = vrot.lane.b32.xlu0 %v2807, 88
      %v3390 = vpop.permute.xlu0 %3389
      %v3391 = vsel %vm153, %v3388, 0
      %v3393 = vsel %vm153, %v3390, 0
      %3395 = vmatprep.subr.mxu0 0.0
      %3396 = vmatpush1.xpose.msra.mxu0 %v3393
      %3397 = vmatprep.subr.mxu0 0.0
      %3398 = vmatpush1.xpose.msra.mxu0 0.0
      %3399 = vmatprep.subr.mxu0 0.0
      %3400 = vmatpush1.xpose.msra.mxu0 0.0
      %3401 = vmatprep.subr.mxu0 0.0
      %3402 = vmatpush1.xpose.msra.mxu0 0.0
      %3403 = vmatprep.subr.mxu0 0.0
      %3404 = vmatpush1.xpose.msra.mxu0 0.0
      %3405 = vmatprep.subr.mxu0 0.0
      %3406 = vmatpush1.xpose.msra.mxu0 0.0
      %3407 = vmatprep.subr.mxu0 0.0
      %3408 = vmatpush1.xpose.msra.mxu0 0.0
      %3409 = vmatprep.subr.mxu0 0.0
      %3410 = vmatpush1.xpose.msra.mxu0 0.0
      %3411 = vmatprep.subr.mxu0 0.0
      %3412 = vmatpush1.xpose.msra.mxu0 0.0
      %3413 = vmatprep.subr.mxu0 0.0
      %3414 = vmatpush1.xpose.msra.mxu0 0.0
      %3415 = vmatprep.subr.mxu0 0.0
      %3416 = vmatpush1.xpose.msra.mxu0 0.0
      %3417 = vmatprep.subr.mxu0 0.0
      %3418 = vmatpush1.xpose.msra.mxu0 0.0
      %3419 = vmatprep.subr.mxu0 0.0
      %3420 = vmatpush1.xpose.msra.mxu0 0.0
      %3421 = vmatprep.subr.mxu0 0.0
      %3422 = vmatpush1.xpose.msra.mxu0 0.0
      %3423 = vmatprep.subr.mxu0 0.0
      %3424 = vmatpush1.xpose.msra.mxu0 0.0
      %3425 = vmatprep.subr.mxu0 0.0
      %3426 = vmatpush1.xpose.msra.mxu0 0.0
      %3427 = vmatprep.subr.mxu0 0.0
      %3428 = vmatpush1.xpose.msra.mxu0 0.0
      %3429 = vmatprep.subr.mxu0 0.0
      %3430 = vmatpush1.xpose.msra.mxu0 0.0
      %3431 = vmatprep.subr.mxu0 0.0
      %3432 = vmatpush1.xpose.msra.mxu0 0.0
      %3433 = vmatprep.subr.mxu0 0.0
      %3434 = vmatpush1.xpose.msra.mxu0 0.0
      %3435 = vmatprep.subr.mxu0 0.0
      %3436 = vmatpush1.xpose.msra.mxu0 0.0
      %3437 = vmatprep.subr.mxu0 0.0
      %3438 = vmatpush1.xpose.msra.mxu0 0.0
      %3439 = vmatprep.subr.mxu0 0.0
      %3440 = vmatpush1.xpose.msra.mxu0 0.0
      %3441 = vmatprep.subr.mxu0 0.0
      %3442 = vmatpush1.xpose.msra.mxu0 0.0
      %3443 = vmatprep.subr.mxu0 0.0
      %3444 = vmatpush1.xpose.msra.mxu0 0.0
      %3445 = vmatprep.subr.mxu0 0.0
      %3446 = vmatpush1.xpose.msra.mxu0 0.0
      %3447 = vmatprep.subr.mxu0 0.0
      %3448 = vmatpush1.xpose.msra.mxu0 0.0
      %3449 = vmatprep.subr.mxu0 0.0
      %3450 = vmatpush1.xpose.msra.mxu0 0.0
      %3451 = vmatprep.subr.mxu0 0.0
      %3452 = vmatpush1.xpose.msra.mxu0 0.0
      %3453 = vmatprep.subr.mxu0 0.0
      %3454 = vmatpush1.xpose.msra.mxu0 0.0
      %3455 = vmatprep.subr.mxu0 0.0
      %3456 = vmatpush1.xpose.msra.mxu0 0.0
      %3457 = vmatprep.subr.mxu0 0.0
      %3458 = vmatpush1.xpose.msra.mxu0 0.0
      %3459 = vmatprep.mubr.f32.mxu0 0.0
      %3460 = vmatmul.mubr.f32.gmra.mrb[0].mxu0 %v3391
      %v3461 = vpop.f32.mrb[0].mxu0
      %v3462 = vadd.f32 %v318, %v3461
      %v3463 = vpop.f32.mrb[0].mxu0
      %3464 = vdwg.mxu0
      %3465 = vrot.lane.b32.xlu0 %v2812, 120
      %v3466 = vpop.permute.xlu0 %3465
      %3467 = vrot.lane.b32.xlu0 %v2812, 88
      %v3468 = vpop.permute.xlu0 %3467
      %v3469 = vsel %vm153, %v3466, 0
      %v3471 = vsel %vm153, %v3468, 0
      %3473 = vmatprep.subr.mxu0 0.0
      %3474 = vmatpush1.xpose.msra.mxu0 %v3471
      %3475 = vmatprep.subr.mxu0 0.0
      %3476 = vmatpush1.xpose.msra.mxu0 0.0
      %3477 = vmatprep.subr.mxu0 0.0
      %3478 = vmatpush1.xpose.msra.mxu0 0.0
      %3479 = vmatprep.subr.mxu0 0.0
      %3480 = vmatpush1.xpose.msra.mxu0 0.0
      %3481 = vmatprep.subr.mxu0 0.0
      %3482 = vmatpush1.xpose.msra.mxu0 0.0
      %3483 = vmatprep.subr.mxu0 0.0
      %3484 = vmatpush1.xpose.msra.mxu0 0.0
      %3485 = vmatprep.subr.mxu0 0.0
      %3486 = vmatpush1.xpose.msra.mxu0 0.0
      %3487 = vmatprep.subr.mxu0 0.0
      %3488 = vmatpush1.xpose.msra.mxu0 0.0
      %3489 = vmatprep.subr.mxu0 0.0
      %3490 = vmatpush1.xpose.msra.mxu0 0.0
      %3491 = vmatprep.subr.mxu0 0.0
      %3492 = vmatpush1.xpose.msra.mxu0 0.0
      %3493 = vmatprep.subr.mxu0 0.0
      %3494 = vmatpush1.xpose.msra.mxu0 0.0
      %3495 = vmatprep.subr.mxu0 0.0
      %3496 = vmatpush1.xpose.msra.mxu0 0.0
      %3497 = vmatprep.subr.mxu0 0.0
      %3498 = vmatpush1.xpose.msra.mxu0 0.0
      %3499 = vmatprep.subr.mxu0 0.0
      %3500 = vmatpush1.xpose.msra.mxu0 0.0
      %3501 = vmatprep.subr.mxu0 0.0
      %3502 = vmatpush1.xpose.msra.mxu0 0.0
      %3503 = vmatprep.subr.mxu0 0.0
      %3504 = vmatpush1.xpose.msra.mxu0 0.0
      %3505 = vmatprep.subr.mxu0 0.0
      %3506 = vmatpush1.xpose.msra.mxu0 0.0
      %3507 = vmatprep.subr.mxu0 0.0
      %3508 = vmatpush1.xpose.msra.mxu0 0.0
      %3509 = vmatprep.subr.mxu0 0.0
      %3510 = vmatpush1.xpose.msra.mxu0 0.0
      %3511 = vmatprep.subr.mxu0 0.0
      %3512 = vmatpush1.xpose.msra.mxu0 0.0
      %3513 = vmatprep.subr.mxu0 0.0
      %3514 = vmatpush1.xpose.msra.mxu0 0.0
      %3515 = vmatprep.subr.mxu0 0.0
      %3516 = vmatpush1.xpose.msra.mxu0 0.0
      %3517 = vmatprep.subr.mxu0 0.0
      %3518 = vmatpush1.xpose.msra.mxu0 0.0
      %3519 = vmatprep.subr.mxu0 0.0
      %3520 = vmatpush1.xpose.msra.mxu0 0.0
      %3521 = vmatprep.subr.mxu0 0.0
      %3522 = vmatpush1.xpose.msra.mxu0 0.0
      %3523 = vmatprep.subr.mxu0 0.0
      %3524 = vmatpush1.xpose.msra.mxu0 0.0
      %3525 = vmatprep.subr.mxu0 0.0
      %3526 = vmatpush1.xpose.msra.mxu0 0.0
      %3527 = vmatprep.subr.mxu0 0.0
      %3528 = vmatpush1.xpose.msra.mxu0 0.0
      %3529 = vmatprep.subr.mxu0 0.0
      %3530 = vmatpush1.xpose.msra.mxu0 0.0
      %3531 = vmatprep.subr.mxu0 0.0
      %3532 = vmatpush1.xpose.msra.mxu0 0.0
      %3533 = vmatprep.subr.mxu0 0.0
      %3534 = vmatpush1.xpose.msra.mxu0 0.0
      %3535 = vmatprep.subr.mxu0 0.0
      %3536 = vmatpush1.xpose.msra.mxu0 0.0
      %3537 = vmatprep.mubr.f32.mxu0 0.0
      %3538 = vmatmul.mubr.f32.gmra.mrb[0].mxu0 %v3469
      %v3539 = vpop.f32.mrb[0].mxu0
      %v3540 = vadd.f32 %v319, %v3539
      %v3541 = vpop.f32.mrb[0].mxu0
      %3542 = vdwg.mxu0
      %v3543 = vsel %vm153, %v3384, -inf
      %3544 = vmax.xlane.f32.xlu0 %v3543
      %v3545 = vpop.xlane.xlu0 %3544
      %v3546 = vsel %vm153, %v3462, -inf
      %3547 = vmax.xlane.f32.xlu0 %v3546
      %v3548 = vpop.xlane.xlu0 %3547
      %v3549 = vsel %vm153, %v3540, -inf
      %3550 = vmax.xlane.f32.xlu0 %v3549
      %v3551 = vpop.xlane.xlu0 %3550
      %v3552 = vsub.f32 %v3384, %v3545
      %v3553 = vsub.f32 %v3462, %v3548
      %v3554 = vsub.f32 %v3540, %v3551
      %v3555 = vmul.f32 %v3552, 1.442695
      %v3556 = vpow.pop %v3555
      %v3557 = vmul.f32 %v3553, 1.442695
      %v3558 = vpow.pop %v3557
      %v3559 = vmul.f32 %v3554, 1.442695
      %v3560 = vpow.pop %v3559
      %v3561 = vsel %vm153, %v3556, 0.0
      %3562 = vadd.xlane.f32.xlu0 %v3561
      %v3563 = vpop.xlane.xlu0 %3562
      %v3564 = vsel %vm153, %v3558, 0.0
      %3565 = vadd.xlane.f32.xlu0 %v3564
      %v3566 = vpop.xlane.xlu0 %3565
      %v3567 = vsel %vm153, %v3560, 0.0
      %3568 = vadd.xlane.f32.xlu0 %v3567
      %v3569 = vpop.xlane.xlu0 %3568
      %v3570 = vrcp.pop %v3563
      %v3571 = vrcp.pop %v3566
      %v3572 = vrcp.pop %v3569
      %v3573 = vmul.f32 %v3556, %v3570
      %v3574 = vmul.f32 %v3558, %v3571
      %v3575 = vmul.f32 %v3560, %v3572
      %3576 = vrot.lane.b32.xlu0 %v2804, 56
      %v3577 = vpop.permute.xlu0 %3576
      %v3580 = vsel %vm153, %v3573, 0
      %3582 = vmatprep.subr.mxu0 0.0
      %3583 = vmatpush1.msra.mxu0 %v3577
      %3584 = vmatprep.subr.mxu0 0.0
      %3585 = vmatpush1.msra.mxu0 0.0
      %3586 = vmatprep.subr.mxu0 0.0
      %3587 = vmatpush1.msra.mxu0 0.0
      %3588 = vmatprep.subr.mxu0 0.0
      %3589 = vmatpush1.msra.mxu0 0.0
      %3590 = vmatprep.subr.mxu0 0.0
      %3591 = vmatpush1.msra.mxu0 0.0
      %3592 = vmatprep.subr.mxu0 0.0
      %3593 = vmatpush1.msra.mxu0 0.0
      %3594 = vmatprep.subr.mxu0 0.0
      %3595 = vmatpush1.msra.mxu0 0.0
      %3596 = vmatprep.subr.mxu0 0.0
      %3597 = vmatpush1.msra.mxu0 0.0
      %3598 = vmatprep.subr.mxu0 0.0
      %3599 = vmatpush1.msra.mxu0 0.0
      %3600 = vmatprep.subr.mxu0 0.0
      %3601 = vmatpush1.msra.mxu0 0.0
      %3602 = vmatprep.subr.mxu0 0.0
      %3603 = vmatpush1.msra.mxu0 0.0
      %3604 = vmatprep.subr.mxu0 0.0
      %3605 = vmatpush1.msra.mxu0 0.0
      %3606 = vmatprep.subr.mxu0 0.0
      %3607 = vmatpush1.msra.mxu0 0.0
      %3608 = vmatprep.subr.mxu0 0.0
      %3609 = vmatpush1.msra.mxu0 0.0
      %3610 = vmatprep.subr.mxu0 0.0
      %3611 = vmatpush1.msra.mxu0 0.0
      %3612 = vmatprep.subr.mxu0 0.0
      %3613 = vmatpush1.msra.mxu0 0.0
      %3614 = vmatprep.subr.mxu0 0.0
      %3615 = vmatpush1.msra.mxu0 0.0
      %3616 = vmatprep.subr.mxu0 0.0
      %3617 = vmatpush1.msra.mxu0 0.0
      %3618 = vmatprep.subr.mxu0 0.0
      %3619 = vmatpush1.msra.mxu0 0.0
      %3620 = vmatprep.subr.mxu0 0.0
      %3621 = vmatpush1.msra.mxu0 0.0
      %3622 = vmatprep.subr.mxu0 0.0
      %3623 = vmatpush1.msra.mxu0 0.0
      %3624 = vmatprep.subr.mxu0 0.0
      %3625 = vmatpush1.msra.mxu0 0.0
      %3626 = vmatprep.subr.mxu0 0.0
      %3627 = vmatpush1.msra.mxu0 0.0
      %3628 = vmatprep.subr.mxu0 0.0
      %3629 = vmatpush1.msra.mxu0 0.0
      %3630 = vmatprep.subr.mxu0 0.0
      %3631 = vmatpush1.msra.mxu0 0.0
      %3632 = vmatprep.subr.mxu0 0.0
      %3633 = vmatpush1.msra.mxu0 0.0
      %3634 = vmatprep.subr.mxu0 0.0
      %3635 = vmatpush1.msra.mxu0 0.0
      %3636 = vmatprep.subr.mxu0 0.0
      %3637 = vmatpush1.msra.mxu0 0.0
      %3638 = vmatprep.subr.mxu0 0.0
      %3639 = vmatpush1.msra.mxu0 0.0
      %3640 = vmatprep.subr.mxu0 0.0
      %3641 = vmatpush1.msra.mxu0 0.0
      %3642 = vmatprep.subr.mxu0 0.0
      %3643 = vmatpush1.msra.mxu0 0.0
      %3644 = vmatprep.subr.mxu0 0.0
      %3645 = vmatpush1.msra.mxu0 0.0
      %3646 = vmatprep.mubr.f32.mxu0 0.0
      %3647 = vmatmul.mubr.f32.gmra.mrb[0].mxu0 %v3580
      %v3648 = vpop.f32.mrb[0].mxu0
      %v3649 = vadd.f32 0.0, %v3648
      %v3650 = vpop.f32.mrb[0].mxu0
      %3651 = vdwg.mxu0
      %3652 = vrot.lane.b32.xlu0 %v2807, 56
      %v3653 = vpop.permute.xlu0 %3652
      %v3656 = vsel %vm153, %v3574, 0
      %3658 = vmatprep.subr.mxu0 0.0
      %3659 = vmatpush1.msra.mxu0 %v3653
      %3660 = vmatprep.subr.mxu0 0.0
      %3661 = vmatpush1.msra.mxu0 0.0
      %3662 = vmatprep.subr.mxu0 0.0
      %3663 = vmatpush1.msra.mxu0 0.0
      %3664 = vmatprep.subr.mxu0 0.0
      %3665 = vmatpush1.msra.mxu0 0.0
      %3666 = vmatprep.subr.mxu0 0.0
      %3667 = vmatpush1.msra.mxu0 0.0
      %3668 = vmatprep.subr.mxu0 0.0
      %3669 = vmatpush1.msra.mxu0 0.0
      %3670 = vmatprep.subr.mxu0 0.0
      %3671 = vmatpush1.msra.mxu0 0.0
      %3672 = vmatprep.subr.mxu0 0.0
      %3673 = vmatpush1.msra.mxu0 0.0
      %3674 = vmatprep.subr.mxu0 0.0
      %3675 = vmatpush1.msra.mxu0 0.0
      %3676 = vmatprep.subr.mxu0 0.0
      %3677 = vmatpush1.msra.mxu0 0.0
      %3678 = vmatprep.subr.mxu0 0.0
      %3679 = vmatpush1.msra.mxu0 0.0
      %3680 = vmatprep.subr.mxu0 0.0
      %3681 = vmatpush1.msra.mxu0 0.0
      %3682 = vmatprep.subr.mxu0 0.0
      %3683 = vmatpush1.msra.mxu0 0.0
      %3684 = vmatprep.subr.mxu0 0.0
      %3685 = vmatpush1.msra.mxu0 0.0
      %3686 = vmatprep.subr.mxu0 0.0
      %3687 = vmatpush1.msra.mxu0 0.0
      %3688 = vmatprep.subr.mxu0 0.0
      %3689 = vmatpush1.msra.mxu0 0.0
      %3690 = vmatprep.subr.mxu0 0.0
      %3691 = vmatpush1.msra.mxu0 0.0
      %3692 = vmatprep.subr.mxu0 0.0
      %3693 = vmatpush1.msra.mxu0 0.0
      %3694 = vmatprep.subr.mxu0 0.0
      %3695 = vmatpush1.msra.mxu0 0.0
      %3696 = vmatprep.subr.mxu0 0.0
      %3697 = vmatpush1.msra.mxu0 0.0
      %3698 = vmatprep.subr.mxu0 0.0
      %3699 = vmatpush1.msra.mxu0 0.0
      %3700 = vmatprep.subr.mxu0 0.0
      %3701 = vmatpush1.msra.mxu0 0.0
      %3702 = vmatprep.subr.mxu0 0.0
      %3703 = vmatpush1.msra.mxu0 0.0
      %3704 = vmatprep.subr.mxu0 0.0
      %3705 = vmatpush1.msra.mxu0 0.0
      %3706 = vmatprep.subr.mxu0 0.0
      %3707 = vmatpush1.msra.mxu0 0.0
      %3708 = vmatprep.subr.mxu0 0.0
      %3709 = vmatpush1.msra.mxu0 0.0
      %3710 = vmatprep.subr.mxu0 0.0
      %3711 = vmatpush1.msra.mxu0 0.0
      %3712 = vmatprep.subr.mxu0 0.0
      %3713 = vmatpush1.msra.mxu0 0.0
      %3714 = vmatprep.subr.mxu0 0.0
      %3715 = vmatpush1.msra.mxu0 0.0
      %3716 = vmatprep.subr.mxu0 0.0
      %3717 = vmatpush1.msra.mxu0 0.0
      %3718 = vmatprep.subr.mxu0 0.0
      %3719 = vmatpush1.msra.mxu0 0.0
      %3720 = vmatprep.subr.mxu0 0.0
      %3721 = vmatpush1.msra.mxu0 0.0
      %3722 = vmatprep.mubr.f32.mxu0 0.0
      %3723 = vmatmul.mubr.f32.gmra.mrb[0].mxu0 %v3656
      %v3724 = vpop.f32.mrb[0].mxu0
      %v3725 = vadd.f32 0.0, %v3724
      %v3726 = vpop.f32.mrb[0].mxu0
      %3727 = vdwg.mxu0
      %3728 = vrot.lane.b32.xlu0 %v2812, 56
      %v3729 = vpop.permute.xlu0 %3728
      %v3732 = vsel %vm153, %v3575, 0
      %3734 = vmatprep.subr.mxu0 0.0
      %3735 = vmatpush1.msra.mxu0 %v3729
      %3736 = vmatprep.subr.mxu0 0.0
      %3737 = vmatpush1.msra.mxu0 0.0
      %3738 = vmatprep.subr.mxu0 0.0
      %3739 = vmatpush1.msra.mxu0 0.0
      %3740 = vmatprep.subr.mxu0 0.0
      %3741 = vmatpush1.msra.mxu0 0.0
      %3742 = vmatprep.subr.mxu0 0.0
      %3743 = vmatpush1.msra.mxu0 0.0
      %3744 = vmatprep.subr.mxu0 0.0
      %3745 = vmatpush1.msra.mxu0 0.0
      %3746 = vmatprep.subr.mxu0 0.0
      %3747 = vmatpush1.msra.mxu0 0.0
      %3748 = vmatprep.subr.mxu0 0.0
      %3749 = vmatpush1.msra.mxu0 0.0
      %3750 = vmatprep.subr.mxu0 0.0
      %3751 = vmatpush1.msra.mxu0 0.0
      %3752 = vmatprep.subr.mxu0 0.0
      %3753 = vmatpush1.msra.mxu0 0.0
      %3754 = vmatprep.subr.mxu0 0.0
      %3755 = vmatpush1.msra.mxu0 0.0
      %3756 = vmatprep.subr.mxu0 0.0
      %3757 = vmatpush1.msra.mxu0 0.0
      %3758 = vmatprep.subr.mxu0 0.0
      %3759 = vmatpush1.msra.mxu0 0.0
      %3760 = vmatprep.subr.mxu0 0.0
      %3761 = vmatpush1.msra.mxu0 0.0
      %3762 = vmatprep.subr.mxu0 0.0
      %3763 = vmatpush1.msra.mxu0 0.0
      %3764 = vmatprep.subr.mxu0 0.0
      %3765 = vmatpush1.msra.mxu0 0.0
      %3766 = vmatprep.subr.mxu0 0.0
      %3767 = vmatpush1.msra.mxu0 0.0
      %3768 = vmatprep.subr.mxu0 0.0
      %3769 = vmatpush1.msra.mxu0 0.0
      %3770 = vmatprep.subr.mxu0 0.0
      %3771 = vmatpush1.msra.mxu0 0.0
      %3772 = vmatprep.subr.mxu0 0.0
      %3773 = vmatpush1.msra.mxu0 0.0
      %3774 = vmatprep.subr.mxu0 0.0
      %3775 = vmatpush1.msra.mxu0 0.0
      %3776 = vmatprep.subr.mxu0 0.0
      %3777 = vmatpush1.msra.mxu0 0.0
      %3778 = vmatprep.subr.mxu0 0.0
      %3779 = vmatpush1.msra.mxu0 0.0
      %3780 = vmatprep.subr.mxu0 0.0
      %3781 = vmatpush1.msra.mxu0 0.0
      %3782 = vmatprep.subr.mxu0 0.0
      %3783 = vmatpush1.msra.mxu0 0.0
      %3784 = vmatprep.subr.mxu0 0.0
      %3785 = vmatpush1.msra.mxu0 0.0
      %3786 = vmatprep.subr.mxu0 0.0
      %3787 = vmatpush1.msra.mxu0 0.0
      %3788 = vmatprep.subr.mxu0 0.0
      %3789 = vmatpush1.msra.mxu0 0.0
      %3790 = vmatprep.subr.mxu0 0.0
      %3791 = vmatpush1.msra.mxu0 0.0
      %3792 = vmatprep.subr.mxu0 0.0
      %3793 = vmatpush1.msra.mxu0 0.0
      %3794 = vmatprep.subr.mxu0 0.0
      %3795 = vmatpush1.msra.mxu0 0.0
      %3796 = vmatprep.subr.mxu0 0.0
      %3797 = vmatpush1.msra.mxu0 0.0
      %3798 = vmatprep.mubr.f32.mxu0 0.0
      %3799 = vmatmul.mubr.f32.gmra.mrb[0].mxu0 %v3732
      %v3800 = vpop.f32.mrb[0].mxu0
      %v3801 = vadd.f32 0.0, %v3800
      %v3802 = vpop.f32.mrb[0].mxu0
      %3803 = vdwg.mxu0
      %3804 = vrot.lane.b32.xlu0 %v2804, 112
      %v3805 = vpop.permute.xlu0 %3804
      %3806 = vrot.lane.b32.xlu0 %v2804, 80
      %v3807 = vpop.permute.xlu0 %3806
      %v3808 = vsel %vm153, %v3805, 0
      %v3810 = vsel %vm153, %v3807, 0
      %3812 = vmatprep.subr.mxu0 0.0
      %3813 = vmatpush1.xpose.msra.mxu0 %v3810
      %3814 = vmatprep.subr.mxu0 0.0
      %3815 = vmatpush1.xpose.msra.mxu0 0.0
      %3816 = vmatprep.subr.mxu0 0.0
      %3817 = vmatpush1.xpose.msra.mxu0 0.0
      %3818 = vmatprep.subr.mxu0 0.0
      %3819 = vmatpush1.xpose.msra.mxu0 0.0
      %3820 = vmatprep.subr.mxu0 0.0
      %3821 = vmatpush1.xpose.msra.mxu0 0.0
      %3822 = vmatprep.subr.mxu0 0.0
      %3823 = vmatpush1.xpose.msra.mxu0 0.0
      %3824 = vmatprep.subr.mxu0 0.0
      %3825 = vmatpush1.xpose.msra.mxu0 0.0
      %3826 = vmatprep.subr.mxu0 0.0
      %3827 = vmatpush1.xpose.msra.mxu0 0.0
      %3828 = vmatprep.subr.mxu0 0.0
      %3829 = vmatpush1.xpose.msra.mxu0 0.0
      %3830 = vmatprep.subr.mxu0 0.0
      %3831 = vmatpush1.xpose.msra.mxu0 0.0
      %3832 = vmatprep.subr.mxu0 0.0
      %3833 = vmatpush1.xpose.msra.mxu0 0.0
      %3834 = vmatprep.subr.mxu0 0.0
      %3835 = vmatpush1.xpose.msra.mxu0 0.0
      %3836 = vmatprep.subr.mxu0 0.0
      %3837 = vmatpush1.xpose.msra.mxu0 0.0
      %3838 = vmatprep.subr.mxu0 0.0
      %3839 = vmatpush1.xpose.msra.mxu0 0.0
      %3840 = vmatprep.subr.mxu0 0.0
      %3841 = vmatpush1.xpose.msra.mxu0 0.0
      %3842 = vmatprep.subr.mxu0 0.0
      %3843 = vmatpush1.xpose.msra.mxu0 0.0
      %3844 = vmatprep.subr.mxu0 0.0
      %3845 = vmatpush1.xpose.msra.mxu0 0.0
      %3846 = vmatprep.subr.mxu0 0.0
      %3847 = vmatpush1.xpose.msra.mxu0 0.0
      %3848 = vmatprep.subr.mxu0 0.0
      %3849 = vmatpush1.xpose.msra.mxu0 0.0
      %3850 = vmatprep.subr.mxu0 0.0
      %3851 = vmatpush1.xpose.msra.mxu0 0.0
      %3852 = vmatprep.subr.mxu0 0.0
      %3853 = vmatpush1.xpose.msra.mxu0 0.0
      %3854 = vmatprep.subr.mxu0 0.0
      %3855 = vmatpush1.xpose.msra.mxu0 0.0
      %3856 = vmatprep.subr.mxu0 0.0
      %3857 = vmatpush1.xpose.msra.mxu0 0.0
      %3858 = vmatprep.subr.mxu0 0.0
      %3859 = vmatpush1.xpose.msra.mxu0 0.0
      %3860 = vmatprep.subr.mxu0 0.0
      %3861 = vmatpush1.xpose.msra.mxu0 0.0
      %3862 = vmatprep.subr.mxu0 0.0
      %3863 = vmatpush1.xpose.msra.mxu0 0.0
      %3864 = vmatprep.subr.mxu0 0.0
      %3865 = vmatpush1.xpose.msra.mxu0 0.0
      %3866 = vmatprep.subr.mxu0 0.0
      %3867 = vmatpush1.xpose.msra.mxu0 0.0
      %3868 = vmatprep.subr.mxu0 0.0
      %3869 = vmatpush1.xpose.msra.mxu0 0.0
      %3870 = vmatprep.subr.mxu0 0.0
      %3871 = vmatpush1.xpose.msra.mxu0 0.0
      %3872 = vmatprep.subr.mxu0 0.0
      %3873 = vmatpush1.xpose.msra.mxu0 0.0
      %3874 = vmatprep.subr.mxu0 0.0
      %3875 = vmatpush1.xpose.msra.mxu0 0.0
      %3876 = vmatprep.mubr.f32.mxu0 0.0
      %3877 = vmatmul.mubr.f32.gmra.mrb[0].mxu0 %v3808
      %v3878 = vpop.f32.mrb[0].mxu0
      %v3879 = vadd.f32 %v317, %v3878
      %v3880 = vpop.f32.mrb[0].mxu0
      %3881 = vdwg.mxu0
      %3882 = vrot.lane.b32.xlu0 %v2807, 112
      %v3883 = vpop.permute.xlu0 %3882
      %3884 = vrot.lane.b32.xlu0 %v2807, 80
      %v3885 = vpop.permute.xlu0 %3884
      %v3886 = vsel %vm153, %v3883, 0
      %v3888 = vsel %vm153, %v3885, 0
      %3890 = vmatprep.subr.mxu0 0.0
      %3891 = vmatpush1.xpose.msra.mxu0 %v3888
      %3892 = vmatprep.subr.mxu0 0.0
      %3893 = vmatpush1.xpose.msra.mxu0 0.0
      %3894 = vmatprep.subr.mxu0 0.0
      %3895 = vmatpush1.xpose.msra.mxu0 0.0
      %3896 = vmatprep.subr.mxu0 0.0
      %3897 = vmatpush1.xpose.msra.mxu0 0.0
      %3898 = vmatprep.subr.mxu0 0.0
      %3899 = vmatpush1.xpose.msra.mxu0 0.0
      %3900 = vmatprep.subr.mxu0 0.0
      %3901 = vmatpush1.xpose.msra.mxu0 0.0
      %3902 = vmatprep.subr.mxu0 0.0
      %3903 = vmatpush1.xpose.msra.mxu0 0.0
      %3904 = vmatprep.subr.mxu0 0.0
      %3905 = vmatpush1.xpose.msra.mxu0 0.0
      %3906 = vmatprep.subr.mxu0 0.0
      %3907 = vmatpush1.xpose.msra.mxu0 0.0
      %3908 = vmatprep.subr.mxu0 0.0
      %3909 = vmatpush1.xpose.msra.mxu0 0.0
      %3910 = vmatprep.subr.mxu0 0.0
      %3911 = vmatpush1.xpose.msra.mxu0 0.0
      %3912 = vmatprep.subr.mxu0 0.0
      %3913 = vmatpush1.xpose.msra.mxu0 0.0
      %3914 = vmatprep.subr.mxu0 0.0
      %3915 = vmatpush1.xpose.msra.mxu0 0.0
      %3916 = vmatprep.subr.mxu0 0.0
      %3917 = vmatpush1.xpose.msra.mxu0 0.0
      %3918 = vmatprep.subr.mxu0 0.0
      %3919 = vmatpush1.xpose.msra.mxu0 0.0
      %3920 = vmatprep.subr.mxu0 0.0
      %3921 = vmatpush1.xpose.msra.mxu0 0.0
      %3922 = vmatprep.subr.mxu0 0.0
      %3923 = vmatpush1.xpose.msra.mxu0 0.0
      %3924 = vmatprep.subr.mxu0 0.0
      %3925 = vmatpush1.xpose.msra.mxu0 0.0
      %3926 = vmatprep.subr.mxu0 0.0
      %3927 = vmatpush1.xpose.msra.mxu0 0.0
      %3928 = vmatprep.subr.mxu0 0.0
      %3929 = vmatpush1.xpose.msra.mxu0 0.0
      %3930 = vmatprep.subr.mxu0 0.0
      %3931 = vmatpush1.xpose.msra.mxu0 0.0
      %3932 = vmatprep.subr.mxu0 0.0
      %3933 = vmatpush1.xpose.msra.mxu0 0.0
      %3934 = vmatprep.subr.mxu0 0.0
      %3935 = vmatpush1.xpose.msra.mxu0 0.0
      %3936 = vmatprep.subr.mxu0 0.0
      %3937 = vmatpush1.xpose.msra.mxu0 0.0
      %3938 = vmatprep.subr.mxu0 0.0
      %3939 = vmatpush1.xpose.msra.mxu0 0.0
      %3940 = vmatprep.subr.mxu0 0.0
      %3941 = vmatpush1.xpose.msra.mxu0 0.0
      %3942 = vmatprep.subr.mxu0 0.0
      %3943 = vmatpush1.xpose.msra.mxu0 0.0
      %3944 = vmatprep.subr.mxu0 0.0
      %3945 = vmatpush1.xpose.msra.mxu0 0.0
      %3946 = vmatprep.subr.mxu0 0.0
      %3947 = vmatpush1.xpose.msra.mxu0 0.0
      %3948 = vmatprep.subr.mxu0 0.0
      %3949 = vmatpush1.xpose.msra.mxu0 0.0
      %3950 = vmatprep.subr.mxu0 0.0
      %3951 = vmatpush1.xpose.msra.mxu0 0.0
      %3952 = vmatprep.subr.mxu0 0.0
      %3953 = vmatpush1.xpose.msra.mxu0 0.0
      %3954 = vmatprep.mubr.f32.mxu0 0.0
      %3955 = vmatmul.mubr.f32.gmra.mrb[0].mxu0 %v3886
      %v3956 = vpop.f32.mrb[0].mxu0
      %v3957 = vadd.f32 %v318, %v3956
      %v3958 = vpop.f32.mrb[0].mxu0
      %3959 = vdwg.mxu0
      %3960 = vrot.lane.b32.xlu0 %v2812, 112
      %v3961 = vpop.permute.xlu0 %3960
      %3962 = vrot.lane.b32.xlu0 %v2812, 80
      %v3963 = vpop.permute.xlu0 %3962
      %v3964 = vsel %vm153, %v3961, 0
      %v3966 = vsel %vm153, %v3963, 0
      %3968 = vmatprep.subr.mxu0 0.0
      %3969 = vmatpush1.xpose.msra.mxu0 %v3966
      %3970 = vmatprep.subr.mxu0 0.0
      %3971 = vmatpush1.xpose.msra.mxu0 0.0
      %3972 = vmatprep.subr.mxu0 0.0
      %3973 = vmatpush1.xpose.msra.mxu0 0.0
      %3974 = vmatprep.subr.mxu0 0.0
      %3975 = vmatpush1.xpose.msra.mxu0 0.0
      %3976 = vmatprep.subr.mxu0 0.0
      %3977 = vmatpush1.xpose.msra.mxu0 0.0
      %3978 = vmatprep.subr.mxu0 0.0
      %3979 = vmatpush1.xpose.msra.mxu0 0.0
      %3980 = vmatprep.subr.mxu0 0.0
      %3981 = vmatpush1.xpose.msra.mxu0 0.0
      %3982 = vmatprep.subr.mxu0 0.0
      %3983 = vmatpush1.xpose.msra.mxu0 0.0
      %3984 = vmatprep.subr.mxu0 0.0
      %3985 = vmatpush1.xpose.msra.mxu0 0.0
      %3986 = vmatprep.subr.mxu0 0.0
      %3987 = vmatpush1.xpose.msra.mxu0 0.0
      %3988 = vmatprep.subr.mxu0 0.0
      %3989 = vmatpush1.xpose.msra.mxu0 0.0
      %3990 = vmatprep.subr.mxu0 0.0
      %3991 = vmatpush1.xpose.msra.mxu0 0.0
      %3992 = vmatprep.subr.mxu0 0.0
      %3993 = vmatpush1.xpose.msra.mxu0 0.0
      %3994 = vmatprep.subr.mxu0 0.0
      %3995 = vmatpush1.xpose.msra.mxu0 0.0
      %3996 = vmatprep.subr.mxu0 0.0
      %3997 = vmatpush1.xpose.msra.mxu0 0.0
      %3998 = vmatprep.subr.mxu0 0.0
      %3999 = vmatpush1.xpose.msra.mxu0 0.0
      %4000 = vmatprep.subr.mxu0 0.0
      %4001 = vmatpush1.xpose.msra.mxu0 0.0
      %4002 = vmatprep.subr.mxu0 0.0
      %4003 = vmatpush1.xpose.msra.mxu0 0.0
      %4004 = vmatprep.subr.mxu0 0.0
      %4005 = vmatpush1.xpose.msra.mxu0 0.0
      %4006 = vmatprep.subr.mxu0 0.0
      %4007 = vmatpush1.xpose.msra.mxu0 0.0
      %4008 = vmatprep.subr.mxu0 0.0
      %4009 = vmatpush1.xpose.msra.mxu0 0.0
      %4010 = vmatprep.subr.mxu0 0.0
      %4011 = vmatpush1.xpose.msra.mxu0 0.0
      %4012 = vmatprep.subr.mxu0 0.0
      %4013 = vmatpush1.xpose.msra.mxu0 0.0
      %4014 = vmatprep.subr.mxu0 0.0
      %4015 = vmatpush1.xpose.msra.mxu0 0.0
      %4016 = vmatprep.subr.mxu0 0.0
      %4017 = vmatpush1.xpose.msra.mxu0 0.0
      %4018 = vmatprep.subr.mxu0 0.0
      %4019 = vmatpush1.xpose.msra.mxu0 0.0
      %4020 = vmatprep.subr.mxu0 0.0
      %4021 = vmatpush1.xpose.msra.mxu0 0.0
      %4022 = vmatprep.subr.mxu0 0.0
      %4023 = vmatpush1.xpose.msra.mxu0 0.0
      %4024 = vmatprep.subr.mxu0 0.0
      %4025 = vmatpush1.xpose.msra.mxu0 0.0
      %4026 = vmatprep.subr.mxu0 0.0
      %4027 = vmatpush1.xpose.msra.mxu0 0.0
      %4028 = vmatprep.subr.mxu0 0.0
      %4029 = vmatpush1.xpose.msra.mxu0 0.0
      %4030 = vmatprep.subr.mxu0 0.0
      %4031 = vmatpush1.xpose.msra.mxu0 0.0
      %4032 = vmatprep.mubr.f32.mxu0 0.0
      %4033 = vmatmul.mubr.f32.gmra.mrb[0].mxu0 %v3964
      %v4034 = vpop.f32.mrb[0].mxu0
      %v4035 = vadd.f32 %v319, %v4034
      %v4036 = vpop.f32.mrb[0].mxu0
      %4037 = vdwg.mxu0
      %v4038 = vsel %vm153, %v3879, -inf
      %4039 = vmax.xlane.f32.xlu0 %v4038
      %v4040 = vpop.xlane.xlu0 %4039
      %v4041 = vsel %vm153, %v3957, -inf
      %4042 = vmax.xlane.f32.xlu0 %v4041
      %v4043 = vpop.xlane.xlu0 %4042
      %v4044 = vsel %vm153, %v4035, -inf
      %4045 = vmax.xlane.f32.xlu0 %v4044
      %v4046 = vpop.xlane.xlu0 %4045
      %v4047 = vsub.f32 %v3879, %v4040
      %v4048 = vsub.f32 %v3957, %v4043
      %v4049 = vsub.f32 %v4035, %v4046
      %v4050 = vmul.f32 %v4047, 1.442695
      %v4051 = vpow.pop %v4050
      %v4052 = vmul.f32 %v4048, 1.442695
      %v4053 = vpow.pop %v4052
      %v4054 = vmul.f32 %v4049, 1.442695
      %v4055 = vpow.pop %v4054
      %v4056 = vsel %vm153, %v4051, 0.0
      %4057 = vadd.xlane.f32.xlu0 %v4056
      %v4058 = vpop.xlane.xlu0 %4057
      %v4059 = vsel %vm153, %v4053, 0.0
      %4060 = vadd.xlane.f32.xlu0 %v4059
      %v4061 = vpop.xlane.xlu0 %4060
      %v4062 = vsel %vm153, %v4055, 0.0
      %4063 = vadd.xlane.f32.xlu0 %v4062
      %v4064 = vpop.xlane.xlu0 %4063
      %v4065 = vrcp.pop %v4058
      %v4066 = vrcp.pop %v4061
      %v4067 = vrcp.pop %v4064
      %v4068 = vmul.f32 %v4051, %v4065
      %v4069 = vmul.f32 %v4053, %v4066
      %v4070 = vmul.f32 %v4055, %v4067
      %4071 = vrot.lane.b32.xlu0 %v2804, 48
      %v4072 = vpop.permute.xlu0 %4071
      %v4075 = vsel %vm153, %v4068, 0
      %4077 = vmatprep.subr.mxu0 0.0
      %4078 = vmatpush1.msra.mxu0 %v4072
      %4079 = vmatprep.subr.mxu0 0.0
      %4080 = vmatpush1.msra.mxu0 0.0
      %4081 = vmatprep.subr.mxu0 0.0
      %4082 = vmatpush1.msra.mxu0 0.0
      %4083 = vmatprep.subr.mxu0 0.0
      %4084 = vmatpush1.msra.mxu0 0.0
      %4085 = vmatprep.subr.mxu0 0.0
      %4086 = vmatpush1.msra.mxu0 0.0
      %4087 = vmatprep.subr.mxu0 0.0
      %4088 = vmatpush1.msra.mxu0 0.0
      %4089 = vmatprep.subr.mxu0 0.0
      %4090 = vmatpush1.msra.mxu0 0.0
      %4091 = vmatprep.subr.mxu0 0.0
      %4092 = vmatpush1.msra.mxu0 0.0
      %4093 = vmatprep.subr.mxu0 0.0
      %4094 = vmatpush1.msra.mxu0 0.0
      %4095 = vmatprep.subr.mxu0 0.0
      %4096 = vmatpush1.msra.mxu0 0.0
      %4097 = vmatprep.subr.mxu0 0.0
      %4098 = vmatpush1.msra.mxu0 0.0
      %4099 = vmatprep.subr.mxu0 0.0
      %4100 = vmatpush1.msra.mxu0 0.0
      %4101 = vmatprep.subr.mxu0 0.0
      %4102 = vmatpush1.msra.mxu0 0.0
      %4103 = vmatprep.subr.mxu0 0.0
      %4104 = vmatpush1.msra.mxu0 0.0
      %4105 = vmatprep.subr.mxu0 0.0
      %4106 = vmatpush1.msra.mxu0 0.0
      %4107 = vmatprep.subr.mxu0 0.0
      %4108 = vmatpush1.msra.mxu0 0.0
      %4109 = vmatprep.subr.mxu0 0.0
      %4110 = vmatpush1.msra.mxu0 0.0
      %4111 = vmatprep.subr.mxu0 0.0
      %4112 = vmatpush1.msra.mxu0 0.0
      %4113 = vmatprep.subr.mxu0 0.0
      %4114 = vmatpush1.msra.mxu0 0.0
      %4115 = vmatprep.subr.mxu0 0.0
      %4116 = vmatpush1.msra.mxu0 0.0
      %4117 = vmatprep.subr.mxu0 0.0
      %4118 = vmatpush1.msra.mxu0 0.0
      %4119 = vmatprep.subr.mxu0 0.0
      %4120 = vmatpush1.msra.mxu0 0.0
      %4121 = vmatprep.subr.mxu0 0.0
      %4122 = vmatpush1.msra.mxu0 0.0
      %4123 = vmatprep.subr.mxu0 0.0
      %4124 = vmatpush1.msra.mxu0 0.0
      %4125 = vmatprep.subr.mxu0 0.0
      %4126 = vmatpush1.msra.mxu0 0.0
      %4127 = vmatprep.subr.mxu0 0.0
      %4128 = vmatpush1.msra.mxu0 0.0
      %4129 = vmatprep.subr.mxu0 0.0
      %4130 = vmatpush1.msra.mxu0 0.0
      %4131 = vmatprep.subr.mxu0 0.0
      %4132 = vmatpush1.msra.mxu0 0.0
      %4133 = vmatprep.subr.mxu0 0.0
      %4134 = vmatpush1.msra.mxu0 0.0
      %4135 = vmatprep.subr.mxu0 0.0
      %4136 = vmatpush1.msra.mxu0 0.0
      %4137 = vmatprep.subr.mxu0 0.0
      %4138 = vmatpush1.msra.mxu0 0.0
      %4139 = vmatprep.subr.mxu0 0.0
      %4140 = vmatpush1.msra.mxu0 0.0
      %4141 = vmatprep.mubr.f32.mxu0 0.0
      %4142 = vmatmul.mubr.f32.gmra.mrb[0].mxu0 %v4075
      %v4143 = vpop.f32.mrb[0].mxu0
      %v4144 = vadd.f32 0.0, %v4143
      %v4145 = vpop.f32.mrb[0].mxu0
      %4146 = vdwg.mxu0
      %4147 = vrot.lane.b32.xlu0 %v2807, 48
      %v4148 = vpop.permute.xlu0 %4147
      %v4151 = vsel %vm153, %v4069, 0
      %4153 = vmatprep.subr.mxu0 0.0
      %4154 = vmatpush1.msra.mxu0 %v4148
      %4155 = vmatprep.subr.mxu0 0.0
      %4156 = vmatpush1.msra.mxu0 0.0
      %4157 = vmatprep.subr.mxu0 0.0
      %4158 = vmatpush1.msra.mxu0 0.0
      %4159 = vmatprep.subr.mxu0 0.0
      %4160 = vmatpush1.msra.mxu0 0.0
      %4161 = vmatprep.subr.mxu0 0.0
      %4162 = vmatpush1.msra.mxu0 0.0
      %4163 = vmatprep.subr.mxu0 0.0
      %4164 = vmatpush1.msra.mxu0 0.0
      %4165 = vmatprep.subr.mxu0 0.0
      %4166 = vmatpush1.msra.mxu0 0.0
      %4167 = vmatprep.subr.mxu0 0.0
      %4168 = vmatpush1.msra.mxu0 0.0
      %4169 = vmatprep.subr.mxu0 0.0
      %4170 = vmatpush1.msra.mxu0 0.0
      %4171 = vmatprep.subr.mxu0 0.0
      %4172 = vmatpush1.msra.mxu0 0.0
      %4173 = vmatprep.subr.mxu0 0.0
      %4174 = vmatpush1.msra.mxu0 0.0
      %4175 = vmatprep.subr.mxu0 0.0
      %4176 = vmatpush1.msra.mxu0 0.0
      %4177 = vmatprep.subr.mxu0 0.0
      %4178 = vmatpush1.msra.mxu0 0.0
      %4179 = vmatprep.subr.mxu0 0.0
      %4180 = vmatpush1.msra.mxu0 0.0
      %4181 = vmatprep.subr.mxu0 0.0
      %4182 = vmatpush1.msra.mxu0 0.0
      %4183 = vmatprep.subr.mxu0 0.0
      %4184 = vmatpush1.msra.mxu0 0.0
      %4185 = vmatprep.subr.mxu0 0.0
      %4186 = vmatpush1.msra.mxu0 0.0
      %4187 = vmatprep.subr.mxu0 0.0
      %4188 = vmatpush1.msra.mxu0 0.0
      %4189 = vmatprep.subr.mxu0 0.0
      %4190 = vmatpush1.msra.mxu0 0.0
      %4191 = vmatprep.subr.mxu0 0.0
      %4192 = vmatpush1.msra.mxu0 0.0
      %4193 = vmatprep.subr.mxu0 0.0
      %4194 = vmatpush1.msra.mxu0 0.0
      %4195 = vmatprep.subr.mxu0 0.0
      %4196 = vmatpush1.msra.mxu0 0.0
      %4197 = vmatprep.subr.mxu0 0.0
      %4198 = vmatpush1.msra.mxu0 0.0
      %4199 = vmatprep.subr.mxu0 0.0
      %4200 = vmatpush1.msra.mxu0 0.0
      %4201 = vmatprep.subr.mxu0 0.0
      %4202 = vmatpush1.msra.mxu0 0.0
      %4203 = vmatprep.subr.mxu0 0.0
      %4204 = vmatpush1.msra.mxu0 0.0
      %4205 = vmatprep.subr.mxu0 0.0
      %4206 = vmatpush1.msra.mxu0 0.0
      %4207 = vmatprep.subr.mxu0 0.0
      %4208 = vmatpush1.msra.mxu0 0.0
      %4209 = vmatprep.subr.mxu0 0.0
      %4210 = vmatpush1.msra.mxu0 0.0
      %4211 = vmatprep.subr.mxu0 0.0
      %4212 = vmatpush1.msra.mxu0 0.0
      %4213 = vmatprep.subr.mxu0 0.0
      %4214 = vmatpush1.msra.mxu0 0.0
      %4215 = vmatprep.subr.mxu0 0.0
      %4216 = vmatpush1.msra.mxu0 0.0
      %4217 = vmatprep.mubr.f32.mxu0 0.0
      %4218 = vmatmul.mubr.f32.gmra.mrb[0].mxu0 %v4151
      %v4219 = vpop.f32.mrb[0].mxu0
      %v4220 = vadd.f32 0.0, %v4219
      %v4221 = vpop.f32.mrb[0].mxu0
      %4222 = vdwg.mxu0
      %4223 = vrot.lane.b32.xlu0 %v2812, 48
      %v4224 = vpop.permute.xlu0 %4223
      %v4227 = vsel %vm153, %v4070, 0
      %4229 = vmatprep.subr.mxu0 0.0
      %4230 = vmatpush1.msra.mxu0 %v4224
      %4231 = vmatprep.subr.mxu0 0.0
      %4232 = vmatpush1.msra.mxu0 0.0
      %4233 = vmatprep.subr.mxu0 0.0
      %4234 = vmatpush1.msra.mxu0 0.0
      %4235 = vmatprep.subr.mxu0 0.0
      %4236 = vmatpush1.msra.mxu0 0.0
      %4237 = vmatprep.subr.mxu0 0.0
      %4238 = vmatpush1.msra.mxu0 0.0
      %4239 = vmatprep.subr.mxu0 0.0
      %4240 = vmatpush1.msra.mxu0 0.0
      %4241 = vmatprep.subr.mxu0 0.0
      %4242 = vmatpush1.msra.mxu0 0.0
      %4243 = vmatprep.subr.mxu0 0.0
      %4244 = vmatpush1.msra.mxu0 0.0
      %4245 = vmatprep.subr.mxu0 0.0
      %4246 = vmatpush1.msra.mxu0 0.0
      %4247 = vmatprep.subr.mxu0 0.0
      %4248 = vmatpush1.msra.mxu0 0.0
      %4249 = vmatprep.subr.mxu0 0.0
      %4250 = vmatpush1.msra.mxu0 0.0
      %4251 = vmatprep.subr.mxu0 0.0
      %4252 = vmatpush1.msra.mxu0 0.0
      %4253 = vmatprep.subr.mxu0 0.0
      %4254 = vmatpush1.msra.mxu0 0.0
      %4255 = vmatprep.subr.mxu0 0.0
      %4256 = vmatpush1.msra.mxu0 0.0
      %4257 = vmatprep.subr.mxu0 0.0
      %4258 = vmatpush1.msra.mxu0 0.0
      %4259 = vmatprep.subr.mxu0 0.0
      %4260 = vmatpush1.msra.mxu0 0.0
      %4261 = vmatprep.subr.mxu0 0.0
      %4262 = vmatpush1.msra.mxu0 0.0
      %4263 = vmatprep.subr.mxu0 0.0
      %4264 = vmatpush1.msra.mxu0 0.0
      %4265 = vmatprep.subr.mxu0 0.0
      %4266 = vmatpush1.msra.mxu0 0.0
      %4267 = vmatprep.subr.mxu0 0.0
      %4268 = vmatpush1.msra.mxu0 0.0
      %4269 = vmatprep.subr.mxu0 0.0
      %4270 = vmatpush1.msra.mxu0 0.0
      %4271 = vmatprep.subr.mxu0 0.0
      %4272 = vmatpush1.msra.mxu0 0.0
      %4273 = vmatprep.subr.mxu0 0.0
      %4274 = vmatpush1.msra.mxu0 0.0
      %4275 = vmatprep.subr.mxu0 0.0
      %4276 = vmatpush1.msra.mxu0 0.0
      %4277 = vmatprep.subr.mxu0 0.0
      %4278 = vmatpush1.msra.mxu0 0.0
      %4279 = vmatprep.subr.mxu0 0.0
      %4280 = vmatpush1.msra.mxu0 0.0
      %4281 = vmatprep.subr.mxu0 0.0
      %4282 = vmatpush1.msra.mxu0 0.0
      %4283 = vmatprep.subr.mxu0 0.0
      %4284 = vmatpush1.msra.mxu0 0.0
      %4285 = vmatprep.subr.mxu0 0.0
      %4286 = vmatpush1.msra.mxu0 0.0
      %4287 = vmatprep.subr.mxu0 0.0
      %4288 = vmatpush1.msra.mxu0 0.0
      %4289 = vmatprep.subr.mxu0 0.0
      %4290 = vmatpush1.msra.mxu0 0.0
      %4291 = vmatprep.subr.mxu0 0.0
      %4292 = vmatpush1.msra.mxu0 0.0
      %4293 = vmatprep.mubr.f32.mxu0 0.0
      %4294 = vmatmul.mubr.f32.gmra.mrb[0].mxu0 %v4227
      %v4295 = vpop.f32.mrb[0].mxu0
      %v4296 = vadd.f32 0.0, %v4295
      %v4297 = vpop.f32.mrb[0].mxu0
      %4298 = vdwg.mxu0
      %4299 = vrot.lane.b32.xlu0 %v2804, 104
      %v4300 = vpop.permute.xlu0 %4299
      %4301 = vrot.lane.b32.xlu0 %v2804, 72
      %v4302 = vpop.permute.xlu0 %4301
      %v4303 = vsel %vm153, %v4300, 0
      %v4305 = vsel %vm153, %v4302, 0
      %4307 = vmatprep.subr.mxu0 0.0
      %4308 = vmatpush1.xpose.msra.mxu0 %v4305
      %4309 = vmatprep.subr.mxu0 0.0
      %4310 = vmatpush1.xpose.msra.mxu0 0.0
      %4311 = vmatprep.subr.mxu0 0.0
      %4312 = vmatpush1.xpose.msra.mxu0 0.0
      %4313 = vmatprep.subr.mxu0 0.0
      %4314 = vmatpush1.xpose.msra.mxu0 0.0
      %4315 = vmatprep.subr.mxu0 0.0
      %4316 = vmatpush1.xpose.msra.mxu0 0.0
      %4317 = vmatprep.subr.mxu0 0.0
      %4318 = vmatpush1.xpose.msra.mxu0 0.0
      %4319 = vmatprep.subr.mxu0 0.0
      %4320 = vmatpush1.xpose.msra.mxu0 0.0
      %4321 = vmatprep.subr.mxu0 0.0
      %4322 = vmatpush1.xpose.msra.mxu0 0.0
      %4323 = vmatprep.subr.mxu0 0.0
      %4324 = vmatpush1.xpose.msra.mxu0 0.0
      %4325 = vmatprep.subr.mxu0 0.0
      %4326 = vmatpush1.xpose.msra.mxu0 0.0
      %4327 = vmatprep.subr.mxu0 0.0
      %4328 = vmatpush1.xpose.msra.mxu0 0.0
      %4329 = vmatprep.subr.mxu0 0.0
      %4330 = vmatpush1.xpose.msra.mxu0 0.0
      %4331 = vmatprep.subr.mxu0 0.0
      %4332 = vmatpush1.xpose.msra.mxu0 0.0
      %4333 = vmatprep.subr.mxu0 0.0
      %4334 = vmatpush1.xpose.msra.mxu0 0.0
      %4335 = vmatprep.subr.mxu0 0.0
      %4336 = vmatpush1.xpose.msra.mxu0 0.0
      %4337 = vmatprep.subr.mxu0 0.0
      %4338 = vmatpush1.xpose.msra.mxu0 0.0
      %4339 = vmatprep.subr.mxu0 0.0
      %4340 = vmatpush1.xpose.msra.mxu0 0.0
      %4341 = vmatprep.subr.mxu0 0.0
      %4342 = vmatpush1.xpose.msra.mxu0 0.0
      %4343 = vmatprep.subr.mxu0 0.0
      %4344 = vmatpush1.xpose.msra.mxu0 0.0
      %4345 = vmatprep.subr.mxu0 0.0
      %4346 = vmatpush1.xpose.msra.mxu0 0.0
      %4347 = vmatprep.subr.mxu0 0.0
      %4348 = vmatpush1.xpose.msra.mxu0 0.0
      %4349 = vmatprep.subr.mxu0 0.0
      %4350 = vmatpush1.xpose.msra.mxu0 0.0
      %4351 = vmatprep.subr.mxu0 0.0
      %4352 = vmatpush1.xpose.msra.mxu0 0.0
      %4353 = vmatprep.subr.mxu0 0.0
      %4354 = vmatpush1.xpose.msra.mxu0 0.0
      %4355 = vmatprep.subr.mxu0 0.0
      %4356 = vmatpush1.xpose.msra.mxu0 0.0
      %4357 = vmatprep.subr.mxu0 0.0
      %4358 = vmatpush1.xpose.msra.mxu0 0.0
      %4359 = vmatprep.subr.mxu0 0.0
      %4360 = vmatpush1.xpose.msra.mxu0 0.0
      %4361 = vmatprep.subr.mxu0 0.0
      %4362 = vmatpush1.xpose.msra.mxu0 0.0
      %4363 = vmatprep.subr.mxu0 0.0
      %4364 = vmatpush1.xpose.msra.mxu0 0.0
      %4365 = vmatprep.subr.mxu0 0.0
      %4366 = vmatpush1.xpose.msra.mxu0 0.0
      %4367 = vmatprep.subr.mxu0 0.0
      %4368 = vmatpush1.xpose.msra.mxu0 0.0
      %4369 = vmatprep.subr.mxu0 0.0
      %4370 = vmatpush1.xpose.msra.mxu0 0.0
      %4371 = vmatprep.mubr.f32.mxu0 0.0
      %4372 = vmatmul.mubr.f32.gmra.mrb[0].mxu0 %v4303
      %v4373 = vpop.f32.mrb[0].mxu0
      %v4374 = vadd.f32 %v317, %v4373
      %v4375 = vpop.f32.mrb[0].mxu0
      %4376 = vdwg.mxu0
      %4377 = vrot.lane.b32.xlu0 %v2807, 104
      %v4378 = vpop.permute.xlu0 %4377
      %4379 = vrot.lane.b32.xlu0 %v2807, 72
      %v4380 = vpop.permute.xlu0 %4379
      %v4381 = vsel %vm153, %v4378, 0
      %v4383 = vsel %vm153, %v4380, 0
      %4385 = vmatprep.subr.mxu0 0.0
      %4386 = vmatpush1.xpose.msra.mxu0 %v4383
      %4387 = vmatprep.subr.mxu0 0.0
      %4388 = vmatpush1.xpose.msra.mxu0 0.0
      %4389 = vmatprep.subr.mxu0 0.0
      %4390 = vmatpush1.xpose.msra.mxu0 0.0
      %4391 = vmatprep.subr.mxu0 0.0
      %4392 = vmatpush1.xpose.msra.mxu0 0.0
      %4393 = vmatprep.subr.mxu0 0.0
      %4394 = vmatpush1.xpose.msra.mxu0 0.0
      %4395 = vmatprep.subr.mxu0 0.0
      %4396 = vmatpush1.xpose.msra.mxu0 0.0
      %4397 = vmatprep.subr.mxu0 0.0
      %4398 = vmatpush1.xpose.msra.mxu0 0.0
      %4399 = vmatprep.subr.mxu0 0.0
      %4400 = vmatpush1.xpose.msra.mxu0 0.0
      %4401 = vmatprep.subr.mxu0 0.0
      %4402 = vmatpush1.xpose.msra.mxu0 0.0
      %4403 = vmatprep.subr.mxu0 0.0
      %4404 = vmatpush1.xpose.msra.mxu0 0.0
      %4405 = vmatprep.subr.mxu0 0.0
      %4406 = vmatpush1.xpose.msra.mxu0 0.0
      %4407 = vmatprep.subr.mxu0 0.0
      %4408 = vmatpush1.xpose.msra.mxu0 0.0
      %4409 = vmatprep.subr.mxu0 0.0
      %4410 = vmatpush1.xpose.msra.mxu0 0.0
      %4411 = vmatprep.subr.mxu0 0.0
      %4412 = vmatpush1.xpose.msra.mxu0 0.0
      %4413 = vmatprep.subr.mxu0 0.0
      %4414 = vmatpush1.xpose.msra.mxu0 0.0
      %4415 = vmatprep.subr.mxu0 0.0
      %4416 = vmatpush1.xpose.msra.mxu0 0.0
      %4417 = vmatprep.subr.mxu0 0.0
      %4418 = vmatpush1.xpose.msra.mxu0 0.0
      %4419 = vmatprep.subr.mxu0 0.0
      %4420 = vmatpush1.xpose.msra.mxu0 0.0
      %4421 = vmatprep.subr.mxu0 0.0
      %4422 = vmatpush1.xpose.msra.mxu0 0.0
      %4423 = vmatprep.subr.mxu0 0.0
      %4424 = vmatpush1.xpose.msra.mxu0 0.0
      %4425 = vmatprep.subr.mxu0 0.0
      %4426 = vmatpush1.xpose.msra.mxu0 0.0
      %4427 = vmatprep.subr.mxu0 0.0
      %4428 = vmatpush1.xpose.msra.mxu0 0.0
      %4429 = vmatprep.subr.mxu0 0.0
      %4430 = vmatpush1.xpose.msra.mxu0 0.0
      %4431 = vmatprep.subr.mxu0 0.0
      %4432 = vmatpush1.xpose.msra.mxu0 0.0
      %4433 = vmatprep.subr.mxu0 0.0
      %4434 = vmatpush1.xpose.msra.mxu0 0.0
      %4435 = vmatprep.subr.mxu0 0.0
      %4436 = vmatpush1.xpose.msra.mxu0 0.0
      %4437 = vmatprep.subr.mxu0 0.0
      %4438 = vmatpush1.xpose.msra.mxu0 0.0
      %4439 = vmatprep.subr.mxu0 0.0
      %4440 = vmatpush1.xpose.msra.mxu0 0.0
      %4441 = vmatprep.subr.mxu0 0.0
      %4442 = vmatpush1.xpose.msra.mxu0 0.0
      %4443 = vmatprep.subr.mxu0 0.0
      %4444 = vmatpush1.xpose.msra.mxu0 0.0
      %4445 = vmatprep.subr.mxu0 0.0
      %4446 = vmatpush1.xpose.msra.mxu0 0.0
      %4447 = vmatprep.subr.mxu0 0.0
      %4448 = vmatpush1.xpose.msra.mxu0 0.0
      %4449 = vmatprep.mubr.f32.mxu0 0.0
      %4450 = vmatmul.mubr.f32.gmra.mrb[0].mxu0 %v4381
      %v4451 = vpop.f32.mrb[0].mxu0
      %v4452 = vadd.f32 %v318, %v4451
      %v4453 = vpop.f32.mrb[0].mxu0
      %4454 = vdwg.mxu0
      %4455 = vrot.lane.b32.xlu0 %v2812, 104
      %v4456 = vpop.permute.xlu0 %4455
      %4457 = vrot.lane.b32.xlu0 %v2812, 72
      %v4458 = vpop.permute.xlu0 %4457
      %v4459 = vsel %vm153, %v4456, 0
      %v4461 = vsel %vm153, %v4458, 0
      %4463 = vmatprep.subr.mxu0 0.0
      %4464 = vmatpush1.xpose.msra.mxu0 %v4461
      %4465 = vmatprep.subr.mxu0 0.0
      %4466 = vmatpush1.xpose.msra.mxu0 0.0
      %4467 = vmatprep.subr.mxu0 0.0
      %4468 = vmatpush1.xpose.msra.mxu0 0.0
      %4469 = vmatprep.subr.mxu0 0.0
      %4470 = vmatpush1.xpose.msra.mxu0 0.0
      %4471 = vmatprep.subr.mxu0 0.0
      %4472 = vmatpush1.xpose.msra.mxu0 0.0
      %4473 = vmatprep.subr.mxu0 0.0
      %4474 = vmatpush1.xpose.msra.mxu0 0.0
      %4475 = vmatprep.subr.mxu0 0.0
      %4476 = vmatpush1.xpose.msra.mxu0 0.0
      %4477 = vmatprep.subr.mxu0 0.0
      %4478 = vmatpush1.xpose.msra.mxu0 0.0
      %4479 = vmatprep.subr.mxu0 0.0
      %4480 = vmatpush1.xpose.msra.mxu0 0.0
      %4481 = vmatprep.subr.mxu0 0.0
      %4482 = vmatpush1.xpose.msra.mxu0 0.0
      %4483 = vmatprep.subr.mxu0 0.0
      %4484 = vmatpush1.xpose.msra.mxu0 0.0
      %4485 = vmatprep.subr.mxu0 0.0
      %4486 = vmatpush1.xpose.msra.mxu0 0.0
      %4487 = vmatprep.subr.mxu0 0.0
      %4488 = vmatpush1.xpose.msra.mxu0 0.0
      %4489 = vmatprep.subr.mxu0 0.0
      %4490 = vmatpush1.xpose.msra.mxu0 0.0
      %4491 = vmatprep.subr.mxu0 0.0
      %4492 = vmatpush1.xpose.msra.mxu0 0.0
      %4493 = vmatprep.subr.mxu0 0.0
      %4494 = vmatpush1.xpose.msra.mxu0 0.0
      %4495 = vmatprep.subr.mxu0 0.0
      %4496 = vmatpush1.xpose.msra.mxu0 0.0
      %4497 = vmatprep.subr.mxu0 0.0
      %4498 = vmatpush1.xpose.msra.mxu0 0.0
      %4499 = vmatprep.subr.mxu0 0.0
      %4500 = vmatpush1.xpose.msra.mxu0 0.0
      %4501 = vmatprep.subr.mxu0 0.0
      %4502 = vmatpush1.xpose.msra.mxu0 0.0
      %4503 = vmatprep.subr.mxu0 0.0
      %4504 = vmatpush1.xpose.msra.mxu0 0.0
      %4505 = vmatprep.subr.mxu0 0.0
      %4506 = vmatpush1.xpose.msra.mxu0 0.0
      %4507 = vmatprep.subr.mxu0 0.0
      %4508 = vmatpush1.xpose.msra.mxu0 0.0
      %4509 = vmatprep.subr.mxu0 0.0
      %4510 = vmatpush1.xpose.msra.mxu0 0.0
      %4511 = vmatprep.subr.mxu0 0.0
      %4512 = vmatpush1.xpose.msra.mxu0 0.0
      %4513 = vmatprep.subr.mxu0 0.0
      %4514 = vmatpush1.xpose.msra.mxu0 0.0
      %4515 = vmatprep.subr.mxu0 0.0
      %4516 = vmatpush1.xpose.msra.mxu0 0.0
      %4517 = vmatprep.subr.mxu0 0.0
      %4518 = vmatpush1.xpose.msra.mxu0 0.0
      %4519 = vmatprep.subr.mxu0 0.0
      %4520 = vmatpush1.xpose.msra.mxu0 0.0
      %4521 = vmatprep.subr.mxu0 0.0
      %4522 = vmatpush1.xpose.msra.mxu0 0.0
      %4523 = vmatprep.subr.mxu0 0.0
      %4524 = vmatpush1.xpose.msra.mxu0 0.0
      %4525 = vmatprep.subr.mxu0 0.0
      %4526 = vmatpush1.xpose.msra.mxu0 0.0
      %4527 = vmatprep.mubr.f32.mxu0 0.0
      %4528 = vmatmul.mubr.f32.gmra.mrb[0].mxu0 %v4459
      %v4529 = vpop.f32.mrb[0].mxu0
      %v4530 = vadd.f32 %v319, %v4529
      %v4531 = vpop.f32.mrb[0].mxu0
      %4532 = vdwg.mxu0
      %v4533 = vsel %vm153, %v4374, -inf
      %4534 = vmax.xlane.f32.xlu0 %v4533
      %v4535 = vpop.xlane.xlu0 %4534
      %v4536 = vsel %vm153, %v4452, -inf
      %4537 = vmax.xlane.f32.xlu0 %v4536
      %v4538 = vpop.xlane.xlu0 %4537
      %v4539 = vsel %vm153, %v4530, -inf
      %4540 = vmax.xlane.f32.xlu0 %v4539
      %v4541 = vpop.xlane.xlu0 %4540
      %v4542 = vsub.f32 %v4374, %v4535
      %v4543 = vsub.f32 %v4452, %v4538
      %v4544 = vsub.f32 %v4530, %v4541
      %v4545 = vmul.f32 %v4542, 1.442695
      %v4546 = vpow.pop %v4545
      %v4547 = vmul.f32 %v4543, 1.442695
      %v4548 = vpow.pop %v4547
      %v4549 = vmul.f32 %v4544, 1.442695
      %v4550 = vpow.pop %v4549
      %v4551 = vsel %vm153, %v4546, 0.0
      %4552 = vadd.xlane.f32.xlu0 %v4551
      %v4553 = vpop.xlane.xlu0 %4552
      %v4554 = vsel %vm153, %v4548, 0.0
      %4555 = vadd.xlane.f32.xlu0 %v4554
      %v4556 = vpop.xlane.xlu0 %4555
      %v4557 = vsel %vm153, %v4550, 0.0
      %4558 = vadd.xlane.f32.xlu0 %v4557
      %v4559 = vpop.xlane.xlu0 %4558
      %v4560 = vrcp.pop %v4553
      %v4561 = vrcp.pop %v4556
      %v4562 = vrcp.pop %v4559
      %v4563 = vmul.f32 %v4546, %v4560
      %v4564 = vmul.f32 %v4548, %v4561
      %v4565 = vmul.f32 %v4550, %v4562
      %4566 = vrot.lane.b32.xlu0 %v2804, 40
      %v4567 = vpop.permute.xlu0 %4566
      %v4570 = vsel %vm153, %v4563, 0
      %4572 = vmatprep.subr.mxu0 0.0
      %4573 = vmatpush1.msra.mxu0 %v4567
      %4574 = vmatprep.subr.mxu0 0.0
      %4575 = vmatpush1.msra.mxu0 0.0
      %4576 = vmatprep.subr.mxu0 0.0
      %4577 = vmatpush1.msra.mxu0 0.0
      %4578 = vmatprep.subr.mxu0 0.0
      %4579 = vmatpush1.msra.mxu0 0.0
      %4580 = vmatprep.subr.mxu0 0.0
      %4581 = vmatpush1.msra.mxu0 0.0
      %4582 = vmatprep.subr.mxu0 0.0
      %4583 = vmatpush1.msra.mxu0 0.0
      %4584 = vmatprep.subr.mxu0 0.0
      %4585 = vmatpush1.msra.mxu0 0.0
      %4586 = vmatprep.subr.mxu0 0.0
      %4587 = vmatpush1.msra.mxu0 0.0
      %4588 = vmatprep.subr.mxu0 0.0
      %4589 = vmatpush1.msra.mxu0 0.0
      %4590 = vmatprep.subr.mxu0 0.0
      %4591 = vmatpush1.msra.mxu0 0.0
      %4592 = vmatprep.subr.mxu0 0.0
      %4593 = vmatpush1.msra.mxu0 0.0
      %4594 = vmatprep.subr.mxu0 0.0
      %4595 = vmatpush1.msra.mxu0 0.0
      %4596 = vmatprep.subr.mxu0 0.0
      %4597 = vmatpush1.msra.mxu0 0.0
      %4598 = vmatprep.subr.mxu0 0.0
      %4599 = vmatpush1.msra.mxu0 0.0
      %4600 = vmatprep.subr.mxu0 0.0
      %4601 = vmatpush1.msra.mxu0 0.0
      %4602 = vmatprep.subr.mxu0 0.0
      %4603 = vmatpush1.msra.mxu0 0.0
      %4604 = vmatprep.subr.mxu0 0.0
      %4605 = vmatpush1.msra.mxu0 0.0
      %4606 = vmatprep.subr.mxu0 0.0
      %4607 = vmatpush1.msra.mxu0 0.0
      %4608 = vmatprep.subr.mxu0 0.0
      %4609 = vmatpush1.msra.mxu0 0.0
      %4610 = vmatprep.subr.mxu0 0.0
      %4611 = vmatpush1.msra.mxu0 0.0
      %4612 = vmatprep.subr.mxu0 0.0
      %4613 = vmatpush1.msra.mxu0 0.0
      %4614 = vmatprep.subr.mxu0 0.0
      %4615 = vmatpush1.msra.mxu0 0.0
      %4616 = vmatprep.subr.mxu0 0.0
      %4617 = vmatpush1.msra.mxu0 0.0
      %4618 = vmatprep.subr.mxu0 0.0
      %4619 = vmatpush1.msra.mxu0 0.0
      %4620 = vmatprep.subr.mxu0 0.0
      %4621 = vmatpush1.msra.mxu0 0.0
      %4622 = vmatprep.subr.mxu0 0.0
      %4623 = vmatpush1.msra.mxu0 0.0
      %4624 = vmatprep.subr.mxu0 0.0
      %4625 = vmatpush1.msra.mxu0 0.0
      %4626 = vmatprep.subr.mxu0 0.0
      %4627 = vmatpush1.msra.mxu0 0.0
      %4628 = vmatprep.subr.mxu0 0.0
      %4629 = vmatpush1.msra.mxu0 0.0
      %4630 = vmatprep.subr.mxu0 0.0
      %4631 = vmatpush1.msra.mxu0 0.0
      %4632 = vmatprep.subr.mxu0 0.0
      %4633 = vmatpush1.msra.mxu0 0.0
      %4634 = vmatprep.subr.mxu0 0.0
      %4635 = vmatpush1.msra.mxu0 0.0
      %4636 = vmatprep.mubr.f32.mxu0 0.0
      %4637 = vmatmul.mubr.f32.gmra.mrb[0].mxu0 %v4570
      %v4638 = vpop.f32.mrb[0].mxu0
      %v4639 = vadd.f32 0.0, %v4638
      %v4640 = vpop.f32.mrb[0].mxu0
      %4641 = vdwg.mxu0
      %4642 = vrot.lane.b32.xlu0 %v2807, 40
      %v4643 = vpop.permute.xlu0 %4642
      %v4646 = vsel %vm153, %v4564, 0
      %4648 = vmatprep.subr.mxu0 0.0
      %4649 = vmatpush1.msra.mxu0 %v4643
      %4650 = vmatprep.subr.mxu0 0.0
      %4651 = vmatpush1.msra.mxu0 0.0
      %4652 = vmatprep.subr.mxu0 0.0
      %4653 = vmatpush1.msra.mxu0 0.0
      %4654 = vmatprep.subr.mxu0 0.0
      %4655 = vmatpush1.msra.mxu0 0.0
      %4656 = vmatprep.subr.mxu0 0.0
      %4657 = vmatpush1.msra.mxu0 0.0
      %4658 = vmatprep.subr.mxu0 0.0
      %4659 = vmatpush1.msra.mxu0 0.0
      %4660 = vmatprep.subr.mxu0 0.0
      %4661 = vmatpush1.msra.mxu0 0.0
      %4662 = vmatprep.subr.mxu0 0.0
      %4663 = vmatpush1.msra.mxu0 0.0
      %4664 = vmatprep.subr.mxu0 0.0
      %4665 = vmatpush1.msra.mxu0 0.0
      %4666 = vmatprep.subr.mxu0 0.0
      %4667 = vmatpush1.msra.mxu0 0.0
      %4668 = vmatprep.subr.mxu0 0.0
      %4669 = vmatpush1.msra.mxu0 0.0
      %4670 = vmatprep.subr.mxu0 0.0
      %4671 = vmatpush1.msra.mxu0 0.0
      %4672 = vmatprep.subr.mxu0 0.0
      %4673 = vmatpush1.msra.mxu0 0.0
      %4674 = vmatprep.subr.mxu0 0.0
      %4675 = vmatpush1.msra.mxu0 0.0
      %4676 = vmatprep.subr.mxu0 0.0
      %4677 = vmatpush1.msra.mxu0 0.0
      %4678 = vmatprep.subr.mxu0 0.0
      %4679 = vmatpush1.msra.mxu0 0.0
      %4680 = vmatprep.subr.mxu0 0.0
      %4681 = vmatpush1.msra.mxu0 0.0
      %4682 = vmatprep.subr.mxu0 0.0
      %4683 = vmatpush1.msra.mxu0 0.0
      %4684 = vmatprep.subr.mxu0 0.0
      %4685 = vmatpush1.msra.mxu0 0.0
      %4686 = vmatprep.subr.mxu0 0.0
      %4687 = vmatpush1.msra.mxu0 0.0
      %4688 = vmatprep.subr.mxu0 0.0
      %4689 = vmatpush1.msra.mxu0 0.0
      %4690 = vmatprep.subr.mxu0 0.0
      %4691 = vmatpush1.msra.mxu0 0.0
      %4692 = vmatprep.subr.mxu0 0.0
      %4693 = vmatpush1.msra.mxu0 0.0
      %4694 = vmatprep.subr.mxu0 0.0
      %4695 = vmatpush1.msra.mxu0 0.0
      %4696 = vmatprep.subr.mxu0 0.0
      %4697 = vmatpush1.msra.mxu0 0.0
      %4698 = vmatprep.subr.mxu0 0.0
      %4699 = vmatpush1.msra.mxu0 0.0
      %4700 = vmatprep.subr.mxu0 0.0
      %4701 = vmatpush1.msra.mxu0 0.0
      %4702 = vmatprep.subr.mxu0 0.0
      %4703 = vmatpush1.msra.mxu0 0.0
      %4704 = vmatprep.subr.mxu0 0.0
      %4705 = vmatpush1.msra.mxu0 0.0
      %4706 = vmatprep.subr.mxu0 0.0
      %4707 = vmatpush1.msra.mxu0 0.0
      %4708 = vmatprep.subr.mxu0 0.0
      %4709 = vmatpush1.msra.mxu0 0.0
      %4710 = vmatprep.subr.mxu0 0.0
      %4711 = vmatpush1.msra.mxu0 0.0
      %4712 = vmatprep.mubr.f32.mxu0 0.0
      %4713 = vmatmul.mubr.f32.gmra.mrb[0].mxu0 %v4646
      %v4714 = vpop.f32.mrb[0].mxu0
      %v4715 = vadd.f32 0.0, %v4714
      %v4716 = vpop.f32.mrb[0].mxu0
      %4717 = vdwg.mxu0
      %4718 = vrot.lane.b32.xlu0 %v2812, 40
      %v4719 = vpop.permute.xlu0 %4718
      %v4722 = vsel %vm153, %v4565, 0
      %4724 = vmatprep.subr.mxu0 0.0
      %4725 = vmatpush1.msra.mxu0 %v4719
      %4726 = vmatprep.subr.mxu0 0.0
      %4727 = vmatpush1.msra.mxu0 0.0
      %4728 = vmatprep.subr.mxu0 0.0
      %4729 = vmatpush1.msra.mxu0 0.0
      %4730 = vmatprep.subr.mxu0 0.0
      %4731 = vmatpush1.msra.mxu0 0.0
      %4732 = vmatprep.subr.mxu0 0.0
      %4733 = vmatpush1.msra.mxu0 0.0
      %4734 = vmatprep.subr.mxu0 0.0
      %4735 = vmatpush1.msra.mxu0 0.0
      %4736 = vmatprep.subr.mxu0 0.0
      %4737 = vmatpush1.msra.mxu0 0.0
      %4738 = vmatprep.subr.mxu0 0.0
      %4739 = vmatpush1.msra.mxu0 0.0
      %4740 = vmatprep.subr.mxu0 0.0
      %4741 = vmatpush1.msra.mxu0 0.0
      %4742 = vmatprep.subr.mxu0 0.0
      %4743 = vmatpush1.msra.mxu0 0.0
      %4744 = vmatprep.subr.mxu0 0.0
      %4745 = vmatpush1.msra.mxu0 0.0
      %4746 = vmatprep.subr.mxu0 0.0
      %4747 = vmatpush1.msra.mxu0 0.0
      %4748 = vmatprep.subr.mxu0 0.0
      %4749 = vmatpush1.msra.mxu0 0.0
      %4750 = vmatprep.subr.mxu0 0.0
      %4751 = vmatpush1.msra.mxu0 0.0
      %4752 = vmatprep.subr.mxu0 0.0
      %4753 = vmatpush1.msra.mxu0 0.0
      %4754 = vmatprep.subr.mxu0 0.0
      %4755 = vmatpush1.msra.mxu0 0.0
      %4756 = vmatprep.subr.mxu0 0.0
      %4757 = vmatpush1.msra.mxu0 0.0
      %4758 = vmatprep.subr.mxu0 0.0
      %4759 = vmatpush1.msra.mxu0 0.0
      %4760 = vmatprep.subr.mxu0 0.0
      %4761 = vmatpush1.msra.mxu0 0.0
      %4762 = vmatprep.subr.mxu0 0.0
      %4763 = vmatpush1.msra.mxu0 0.0
      %4764 = vmatprep.subr.mxu0 0.0
      %4765 = vmatpush1.msra.mxu0 0.0
      %4766 = vmatprep.subr.mxu0 0.0
      %4767 = vmatpush1.msra.mxu0 0.0
      %4768 = vmatprep.subr.mxu0 0.0
      %4769 = vmatpush1.msra.mxu0 0.0
      %4770 = vmatprep.subr.mxu0 0.0
      %4771 = vmatpush1.msra.mxu0 0.0
      %4772 = vmatprep.subr.mxu0 0.0
      %4773 = vmatpush1.msra.mxu0 0.0
      %4774 = vmatprep.subr.mxu0 0.0
      %4775 = vmatpush1.msra.mxu0 0.0
      %4776 = vmatprep.subr.mxu0 0.0
      %4777 = vmatpush1.msra.mxu0 0.0
      %4778 = vmatprep.subr.mxu0 0.0
      %4779 = vmatpush1.msra.mxu0 0.0
      %4780 = vmatprep.subr.mxu0 0.0
      %4781 = vmatpush1.msra.mxu0 0.0
      %4782 = vmatprep.subr.mxu0 0.0
      %4783 = vmatpush1.msra.mxu0 0.0
      %4784 = vmatprep.subr.mxu0 0.0
      %4785 = vmatpush1.msra.mxu0 0.0
      %4786 = vmatprep.subr.mxu0 0.0
      %4787 = vmatpush1.msra.mxu0 0.0
      %4788 = vmatprep.mubr.f32.mxu0 0.0
      %4789 = vmatmul.mubr.f32.gmra.mrb[0].mxu0 %v4722
      %v4790 = vpop.f32.mrb[0].mxu0
      %v4791 = vadd.f32 0.0, %v4790
      %v4792 = vpop.f32.mrb[0].mxu0
      %4793 = vdwg.mxu0
      %4797 = vrot.lane.b32.xlu0 %v3649, 8
      %v4798 = vpop.permute.xlu0 %4797
      %4799 = vrot.lane.b32.xlu0 %v3725, 8
      %v4800 = vpop.permute.xlu0 %4799
      %4801 = vrot.lane.b32.xlu0 %v3801, 8
      %v4802 = vpop.permute.xlu0 %4801
      %4809 = vrot.lane.b32.xlu0 %v4144, 16
      %v4810 = vpop.permute.xlu0 %4809
      %4811 = vrot.lane.b32.xlu0 %v4220, 16
      %v4812 = vpop.permute.xlu0 %4811
      %4813 = vrot.lane.b32.xlu0 %v4296, 16
      %v4814 = vpop.permute.xlu0 %4813
      %4821 = vrot.lane.b32.xlu0 %v4639, 24
      %v4822 = vpop.permute.xlu0 %4821
      %4823 = vrot.lane.b32.xlu0 %v4715, 24
      %v4824 = vpop.permute.xlu0 %4823
      %4825 = vrot.lane.b32.xlu0 %v4791, 24
      %v4826 = vpop.permute.xlu0 %4825
      %v4830 = vsel %vm153, %v3154, %v4798
      %v4831 = vsel %vm153, %v3230, %v4800
      %v4832 = vsel %vm153, %v3306, %v4802
      %v4833 = vsel %vm2415, %v4830, %v4810
      %v4834 = vsel %vm2415, %v4831, %v4812
      %v4835 = vsel %vm2415, %v4832, %v4814
      %v4836 = vsel %vm2419, %v4833, %v4822
      %v4837 = vsel %vm2419, %v4834, %v4824
      %v4838 = vsel %vm2419, %v4835, %v4826
      %v4839 = vpack.c.bf16 %v4837, %v4836
      %v4840 = vpack.c.bf16 %v4838, %v4838
      %v4841 = vld [vmem:[%s1 + $0x128] sm:$0xff]
      %v4842 = vld [vmem:[%s1 + $0x130] sm:$0xff]
      %v4843 = vld [vmem:[%s1 + $0x138] sm:$0xff]
      %v4844 = vld [vmem:[%s1 + $0x140] sm:$0xff]
      %v4845 = vpack.c.bf16 %v4842, %v4841
      %v4846 = vpack.c.bf16 %v4844, %v4843
      %v4847 = vld [vmem:[%s1 + $0x148] sm:$0x1]
      %v4848 = vlaneseq
      %v4849 = vshrl.u32 %v4848, 7
      %v4850 = vsub.s32 0, %v4849
      %v4851 = vrot.slane %v4847, %v4850
      %v4853 = vsel %vm214, %v4839, 0
      %v4856 = vsel %vm214, %v4840, 0
      %4858 = vmatprep.subr.bf16.mxu0 0
      %4859 = vmatpush1.bf16.msra.mxu0 %v4845
      %4860 = vmatprep.subr.bf16.mxu0 0
      %4861 = vmatpush1.bf16.msra.mxu0 %v4846
      %4862 = vmatprep.subr.bf16.mxu0 0
      %4863 = vmatpush1.bf16.msra.mxu0 0
      %4864 = vmatprep.subr.bf16.mxu0 0
      %4865 = vmatpush1.bf16.msra.mxu0 0
      %4866 = vmatprep.subr.bf16.mxu0 0
      %4867 = vmatpush1.bf16.msra.mxu0 0
      %4868 = vmatprep.subr.bf16.mxu0 0
      %4869 = vmatpush1.bf16.msra.mxu0 0
      %4870 = vmatprep.subr.bf16.mxu0 0
      %4871 = vmatpush1.bf16.msra.mxu0 0
      %4872 = vmatprep.subr.bf16.mxu0 0
      %4873 = vmatpush1.bf16.msra.mxu0 0
      %4874 = vmatprep.subr.bf16.mxu0 0
      %4875 = vmatpush1.bf16.msra.mxu0 0
      %4876 = vmatprep.subr.bf16.mxu0 0
      %4877 = vmatpush1.bf16.msra.mxu0 0
      %4878 = vmatprep.subr.bf16.mxu0 0
      %4879 = vmatpush1.bf16.msra.mxu0 0
      %4880 = vmatprep.subr.bf16.mxu0 0
      %4881 = vmatpush1.bf16.msra.mxu0 0
      %4882 = vmatprep.subr.bf16.mxu0 0
      %4883 = vmatpush1.bf16.msra.mxu0 0
      %4884 = vmatprep.subr.bf16.mxu0 0
      %4885 = vmatpush1.bf16.msra.mxu0 0
      %4886 = vmatprep.subr.bf16.mxu0 0
      %4887 = vmatpush1.bf16.msra.mxu0 0
      %4888 = vmatprep.subr.bf16.mxu0 0
      %4889 = vmatpush1.bf16.msra.mxu0 0
      %4890 = vmatprep.mubr.bf16.mxu0 0
      %4891 = vmatmul.mubr.bf16.gmra.mrb[0].mxu0 %v4853
      %v4892 = vpop.f32.mrb[0].mxu0
      %v4893 = vadd.f32 %v4851, %v4892
      %v4894 = vpop.f32.mrb[0].mxu0
      %v4895 = vpop.f32.mrb[0].mxu0
      %v4896 = vadd.f32 %v4851, %v4895
      %v4897 = vpop.f32.mrb[0].mxu0
      %4898 = vmatprep.mubr.bf16.mxu0 0
      %4899 = vmatmul.mubr.bf16.gmra.mrb[0].mxu0 %v4856
      %v4900 = vpop.f32.mrb[0].mxu0
      %v4901 = vadd.f32 %v4851, %v4900
      %v4902 = vpop.f32.mrb[0].mxu0
      %v4903 = vpop.f32.mrb[0].mxu0
      %v4904 = vpop.f32.mrb[0].mxu0
      %4905 = vdwg.mxu0
      %v4906 = vadd.f32 %v2747, %v4893
      %v4907 = vadd.f32 %v2748, %v4896
      %v4908 = vadd.f32 %v2749, %v4901
      %v4909 = vld [vmem:[%s1 + $0x150] sm:$0x1]
      %v4910 = vld [vmem:[%s1 + $0x158] sm:$0x1]
      %v4911 = vsel %vm214, %v4906, 0.0
      %4912 = vadd.xlane.f32.xlu0 %v4911
      %v4913 = vpop.xlane.xlu0 %4912
      %v4914 = vsel %vm214, %v4907, 0.0
      %4915 = vadd.xlane.f32.xlu0 %v4914
      %v4916 = vpop.xlane.xlu0 %4915
      %v4917 = vsel %vm214, %v4908, 0.0
      %4918 = vadd.xlane.f32.xlu0 %v4917
      %v4919 = vpop.xlane.xlu0 %4918
      %v4920 = vmul.f32 %v4913, %v224
      %v4921 = vmul.f32 %v4916, %v224
      %v4922 = vmul.f32 %v4919, %v224
      %v4923 = vsub.f32 %v4906, %v4920
      %v4924 = vsub.f32 %v4907, %v4921
      %v4925 = vsub.f32 %v4908, %v4922
      %v4926 = vmul.f32 %v4923, %v4923
      %v4927 = vmul.f32 %v4924, %v4924
      %v4928 = vmul.f32 %v4925, %v4925
      %v4929 = vsel %vm214, %v4926, 0.0
      %4930 = vadd.xlane.f32.xlu0 %v4929
      %v4931 = vpop.xlane.xlu0 %4930
      %v4932 = vsel %vm214, %v4927, 0.0
      %4933 = vadd.xlane.f32.xlu0 %v4932
      %v4934 = vpop.xlane.xlu0 %4933
      %v4935 = vsel %vm214, %v4928, 0.0
      %4936 = vadd.xlane.f32.xlu0 %v4935
      %v4937 = vpop.xlane.xlu0 %4936
      %v4938 = vmul.f32 %v4931, %v224
      %v4939 = vmul.f32 %v4934, %v224
      %v4940 = vmul.f32 %v4937, %v224
      %v4941 = vadd.f32 %v4938, 1e-05
      %v4942 = vadd.f32 %v4939, 1e-05
      %v4943 = vadd.f32 %v4940, 1e-05
      %v4944 = vrsqrt.pop %v4941
      %v4945 = vrsqrt.pop %v4942
      %v4946 = vrsqrt.pop %v4943
      %v4947 = vmul.f32 %v4923, %v4944
      %v4948 = vmul.f32 %v4924, %v4945
      %v4949 = vmul.f32 %v4925, %v4946
      %v4950 = vlaneseq
      %v4951 = vshrl.u32 %v4950, 7
      %v4952 = vsub.s32 0, %v4951
      %v4953 = vrot.slane %v4909, %v4952
      %v4954 = vmul.f32 %v4947, %v4953
      %v4955 = vmul.f32 %v4948, %v4953
      %v4956 = vmul.f32 %v4949, %v4953
      %v4957 = vlaneseq
      %v4958 = vshrl.u32 %v4957, 7
      %v4959 = vsub.s32 0, %v4958
      %v4960 = vrot.slane %v4910, %v4959
      %v4961 = vadd.f32 %v4954, %v4960
      %v4962 = vadd.f32 %v4955, %v4960
      %v4963 = vadd.f32 %v4956, %v4960
      %v4964 = vpack.c.bf16 %v4962, %v4961
      %v4965 = vpack.c.bf16 %v4963, %v4963
      %v4966 = vld [vmem:[%s1 + $0x160] sm:$0xff]
      %v4967 = vld [vmem:[%s1 + $0x168] sm:$0xff]
      %v4968 = vld [vmem:[%s1 + $0x170] sm:$0xff]
      %v4969 = vld [vmem:[%s1 + $0x178] sm:$0xff]
      %v4970 = vpack.c.bf16 %v4967, %v4966
      %v4971 = vpack.c.bf16 %v4969, %v4968
      %v4972 = vld [vmem:[%s1 + $0x180] sm:$0x1]
      %v4973 = vlaneseq
      %v4974 = vshrl.u32 %v4973, 7
      %v4975 = vsub.s32 0, %v4974
      %v4976 = vrot.slane %v4972, %v4975
      %v4978 = vsel %vm214, %v4964, 0
      %v4981 = vsel %vm214, %v4965, 0
      %4983 = vmatprep.subr.bf16.mxu0 0
      %4984 = vmatpush1.bf16.msra.mxu0 %v4970
      %4985 = vmatprep.subr.bf16.mxu0 0
      %4986 = vmatpush1.bf16.msra.mxu0 %v4971
      %4987 = vmatprep.subr.bf16.mxu0 0
      %4988 = vmatpush1.bf16.msra.mxu0 0
      %4989 = vmatprep.subr.bf16.mxu0 0
      %4990 = vmatpush1.bf16.msra.mxu0 0
      %4991 = vmatprep.subr.bf16.mxu0 0
      %4992 = vmatpush1.bf16.msra.mxu0 0
      %4993 = vmatprep.subr.bf16.mxu0 0
      %4994 = vmatpush1.bf16.msra.mxu0 0
      %4995 = vmatprep.subr.bf16.mxu0 0
      %4996 = vmatpush1.bf16.msra.mxu0 0
      %4997 = vmatprep.subr.bf16.mxu0 0
      %4998 = vmatpush1.bf16.msra.mxu0 0
      %4999 = vmatprep.subr.bf16.mxu0 0
      %5000 = vmatpush1.bf16.msra.mxu0 0
      %5001 = vmatprep.subr.bf16.mxu0 0
      %5002 = vmatpush1.bf16.msra.mxu0 0
      %5003 = vmatprep.subr.bf16.mxu0 0
      %5004 = vmatpush1.bf16.msra.mxu0 0
      %5005 = vmatprep.subr.bf16.mxu0 0
      %5006 = vmatpush1.bf16.msra.mxu0 0
      %5007 = vmatprep.subr.bf16.mxu0 0
      %5008 = vmatpush1.bf16.msra.mxu0 0
      %5009 = vmatprep.subr.bf16.mxu0 0
      %5010 = vmatpush1.bf16.msra.mxu0 0
      %5011 = vmatprep.subr.bf16.mxu0 0
      %5012 = vmatpush1.bf16.msra.mxu0 0
      %5013 = vmatprep.subr.bf16.mxu0 0
      %5014 = vmatpush1.bf16.msra.mxu0 0
      %5015 = vmatprep.mubr.bf16.mxu0 0
      %5016 = vmatmul.mubr.bf16.gmra.mrb[0].mxu0 %v4978
      %v5017 = vpop.f32.mrb[0].mxu0
      %v5018 = vadd.f32 %v4976, %v5017
      %v5019 = vpop.f32.mrb[0].mxu0
      %v5020 = vpop.f32.mrb[0].mxu0
      %v5021 = vadd.f32 %v4976, %v5020
      %v5022 = vpop.f32.mrb[0].mxu0
      %5023 = vmatprep.mubr.bf16.mxu0 0
      %5024 = vmatmul.mubr.bf16.gmra.mrb[0].mxu0 %v4981
      %v5025 = vpop.f32.mrb[0].mxu0
      %v5026 = vadd.f32 %v4976, %v5025
      %v5027 = vpop.f32.mrb[0].mxu0
      %v5028 = vpop.f32.mrb[0].mxu0
      %v5029 = vpop.f32.mrb[0].mxu0
      %5030 = vdwg.mxu0
      %v5031 = vmax.f32 %v5018, 0.0
      %v5032 = vmax.f32 %v5021, 0.0
      %v5033 = vmax.f32 %v5026, 0.0
      %v5034 = vpack.c.bf16 %v5032, %v5031
      %v5035 = vpack.c.bf16 %v5033, %v5033
      %v5036 = vld [vmem:[%s1 + $0x188] sm:$0xff]
      %v5037 = vld [vmem:[%s1 + $0x190] sm:$0xff]
      %v5038 = vld [vmem:[%s1 + $0x198] sm:$0xff]
      %v5039 = vld [vmem:[%s1 + $0x1a0] sm:$0xff]
      %v5040 = vld [vmem:[%s1 + $0x1a8] sm:$0xff]
      %v5041 = vld [vmem:[%s1 + $0x1b0] sm:$0xff]
      %v5042 = vld [vmem:[%s1 + $0x1b8] sm:$0xff]
      %v5043 = vld [vmem:[%s1 + $0x1c0] sm:$0xff]
      %v5044 = vpack.c.bf16 %v5037, %v5036
      %v5045 = vpack.c.bf16 %v5039, %v5038
      %v5046 = vpack.c.bf16 %v5041, %v5040
      %v5047 = vpack.c.bf16 %v5043, %v5042
      %v5048 = vld [vmem:[%s1 + $0x1c8] sm:$0x1]
      %v5049 = vlaneseq
      %v5050 = vshrl.u32 %v5049, 7
      %v5051 = vsub.s32 0, %v5050
      %v5052 = vrot.slane %v5048, %v5051
      %v5054 = vsel %vm2637, %v5034, 0
      %v5057 = vsel %vm2637, %v5035, 0
      %5059 = vmatprep.subr.bf16.mxu0 0
      %5060 = vmatpush1.bf16.msra.mxu0 %v5044
      %5061 = vmatprep.subr.bf16.mxu0 0
      %5062 = vmatpush1.bf16.msra.mxu0 %v5045
      %5063 = vmatprep.subr.bf16.mxu0 0
      %5064 = vmatpush1.bf16.msra.mxu0 %v5046
      %5065 = vmatprep.subr.bf16.mxu0 0
      %5066 = vmatpush1.bf16.msra.mxu0 %v5047
      %5067 = vmatprep.subr.bf16.mxu0 0
      %5068 = vmatpush1.bf16.msra.mxu0 0
      %5069 = vmatprep.subr.bf16.mxu0 0
      %5070 = vmatpush1.bf16.msra.mxu0 0
      %5071 = vmatprep.subr.bf16.mxu0 0
      %5072 = vmatpush1.bf16.msra.mxu0 0
      %5073 = vmatprep.subr.bf16.mxu0 0
      %5074 = vmatpush1.bf16.msra.mxu0 0
      %5075 = vmatprep.subr.bf16.mxu0 0
      %5076 = vmatpush1.bf16.msra.mxu0 0
      %5077 = vmatprep.subr.bf16.mxu0 0
      %5078 = vmatpush1.bf16.msra.mxu0 0
      %5079 = vmatprep.subr.bf16.mxu0 0
      %5080 = vmatpush1.bf16.msra.mxu0 0
      %5081 = vmatprep.subr.bf16.mxu0 0
      %5082 = vmatpush1.bf16.msra.mxu0 0
      %5083 = vmatprep.subr.bf16.mxu0 0
      %5084 = vmatpush1.bf16.msra.mxu0 0
      %5085 = vmatprep.subr.bf16.mxu0 0
      %5086 = vmatpush1.bf16.msra.mxu0 0
      %5087 = vmatprep.subr.bf16.mxu0 0
      %5088 = vmatpush1.bf16.msra.mxu0 0
      %5089 = vmatprep.subr.bf16.mxu0 0
      %5090 = vmatpush1.bf16.msra.mxu0 0
      %5091 = vmatprep.mubr.bf16.mxu0 0
      %5092 = vmatmul.mubr.bf16.gmra.mrb[0].mxu0 %v5054
      %v5093 = vpop.f32.mrb[0].mxu0
      %v5094 = vadd.f32 %v5052, %v5093
      %v5095 = vpop.f32.mrb[0].mxu0
      %v5096 = vpop.f32.mrb[0].mxu0
      %v5097 = vadd.f32 %v5052, %v5096
      %v5098 = vpop.f32.mrb[0].mxu0
      %5099 = vmatprep.mubr.bf16.mxu0 0
      %5100 = vmatmul.mubr.bf16.gmra.mrb[0].mxu0 %v5057
      %v5101 = vpop.f32.mrb[0].mxu0
      %v5102 = vadd.f32 %v5052, %v5101
      %v5103 = vpop.f32.mrb[0].mxu0
      %v5104 = vpop.f32.mrb[0].mxu0
      %v5105 = vpop.f32.mrb[0].mxu0
      %5106 = vdwg.mxu0
      %v5107 = vadd.f32 %v4961, %v5094
      %v5108 = vadd.f32 %v4962, %v5097
      %v5109 = vadd.f32 %v4963, %v5102
      %v5110 = vld [vmem:[%s1 + $0x1d0] sm:$0x1]
      %v5111 = vld [vmem:[%s1 + $0x1d8] sm:$0x1]
      %v5112 = vsel %vm214, %v5107, 0.0
      %5113 = vadd.xlane.f32.xlu0 %v5112
      %v5114 = vpop.xlane.xlu0 %5113
      %v5115 = vsel %vm214, %v5108, 0.0
      %5116 = vadd.xlane.f32.xlu0 %v5115
      %v5117 = vpop.xlane.xlu0 %5116
      %v5118 = vsel %vm214, %v5109, 0.0
      %5119 = vadd.xlane.f32.xlu0 %v5118
      %v5120 = vpop.xlane.xlu0 %5119
      %v5121 = vmul.f32 %v5114, %v224
      %v5122 = vmul.f32 %v5117, %v224
      %v5123 = vmul.f32 %v5120, %v224
      %v5124 = vsub.f32 %v5107, %v5121
      %v5125 = vsub.f32 %v5108, %v5122
      %v5126 = vsub.f32 %v5109, %v5123
      %v5127 = vmul.f32 %v5124, %v5124
      %v5128 = vmul.f32 %v5125, %v5125
      %v5129 = vmul.f32 %v5126, %v5126
      %v5130 = vsel %vm214, %v5127, 0.0
      %5131 = vadd.xlane.f32.xlu0 %v5130
      %v5132 = vpop.xlane.xlu0 %5131
      %v5133 = vsel %vm214, %v5128, 0.0
      %5134 = vadd.xlane.f32.xlu0 %v5133
      %v5135 = vpop.xlane.xlu0 %5134
      %v5136 = vsel %vm214, %v5129, 0.0
      %5137 = vadd.xlane.f32.xlu0 %v5136
      %v5138 = vpop.xlane.xlu0 %5137
      %v5139 = vmul.f32 %v5132, %v224
      %v5140 = vmul.f32 %v5135, %v224
      %v5141 = vmul.f32 %v5138, %v224
      %v5142 = vadd.f32 %v5139, 1e-05
      %v5143 = vadd.f32 %v5140, 1e-05
      %v5144 = vadd.f32 %v5141, 1e-05
      %v5145 = vrsqrt.pop %v5142
      %v5146 = vrsqrt.pop %v5143
      %v5147 = vrsqrt.pop %v5144
      %v5148 = vmul.f32 %v5124, %v5145
      %v5149 = vmul.f32 %v5125, %v5146
      %v5150 = vmul.f32 %v5126, %v5147
      %v5151 = vlaneseq
      %v5152 = vshrl.u32 %v5151, 7
      %v5153 = vsub.s32 0, %v5152
      %v5154 = vrot.slane %v5110, %v5153
      %v5155 = vmul.f32 %v5148, %v5154
      %v5156 = vmul.f32 %v5149, %v5154
      %v5157 = vmul.f32 %v5150, %v5154
      %v5158 = vlaneseq
      %v5159 = vshrl.u32 %v5158, 7
      %v5160 = vsub.s32 0, %v5159
      %v5161 = vrot.slane %v5111, %v5160
      %v5162 = vadd.f32 %v5155, %v5161
      %v5163 = vadd.f32 %v5156, %v5161
      %v5164 = vadd.f32 %v5157, %v5161
      %v5166 = vsel %vm2419, %v331, 0
      %5168 = vmatprep.subr.mxu0 0.0
      %5169 = vmatpush1.msra.mxu0 %v5162
      %5170 = vmatprep.subr.mxu0 0.0
      %5171 = vmatpush1.msra.mxu0 %v5163
      %5172 = vmatprep.subr.mxu0 0.0
      %5173 = vmatpush1.msra.mxu0 %v5164
      %5174 = vmatprep.subr.mxu0 0.0
      %5175 = vmatpush1.msra.mxu0 0.0
      %5176 = vmatprep.subr.mxu0 0.0
      %5177 = vmatpush1.msra.mxu0 0.0
      %5178 = vmatprep.subr.mxu0 0.0
      %5179 = vmatpush1.msra.mxu0 0.0
      %5180 = vmatprep.subr.mxu0 0.0
      %5181 = vmatpush1.msra.mxu0 0.0
      %5182 = vmatprep.subr.mxu0 0.0
      %5183 = vmatpush1.msra.mxu0 0.0
      %5184 = vmatprep.subr.mxu0 0.0
      %5185 = vmatpush1.msra.mxu0 0.0
      %5186 = vmatprep.subr.mxu0 0.0
      %5187 = vmatpush1.msra.mxu0 0.0
      %5188 = vmatprep.subr.mxu0 0.0
      %5189 = vmatpush1.msra.mxu0 0.0
      %5190 = vmatprep.subr.mxu0 0.0
      %5191 = vmatpush1.msra.mxu0 0.0
      %5192 = vmatprep.subr.mxu0 0.0
      %5193 = vmatpush1.msra.mxu0 0.0
      %5194 = vmatprep.subr.mxu0 0.0
      %5195 = vmatpush1.msra.mxu0 0.0
      %5196 = vmatprep.subr.mxu0 0.0
      %5197 = vmatpush1.msra.mxu0 0.0
      %5198 = vmatprep.subr.mxu0 0.0
      %5199 = vmatpush1.msra.mxu0 0.0
      %5200 = vmatprep.subr.mxu0 0.0
      %5201 = vmatpush1.msra.mxu0 0.0
      %5202 = vmatprep.subr.mxu0 0.0
      %5203 = vmatpush1.msra.mxu0 0.0
      %5204 = vmatprep.subr.mxu0 0.0
      %5205 = vmatpush1.msra.mxu0 0.0
      %5206 = vmatprep.subr.mxu0 0.0
      %5207 = vmatpush1.msra.mxu0 0.0
      %5208 = vmatprep.subr.mxu0 0.0
      %5209 = vmatpush1.msra.mxu0 0.0
      %5210 = vmatprep.subr.mxu0 0.0
      %5211 = vmatpush1.msra.mxu0 0.0
      %5212 = vmatprep.subr.mxu0 0.0
      %5213 = vmatpush1.msra.mxu0 0.0
      %5214 = vmatprep.subr.mxu0 0.0
      %5215 = vmatpush1.msra.mxu0 0.0
      %5216 = vmatprep.subr.mxu0 0.0
      %5217 = vmatpush1.msra.mxu0 0.0
      %5218 = vmatprep.subr.mxu0 0.0
      %5219 = vmatpush1.msra.mxu0 0.0
      %5220 = vmatprep.subr.mxu0 0.0
      %5221 = vmatpush1.msra.mxu0 0.0
      %5222 = vmatprep.subr.mxu0 0.0
      %5223 = vmatpush1.msra.mxu0 0.0
      %5224 = vmatprep.subr.mxu0 0.0
      %5225 = vmatpush1.msra.mxu0 0.0
      %5226 = vmatprep.subr.mxu0 0.0
      %5227 = vmatpush1.msra.mxu0 0.0
      %5228 = vmatprep.subr.mxu0 0.0
      %5229 = vmatpush1.msra.mxu0 0.0
      %5230 = vmatprep.subr.mxu0 0.0
      %5231 = vmatpush1.msra.mxu0 0.0
      %5232 = vmatprep.mubr.f32.mxu0 0.0
      %5233 = vmatmul.mubr.f32.gmra.mrb[0].mxu0 %v5166
      %v5234 = vpop.f32.mrb[0].mxu0
      %v5235 = vadd.f32 0.0, %v5234
      %v5236 = vpop.f32.mrb[0].mxu0
      %5237 = vdwg.mxu0
      %v5239 = vrot.slane %v5235, 1
      %v5241 = vsub.f32 %v5235, %v5239
      %v5242 = vand.u32 2147483647, %v5241
      %v5243 = vmax.f32 %v5242, 0.0
      %v5244 = vrot.slane %v5235, 2
      %v5246 = vsub.f32 %v5235, %v5244
      %v5247 = vand.u32 2147483647, %v5246
      %v5248 = vmax.f32 %v5247, 0.0
      %v5249 = vld [vmem:[%s1 + $0x1e0] sm:$0x1]
      %v5250 = vmul.f32 %v5243, %v5249
      %vm5251 = vcmask 253952
      %v5252 = vsel %vm5251, %v5250, 0.0
      %5253 = vadd.xlane.f32.xlu0 %v5252
      %v5254 = vpop.xlane.xlu0 %5253
      %v5255 = vld [vmem:[%s1 + $0x1e8] sm:$0x1]
      %v5256 = vmul.f32 %v5248, %v5255
      %v5257 = vsel %vm5251, %v5256, 0.0
      %5258 = vadd.xlane.f32.xlu0 %v5257
      %v5259 = vpop.xlane.xlu0 %5258
      %v5260 = vadd.f32 %v5254, %v5259
      %v5261 = vld [vmem:[%s1 + $0x1f0] sm:$0x1]
      %v5262 = vadd.f32 %v5260, %v5261
      %v5263 = vxor.u32 %v5262, 2147483648
      %v5264 = vmul.f32 %v5263, 1.442695
      %v5265 = vpow.pop %v5264
      %v5266 = vadd.f32 %v5265, 1.0
      %v5267 = vrcp.pop %v5266
      %v5268 = vmul.f32 1.0, %v5267
      %vm5269 = vcmask 0
      %5270 = vst.msk [vmem:[%s139] sm:$0x1] %vm5269, %v5268
      %p5271 = scmp.lt.s32.totalorder %s13, 1
      %s5272 = scalar_select %p5271, %s13, 1
      %s5273 = scalar_lea.vmem %s2, %s5272
      // Predicated region
      $region29: #{dctfeita_forward.1} parent=27 // pred_check
        %p5274 = pneg %p78
      $region30: #{dctfeita_forward.1} parent=27 // pred_check_branch
        %5276 = sbr.rel (%p5274) target = $region32
      $region31: #{dctfeita_forward.1} parent=27 // pred_region
        _
      $region32: #{dctfeita_forward.1} parent=27 // pred_fallthru
        _
    $region28: #{dctfeita_forward.1} parent=5 // pred_fallthru
      _
    %p5277 = scmp.le.s32.totalorder 2, %s8
    // Predicated region
    $region33: #{dctfeita_forward.1} parent=5 // pred_check
      %p5278 = pneg %p5277
    $region34: #{dctfeita_forward.1} parent=5 // pred_check_branch
      %5280 = sbr.rel (%p5278) target = $region36
    $region35: #{dctfeita_forward.1} parent=5 // pred_region
      %s5281 = ssub.s32 %s8, 2
      // Predicated region
      $region37: #{dctfeita_forward.1} parent=35 // pred_check
        %p5282 = pneg %p84
      $region38: #{dctfeita_forward.1} parent=35 // pred_check_branch
        %5284 = sbr.rel (%p5282) target = $region40
      $region39: #{dctfeita_forward.1} parent=35 // pred_region
        %p5285 = scmp.lt.s32.totalorder %s14, 1
        %s5286 = scalar_select %p5285, %s14, 1
        %s5287 = scalar_lea.vmem %s2, %s5286
      $region40: #{dctfeita_forward.1} parent=35 // pred_fallthru
        _
    $region36: #{dctfeita_forward.1} parent=5 // pred_fallthru
      _
  $region6: #{dctfeita_forward.1} parent=0 // loop_footer
    %s12 = sadd.s32 1, %s8
  $region7: #{dctfeita_forward.1} parent=0 // loop_footer_branch
    %7 = sbr.rel target = $region3
  $region8: #{dctfeita_forward.1} parent=0 // loop_exit
    _

</llo_original>
